<compile_context>
chip_gen: v5e
topology: v5e:2x2
jax: 0.10.0
libtpu: 0.0.40
codegen_flags: <defaults>
</compile_context>

<pallas_src>
import functools

import jax
import jax.numpy as jnp
from jax import lax
from jax.experimental import pallas as pl
from jax.experimental.pallas import tpu as pltpu


# ----------------------------------------------------------------------------
# Fused kernel: per grid step, one image goes conv1+ReLU -> pool -> conv2+ReLU
# -> pool -> (flatten) -> fc, entirely in VMEM.
# ----------------------------------------------------------------------------
def _fine_tune_kernel(x_ref, w1_ref, b1_ref, w2_ref, b2_ref,
                      s1_ref, s2_ref, wfc_ref, bfc_ref, o_ref,
                      *, sp1, sp2, use_bf16):
    f32 = jnp.float32

    def mxu_dot(a, b):
        # bf16 operands keep the v6e/v7x MXU at full rate; accumulation is f32.
        if use_bf16:
            a = a.astype(jnp.bfloat16)
            b = b.astype(jnp.bfloat16)
        return jnp.dot(a, b, preferred_element_type=f32)

    def shift_rows(v, s):
        # result[p] = v[p + s] if 0 <= p + s < n else 0   (s is a Python int).
        n = v.shape[0]
        if s == 0:
            return v
        z = jnp.zeros_like(v)
        return jnp.concatenate([z, v, z], axis=0)[n + s: 2 * n + s]

    def conv3x3_relu(a, wk_ref, b_ref, h, w):
        # a: (h*w, cin) activation, rows in (h, w) row-major order (HWC layout).
        # wk_ref: (9, cin, cout) with tap index k = ki*3 + kj.
        hw = h * w
        cout = wk_ref.shape[2]
        pj = lax.broadcasted_iota(jnp.int32, (hw, 1), 0) % w   # column index
        col_ok = {-1: pj >= 1, 1: pj <= (w - 2)}
        acc = jnp.zeros((hw, cout), f32)
        for ki in range(3):
            for kj in range(3):
                di, dj = ki - 1, kj - 1
                shifted = shift_rows(a, di * w + dj)
                if dj != 0:  # mask columns whose horizontal neighbour is OOB
                    shifted = jnp.where(col_ok[dj], shifted, 0.0)
                acc = acc + mxu_dot(shifted, wk_ref[ki * 3 + kj])
        return jnp.maximum(acc + b_ref[...], 0.0)

    def maxpool2x2(a, sel_ref, w):
        # a: (h*w, c) -> (h*w//4, c).  Window max via 3 row-shifts; the 0/1
        # selection matmul picks the top-left row of each 2x2 window.
        m = jnp.maximum(jnp.maximum(a, shift_rows(a, 1)),
                        jnp.maximum(shift_rows(a, w), shift_rows(a, w + 1)))
        return jnp.dot(sel_ref[...], m, preferred_element_type=f32)

    h1, w1 = sp1
    h2, w2 = sp2

    x = x_ref[0].astype(f32)                         # (h1*w1, cin)
    a = conv3x3_relu(x, w1_ref, b1_ref, h1, w1)      # (h1*w1, hid)
    a = maxpool2x2(a, s1_ref, w1)                    # (h2*w2, hid)
    a = conv3x3_relu(a, w2_ref, b2_ref, h2, w2)      # (h2*w2, hid)
    a = maxpool2x2(a, s2_ref, w2)                    # (h3*w3, hid)

    # Classifier.  PyTorch NCHW flatten (k = c*(h3*w3) + p) is folded into the
    # pre-permuted fc weight wfc_ref[p, c, n]; contract (p, c) as h3*w3 small
    # row-matmuls accumulated in f32.  Output lanes are padded to 128.
    logits = bfc_ref[...].astype(f32)                # (1, n_pad)
    for p in range(a.shape[0]):
        logits = logits + mxu_dot(a[p:p + 1, :], wfc_ref[p])
    o_ref[0] = logits.astype(o_ref.dtype)


# ----------------------------------------------------------------------------
# One-off parameter preparation (hoisted out of the per-call forward).
# ----------------------------------------------------------------------------
def _pool_select_matrix(h, w):
    """0/1 matrix S (h*w//4, h*w): S[q, p] = 1 iff p is the top-left element of
    2x2 window q (row-major over the pooled grid)."""
    h2, w2 = h // 2, w // 2
    q = jnp.arange(h2 * w2)
    p00 = (2 * (q // w2)) * w + 2 * (q % w2)
    return jax.nn.one_hot(p00, h * w, dtype=jnp.float32)


def prepare_kernel_params(params, spatial, n_pad=128):
    """Rearrange PyTorch-layout weights into kernel-ready layouts (done once)."""
    hid = params["conv1_w"].shape[0]
    n_classes, out_dim = params["fc_w"].shape
    h3 = w3 = spatial // 4
    assert out_dim == hid * h3 * w3, (out_dim, hid, h3, w3)

    def conv_mat(w):  # (O, I, 3, 3) -> (9, I, O), tap index k = ki*3 + kj
        return jnp.transpose(w, (2, 3, 1, 0)).reshape(9, w.shape[1], w.shape[0])

    # fc weight: PyTorch flatten index k = c*(h3*w3) + p  ->  wfc[p, c, n].
    wfc = jnp.transpose(params["fc_w"].reshape(n_classes, hid, h3 * w3), (2, 1, 0))
    wfc_pad = jnp.zeros((h3 * w3, hid, n_pad), jnp.float32).at[:, :, :n_classes].set(wfc)
    bfc_pad = jnp.zeros((1, n_pad), jnp.float32).at[0, :n_classes].set(params["fc_b"])

    return {
        "w1": conv_mat(params["conv1_w"]).astype(jnp.float32),
        "b1": params["conv1_b"].reshape(1, hid).astype(jnp.float32),
        "w2": conv_mat(params["conv2_w"]).astype(jnp.float32),
        "b2": params["conv2_b"].reshape(1, hid).astype(jnp.float32),
        "s1": _pool_select_matrix(spatial, spatial),
        "s2": _pool_select_matrix(spatial // 2, spatial // 2),
        "wfc": wfc_pad,
        "bfc": bfc_pad,
    }


# ----------------------------------------------------------------------------
# FineTune forward: classifier(encoder(x)), single fused pallas_call.
# ----------------------------------------------------------------------------
@functools.partial(jax.jit, static_argnames=("n_classes", "use_bf16"))
def fine_tune_forward(kparams, x_nchw, *, n_classes, use_bf16=False):
    n, cin, h, w = x_nchw.shape
    hw1 = h * w
    hw2 = (h // 2) * (w // 2)
    hw3 = (h // 4) * (w // 4)
    hid = kparams["w1"].shape[2]
    n_pad = kparams["wfc"].shape[2]

    # NCHW -> (N, H*W, Cin): spatial row-major on sublanes, channels on lanes.
    x_r = jnp.transpose(x_nchw.astype(jnp.float32), (0, 2, 3, 1)).reshape(n, hw1, cin)

    kernel = functools.partial(_fine_tune_kernel, sp1=(h, w),
                               sp2=(h // 2, w // 2), use_bf16=use_bf16)

    logits_pad = pl.pallas_call(
        kernel,
        out_shape=jax.ShapeDtypeStruct((n, 1, n_pad), jnp.float32),
        grid=(n,),
        in_specs=[
            pl.BlockSpec((1, hw1, cin), lambda b: (b, 0, 0)),      # x (per image)
            pl.BlockSpec((9, cin, hid), lambda b: (0, 0, 0)),      # conv1 weights
            pl.BlockSpec((1, hid), lambda b: (0, 0)),              # conv1 bias
            pl.BlockSpec((9, hid, hid), lambda b: (0, 0, 0)),      # conv2 weights
            pl.BlockSpec((1, hid), lambda b: (0, 0)),              # conv2 bias
            pl.BlockSpec((hw2, hw1), lambda b: (0, 0)),            # pool-1 selector
            pl.BlockSpec((hw3, hw2), lambda b: (0, 0)),            # pool-2 selector
            pl.BlockSpec((hw3, hid, n_pad), lambda b: (0, 0, 0)),  # fc weight
            pl.BlockSpec((1, n_pad), lambda b: (0, 0)),            # fc bias (padded)
        ],
        out_specs=pl.BlockSpec((1, 1, n_pad), lambda b: (b, 0, 0)),
        compiler_params=pltpu.CompilerParams(
            dimension_semantics=("parallel",),      # v7x: 2 TCs split the batch
            vmem_limit_bytes=32 * 1024 * 1024,      # explicit, safe on v5e/v6e/v7x
        ),
    )(x_r, kparams["w1"], kparams["b1"], kparams["w2"], kparams["b2"],
      kparams["s1"], kparams["s2"], kparams["wfc"], kparams["bfc"])

    return logits_pad.reshape(n, n_pad)[:, :n_classes]


# ----------------------------------------------------------------------------
# Parameters (PyTorch layouts) and a pure-XLA reference for validation.
# ----------------------------------------------------------------------------
def init_params(key, in_channels=4, hid=32, spatial=16, n_classes=10):
    ks = jax.random.split(key, 6)
    out_spatial = spatial // 4
    out_dim = hid * out_spatial * out_spatial
    scale1 = 1.0 / jnp.sqrt(in_channels * 9.0)
    scale2 = 1.0 / jnp.sqrt(hid * 9.0)
    scale3 = 1.0 / jnp.sqrt(float(out_dim))
    return {
        "conv1_w": jax.random.normal(ks[0], (hid, in_channels, 3, 3), jnp.float32) * scale1,
        "conv1_b": jax.random.normal(ks[1], (hid,), jnp.float32) * scale1,
        "conv2_w": jax.random.normal(ks[2], (hid, hid, 3, 3), jnp.float32) * scale2,
        "conv2_b": jax.random.normal(ks[3], (hid,), jnp.float32) * scale2,
        "fc_w": jax.random.normal(ks[4], (n_classes, out_dim), jnp.float32) * scale3,
        "fc_b": jax.random.normal(ks[5], (n_classes,), jnp.float32) * scale3,
        # TODO(synk): self.temp (learnable temperature) exists in __init__ but is
        # unused by FineTune.forward(); kept only for parameter parity.
        "temp": jnp.float32(10.0),
    }


def fine_tune_reference(params, x_nchw):
    """Pure-XLA reference matching the PyTorch module (validation only)."""
    x = x_nchw.astype(jnp.float32)

    def block(x, w, b):
        y = lax.conv_general_dilated(
            x, w, window_strides=(1, 1), padding=((1, 1), (1, 1)),
            dimension_numbers=("NCHW", "OIHW", "NCHW"))
        y = jnp.maximum(y + b.reshape(1, -1, 1, 1), 0.0)
        n, c, hh, ww = y.shape
        return y.reshape(n, c, hh // 2, 2, ww // 2, 2).max(axis=(3, 5))

    x = block(x, params["conv1_w"], params["conv1_b"])
    x = block(x, params["conv2_w"], params["conv2_b"])
    feat = x.reshape(x.shape[0], -1)                 # NCHW flatten order
    return feat @ params["fc_w"].T + params["fc_b"]


if __name__ == "__main__":
    key = jax.random.PRNGKey(0)
    k_param, k_x = jax.random.split(key)

    batch, channels, spatial, hid, n_classes = 2, 4, 16, 32, 10
    params = init_params(k_param, in_channels=channels, hid=hid,
                         spatial=spatial, n_classes=n_classes)
    kparams = prepare_kernel_params(params, spatial=spatial)

    x = jax.random.normal(k_x, (batch, channels, spatial, spatial), jnp.float32)

    logits = fine_tune_forward(kparams, x, n_classes=n_classes)
    jax.block_until_ready(logits)
    assert logits.shape == (batch, n_classes), logits.shape
    assert logits.dtype == jnp.float32

    ref = fine_tune_reference(params, x)
    max_err = float(jnp.max(jnp.abs(logits - ref)))
    assert jnp.allclose(logits, ref, rtol=5e-2, atol=5e-2), max_err

    print("KERNEL_OK")
</pallas_src>

<mosaic_0001>
module attributes {stable_mosaic.version = 11 : i64} {
  func.func @_fine_tune_kernel(%arg0: i32, %arg1: memref<1x256x4xf32, #tpu.memory_space<vmem>>, %arg2: memref<9x4x32xf32, #tpu.memory_space<vmem>>, %arg3: memref<1x32xf32, #tpu.memory_space<vmem>>, %arg4: memref<9x32x32xf32, #tpu.memory_space<vmem>>, %arg5: memref<1x32xf32, #tpu.memory_space<vmem>>, %arg6: memref<64x256xf32, #tpu.memory_space<vmem>>, %arg7: memref<16x64xf32, #tpu.memory_space<vmem>>, %arg8: memref<16x32x128xf32, #tpu.memory_space<vmem>>, %arg9: memref<1x128xf32, #tpu.memory_space<vmem>>, %arg10: memref<1x1x128xf32, #tpu.memory_space<vmem>>) attributes {dimension_semantics = [#tpu.dimension_semantics<parallel>], iteration_bounds = array<i64: 2>, scalar_prefetch = 0 : i64, scratch_operands = 0 : i64, tpu.core_type = #tpu.core_type<tc>, window_params = [{transform_indices = @transform_0, window_bounds = array<i64: 1, 256, 4>}, {pipeline_mode = #tpu.pipeline_mode<synchronous>, transform_indices = @transform_1, window_bounds = array<i64: 9, 4, 32>}, {pipeline_mode = #tpu.pipeline_mode<synchronous>, transform_indices = @transform_2, window_bounds = array<i64: 1, 32>}, {pipeline_mode = #tpu.pipeline_mode<synchronous>, transform_indices = @transform_3, window_bounds = array<i64: 9, 32, 32>}, {pipeline_mode = #tpu.pipeline_mode<synchronous>, transform_indices = @transform_4, window_bounds = array<i64: 1, 32>}, {pipeline_mode = #tpu.pipeline_mode<synchronous>, transform_indices = @transform_5, window_bounds = array<i64: 64, 256>}, {pipeline_mode = #tpu.pipeline_mode<synchronous>, transform_indices = @transform_6, window_bounds = array<i64: 16, 64>}, {pipeline_mode = #tpu.pipeline_mode<synchronous>, transform_indices = @transform_7, window_bounds = array<i64: 16, 32, 128>}, {pipeline_mode = #tpu.pipeline_mode<synchronous>, transform_indices = @transform_8, window_bounds = array<i64: 1, 128>}, {transform_indices = @transform_9, window_bounds = array<i64: 1, 1, 128>}]} {
    %c0 = arith.constant 0 : index
    %c0_0 = arith.constant 0 : index
    %c0_1 = arith.constant 0 : index
    %0 = vector.load %arg1[%c0, %c0_0, %c0_1] : memref<1x256x4xf32, #tpu.memory_space<vmem>>, vector<1x256x4xf32>
    %1 = vector.shape_cast %0 : vector<1x256x4xf32> to vector<256x4xf32>
    %2 = tpu.iota {dimensions = array<i32: 0>} : vector<256x1xi32>
    %c16_i32 = arith.constant 16 : i32
    %c0_i32 = arith.constant 0 : i32
    %3 = arith.cmpi eq, %c16_i32, %c0_i32 : i32
    %c1_i32 = arith.constant 1 : i32
    %4 = arith.select %3, %c1_i32, %c16_i32 : i32
    %5 = vector.broadcast %4 : i32 to vector<256x1xi32>
    %6 = arith.remsi %2, %5 : vector<256x1xi32>
    %c0_i32_2 = arith.constant 0 : i32
    %7 = vector.broadcast %c0_i32_2 : i32 to vector<256x1xi32>
    %8 = arith.cmpi ne, %6, %7 : vector<256x1xi32>
    %c0_i32_3 = arith.constant 0 : i32
    %9 = vector.broadcast %c0_i32_3 : i32 to vector<256x1xi32>
    %10 = arith.cmpi slt, %6, %9 : vector<256x1xi32>
    %c0_i32_4 = arith.constant 0 : i32
    %11 = arith.cmpi slt, %4, %c0_i32_4 : i32
    %12 = vector.broadcast %11 : i1 to vector<256x1xi1>
    %13 = vector.broadcast %12 : vector<256x1xi1> to vector<256x1xi1>
    %14 = arith.xori %10, %13 : vector<256x1xi1>
    %15 = arith.andi %14, %8 : vector<256x1xi1>
    %16 = vector.broadcast %4 : i32 to vector<256x1xi32>
    %17 = arith.addi %6, %16 : vector<256x1xi32>
    %18 = arith.select %15, %17, %6 : vector<256x1xi1>, vector<256x1xi32>
    %c1_i32_5 = arith.constant 1 : i32
    %19 = vector.broadcast %c1_i32_5 : i32 to vector<256x1xi32>
    %20 = arith.cmpi sge, %18, %19 : vector<256x1xi32>
    %c14_i32 = arith.constant 14 : i32
    %21 = vector.broadcast %c14_i32 : i32 to vector<256x1xi32>
    %22 = arith.cmpi sle, %18, %21 : vector<256x1xi32>
    %cst = arith.constant 0.000000e+00 : f32
    %23 = vector.broadcast %cst : f32 to vector<256x32xf32>
    %cst_6 = arith.constant 0.000000e+00 : f32
    %24 = vector.broadcast %cst_6 : f32 to vector<256x4xf32>
    %25 = tpu.concatenate %24, %1, %24 in 0 : vector<256x4xf32>, vector<256x4xf32>, vector<256x4xf32> -> vector<768x4xf32>
    %26 = vector.extract_strided_slice %25 {offsets = [239, 0], sizes = [256, 4], strides = [1, 1]} : vector<768x4xf32> to vector<256x4xf32>
    %cst_7 = arith.constant 0.000000e+00 : f32
    %27 = vector.shape_cast %20 : vector<256x1xi1> to vector<256x1xi1>
    %28 = vector.broadcast %27 : vector<256x1xi1> to vector<256x4xi1>
    %29 = vector.broadcast %cst_7 : f32 to vector<256x4xf32>
    %30 = arith.select %28, %26, %29 : vector<256x4xi1>, vector<256x4xf32>
    %c0_8 = arith.constant 0 : index
    %c0_9 = arith.constant 0 : index
    %c0_10 = arith.constant 0 : index
    %31 = vector.load %arg2[%c0_8, %c0_9, %c0_10] : memref<9x4x32xf32, #tpu.memory_space<vmem>>, vector<1x4x32xf32>
    %32 = vector.shape_cast %31 : vector<1x4x32xf32> to vector<4x32xf32>
    %cst_11 = arith.constant dense<0.000000e+00> : vector<256x32xf32>
    %33 = tpu.matmul %30, %32, %cst_11 {dimension_numbers = #tpu.dot_dimension_numbers<[1], [0], [0], [1], [0, 0, 1, 1], [], []>} : vector<256x4xf32>, vector<4x32xf32>, vector<256x32xf32> -> vector<256x32xf32>
    %34 = arith.addf %23, %33 : vector<256x32xf32>
    %cst_12 = arith.constant 0.000000e+00 : f32
    %35 = vector.broadcast %cst_12 : f32 to vector<256x4xf32>
    %36 = tpu.concatenate %35, %1, %35 in 0 : vector<256x4xf32>, vector<256x4xf32>, vector<256x4xf32> -> vector<768x4xf32>
    %37 = vector.extract_strided_slice %36 {offsets = [240, 0], sizes = [256, 4], strides = [1, 1]} : vector<768x4xf32> to vector<256x4xf32>
    %c1 = arith.constant 1 : index
    %c0_13 = arith.constant 0 : index
    %c0_14 = arith.constant 0 : index
    %38 = vector.load %arg2[%c1, %c0_13, %c0_14] : memref<9x4x32xf32, #tpu.memory_space<vmem>>, vector<1x4x32xf32>
    %39 = vector.shape_cast %38 : vector<1x4x32xf32> to vector<4x32xf32>
    %cst_15 = arith.constant dense<0.000000e+00> : vector<256x32xf32>
    %40 = tpu.matmul %37, %39, %cst_15 {dimension_numbers = #tpu.dot_dimension_numbers<[1], [0], [0], [1], [0, 0, 1, 1], [], []>} : vector<256x4xf32>, vector<4x32xf32>, vector<256x32xf32> -> vector<256x32xf32>
    %41 = arith.addf %34, %40 : vector<256x32xf32>
    %cst_16 = arith.constant 0.000000e+00 : f32
    %42 = vector.broadcast %cst_16 : f32 to vector<256x4xf32>
    %43 = tpu.concatenate %42, %1, %42 in 0 : vector<256x4xf32>, vector<256x4xf32>, vector<256x4xf32> -> vector<768x4xf32>
    %44 = vector.extract_strided_slice %43 {offsets = [241, 0], sizes = [256, 4], strides = [1, 1]} : vector<768x4xf32> to vector<256x4xf32>
    %cst_17 = arith.constant 0.000000e+00 : f32
    %45 = vector.shape_cast %22 : vector<256x1xi1> to vector<256x1xi1>
    %46 = vector.broadcast %45 : vector<256x1xi1> to vector<256x4xi1>
    %47 = vector.broadcast %cst_17 : f32 to vector<256x4xf32>
    %48 = arith.select %46, %44, %47 : vector<256x4xi1>, vector<256x4xf32>
    %c2 = arith.constant 2 : index
    %c0_18 = arith.constant 0 : index
    %c0_19 = arith.constant 0 : index
    %49 = vector.load %arg2[%c2, %c0_18, %c0_19] : memref<9x4x32xf32, #tpu.memory_space<vmem>>, vector<1x4x32xf32>
    %50 = vector.shape_cast %49 : vector<1x4x32xf32> to vector<4x32xf32>
    %cst_20 = arith.constant dense<0.000000e+00> : vector<256x32xf32>
    %51 = tpu.matmul %48, %50, %cst_20 {dimension_numbers = #tpu.dot_dimension_numbers<[1], [0], [0], [1], [0, 0, 1, 1], [], []>} : vector<256x4xf32>, vector<4x32xf32>, vector<256x32xf32> -> vector<256x32xf32>
    %52 = arith.addf %41, %51 : vector<256x32xf32>
    %cst_21 = arith.constant 0.000000e+00 : f32
    %53 = vector.broadcast %cst_21 : f32 to vector<256x4xf32>
    %54 = tpu.concatenate %53, %1, %53 in 0 : vector<256x4xf32>, vector<256x4xf32>, vector<256x4xf32> -> vector<768x4xf32>
    %55 = vector.extract_strided_slice %54 {offsets = [255, 0], sizes = [256, 4], strides = [1, 1]} : vector<768x4xf32> to vector<256x4xf32>
    %cst_22 = arith.constant 0.000000e+00 : f32
    %56 = vector.shape_cast %20 : vector<256x1xi1> to vector<256x1xi1>
    %57 = vector.broadcast %56 : vector<256x1xi1> to vector<256x4xi1>
    %58 = vector.broadcast %cst_22 : f32 to vector<256x4xf32>
    %59 = arith.select %57, %55, %58 : vector<256x4xi1>, vector<256x4xf32>
    %c3 = arith.constant 3 : index
    %c0_23 = arith.constant 0 : index
    %c0_24 = arith.constant 0 : index
    %60 = vector.load %arg2[%c3, %c0_23, %c0_24] : memref<9x4x32xf32, #tpu.memory_space<vmem>>, vector<1x4x32xf32>
    %61 = vector.shape_cast %60 : vector<1x4x32xf32> to vector<4x32xf32>
    %cst_25 = arith.constant dense<0.000000e+00> : vector<256x32xf32>
    %62 = tpu.matmul %59, %61, %cst_25 {dimension_numbers = #tpu.dot_dimension_numbers<[1], [0], [0], [1], [0, 0, 1, 1], [], []>} : vector<256x4xf32>, vector<4x32xf32>, vector<256x32xf32> -> vector<256x32xf32>
    %63 = arith.addf %52, %62 : vector<256x32xf32>
    %c4 = arith.constant 4 : index
    %c0_26 = arith.constant 0 : index
    %c0_27 = arith.constant 0 : index
    %64 = vector.load %arg2[%c4, %c0_26, %c0_27] : memref<9x4x32xf32, #tpu.memory_space<vmem>>, vector<1x4x32xf32>
    %65 = vector.shape_cast %64 : vector<1x4x32xf32> to vector<4x32xf32>
    %cst_28 = arith.constant dense<0.000000e+00> : vector<256x32xf32>
    %66 = tpu.matmul %1, %65, %cst_28 {dimension_numbers = #tpu.dot_dimension_numbers<[1], [0], [0], [1], [0, 0, 1, 1], [], []>} : vector<256x4xf32>, vector<4x32xf32>, vector<256x32xf32> -> vector<256x32xf32>
    %67 = arith.addf %63, %66 : vector<256x32xf32>
    %cst_29 = arith.constant 0.000000e+00 : f32
    %68 = vector.broadcast %cst_29 : f32 to vector<256x4xf32>
    %69 = tpu.concatenate %68, %1, %68 in 0 : vector<256x4xf32>, vector<256x4xf32>, vector<256x4xf32> -> vector<768x4xf32>
    %70 = vector.extract_strided_slice %69 {offsets = [257, 0], sizes = [256, 4], strides = [1, 1]} : vector<768x4xf32> to vector<256x4xf32>
    %cst_30 = arith.constant 0.000000e+00 : f32
    %71 = vector.shape_cast %22 : vector<256x1xi1> to vector<256x1xi1>
    %72 = vector.broadcast %71 : vector<256x1xi1> to vector<256x4xi1>
    %73 = vector.broadcast %cst_30 : f32 to vector<256x4xf32>
    %74 = arith.select %72, %70, %73 : vector<256x4xi1>, vector<256x4xf32>
    %c5 = arith.constant 5 : index
    %c0_31 = arith.constant 0 : index
    %c0_32 = arith.constant 0 : index
    %75 = vector.load %arg2[%c5, %c0_31, %c0_32] : memref<9x4x32xf32, #tpu.memory_space<vmem>>, vector<1x4x32xf32>
    %76 = vector.shape_cast %75 : vector<1x4x32xf32> to vector<4x32xf32>
    %cst_33 = arith.constant dense<0.000000e+00> : vector<256x32xf32>
    %77 = tpu.matmul %74, %76, %cst_33 {dimension_numbers = #tpu.dot_dimension_numbers<[1], [0], [0], [1], [0, 0, 1, 1], [], []>} : vector<256x4xf32>, vector<4x32xf32>, vector<256x32xf32> -> vector<256x32xf32>
    %78 = arith.addf %67, %77 : vector<256x32xf32>
    %cst_34 = arith.constant 0.000000e+00 : f32
    %79 = vector.broadcast %cst_34 : f32 to vector<256x4xf32>
    %80 = tpu.concatenate %79, %1, %79 in 0 : vector<256x4xf32>, vector<256x4xf32>, vector<256x4xf32> -> vector<768x4xf32>
    %81 = vector.extract_strided_slice %80 {offsets = [271, 0], sizes = [256, 4], strides = [1, 1]} : vector<768x4xf32> to vector<256x4xf32>
    %cst_35 = arith.constant 0.000000e+00 : f32
    %82 = vector.shape_cast %20 : vector<256x1xi1> to vector<256x1xi1>
    %83 = vector.broadcast %82 : vector<256x1xi1> to vector<256x4xi1>
    %84 = vector.broadcast %cst_35 : f32 to vector<256x4xf32>
    %85 = arith.select %83, %81, %84 : vector<256x4xi1>, vector<256x4xf32>
    %c6 = arith.constant 6 : index
    %c0_36 = arith.constant 0 : index
    %c0_37 = arith.constant 0 : index
    %86 = vector.load %arg2[%c6, %c0_36, %c0_37] : memref<9x4x32xf32, #tpu.memory_space<vmem>>, vector<1x4x32xf32>
    %87 = vector.shape_cast %86 : vector<1x4x32xf32> to vector<4x32xf32>
    %cst_38 = arith.constant dense<0.000000e+00> : vector<256x32xf32>
    %88 = tpu.matmul %85, %87, %cst_38 {dimension_numbers = #tpu.dot_dimension_numbers<[1], [0], [0], [1], [0, 0, 1, 1], [], []>} : vector<256x4xf32>, vector<4x32xf32>, vector<256x32xf32> -> vector<256x32xf32>
    %89 = arith.addf %78, %88 : vector<256x32xf32>
    %cst_39 = arith.constant 0.000000e+00 : f32
    %90 = vector.broadcast %cst_39 : f32 to vector<256x4xf32>
    %91 = tpu.concatenate %90, %1, %90 in 0 : vector<256x4xf32>, vector<256x4xf32>, vector<256x4xf32> -> vector<768x4xf32>
    %92 = vector.extract_strided_slice %91 {offsets = [272, 0], sizes = [256, 4], strides = [1, 1]} : vector<768x4xf32> to vector<256x4xf32>
    %c7 = arith.constant 7 : index
    %c0_40 = arith.constant 0 : index
    %c0_41 = arith.constant 0 : index
    %93 = vector.load %arg2[%c7, %c0_40, %c0_41] : memref<9x4x32xf32, #tpu.memory_space<vmem>>, vector<1x4x32xf32>
    %94 = vector.shape_cast %93 : vector<1x4x32xf32> to vector<4x32xf32>
    %cst_42 = arith.constant dense<0.000000e+00> : vector<256x32xf32>
    %95 = tpu.matmul %92, %94, %cst_42 {dimension_numbers = #tpu.dot_dimension_numbers<[1], [0], [0], [1], [0, 0, 1, 1], [], []>} : vector<256x4xf32>, vector<4x32xf32>, vector<256x32xf32> -> vector<256x32xf32>
    %96 = arith.addf %89, %95 : vector<256x32xf32>
    %cst_43 = arith.constant 0.000000e+00 : f32
    %97 = vector.broadcast %cst_43 : f32 to vector<256x4xf32>
    %98 = tpu.concatenate %97, %1, %97 in 0 : vector<256x4xf32>, vector<256x4xf32>, vector<256x4xf32> -> vector<768x4xf32>
    %99 = vector.extract_strided_slice %98 {offsets = [273, 0], sizes = [256, 4], strides = [1, 1]} : vector<768x4xf32> to vector<256x4xf32>
    %cst_44 = arith.constant 0.000000e+00 : f32
    %100 = vector.shape_cast %22 : vector<256x1xi1> to vector<256x1xi1>
    %101 = vector.broadcast %100 : vector<256x1xi1> to vector<256x4xi1>
    %102 = vector.broadcast %cst_44 : f32 to vector<256x4xf32>
    %103 = arith.select %101, %99, %102 : vector<256x4xi1>, vector<256x4xf32>
    %c8 = arith.constant 8 : index
    %c0_45 = arith.constant 0 : index
    %c0_46 = arith.constant 0 : index
    %104 = vector.load %arg2[%c8, %c0_45, %c0_46] : memref<9x4x32xf32, #tpu.memory_space<vmem>>, vector<1x4x32xf32>
    %105 = vector.shape_cast %104 : vector<1x4x32xf32> to vector<4x32xf32>
    %cst_47 = arith.constant dense<0.000000e+00> : vector<256x32xf32>
    %106 = tpu.matmul %103, %105, %cst_47 {dimension_numbers = #tpu.dot_dimension_numbers<[1], [0], [0], [1], [0, 0, 1, 1], [], []>} : vector<256x4xf32>, vector<4x32xf32>, vector<256x32xf32> -> vector<256x32xf32>
    %107 = arith.addf %96, %106 : vector<256x32xf32>
    %c0_48 = arith.constant 0 : index
    %c0_49 = arith.constant 0 : index
    %108 = vector.load %arg3[%c0_48, %c0_49] : memref<1x32xf32, #tpu.memory_space<vmem>>, vector<1x32xf32>
    %109 = vector.broadcast %108 : vector<1x32xf32> to vector<256x32xf32>
    %110 = arith.addf %107, %109 : vector<256x32xf32>
    %cst_50 = arith.constant 0.000000e+00 : f32
    %111 = vector.broadcast %cst_50 : f32 to vector<256x32xf32>
    %112 = arith.maximumf %110, %111 : vector<256x32xf32>
    %cst_51 = arith.constant 0.000000e+00 : f32
    %113 = vector.broadcast %cst_51 : f32 to vector<256x32xf32>
    %114 = tpu.concatenate %113, %112, %113 in 0 : vector<256x32xf32>, vector<256x32xf32>, vector<256x32xf32> -> vector<768x32xf32>
    %115 = vector.extract_strided_slice %114 {offsets = [257, 0], sizes = [256, 32], strides = [1, 1]} : vector<768x32xf32> to vector<256x32xf32>
    %116 = arith.maximumf %112, %115 : vector<256x32xf32>
    %cst_52 = arith.constant 0.000000e+00 : f32
    %117 = vector.broadcast %cst_52 : f32 to vector<256x32xf32>
    %118 = tpu.concatenate %117, %112, %117 in 0 : vector<256x32xf32>, vector<256x32xf32>, vector<256x32xf32> -> vector<768x32xf32>
    %119 = vector.extract_strided_slice %118 {offsets = [272, 0], sizes = [256, 32], strides = [1, 1]} : vector<768x32xf32> to vector<256x32xf32>
    %cst_53 = arith.constant 0.000000e+00 : f32
    %120 = vector.broadcast %cst_53 : f32 to vector<256x32xf32>
    %121 = tpu.concatenate %120, %112, %120 in 0 : vector<256x32xf32>, vector<256x32xf32>, vector<256x32xf32> -> vector<768x32xf32>
    %122 = vector.extract_strided_slice %121 {offsets = [273, 0], sizes = [256, 32], strides = [1, 1]} : vector<768x32xf32> to vector<256x32xf32>
    %123 = arith.maximumf %119, %122 : vector<256x32xf32>
    %124 = arith.maximumf %116, %123 : vector<256x32xf32>
    %c0_54 = arith.constant 0 : index
    %c0_55 = arith.constant 0 : index
    %125 = vector.load %arg6[%c0_54, %c0_55] : memref<64x256xf32, #tpu.memory_space<vmem>>, vector<64x256xf32>
    %cst_56 = arith.constant dense<0.000000e+00> : vector<64x32xf32>
    %126 = tpu.matmul %125, %124, %cst_56 {dimension_numbers = #tpu.dot_dimension_numbers<[1], [0], [0], [1], [0, 0, 1, 1], [], []>} : vector<64x256xf32>, vector<256x32xf32>, vector<64x32xf32> -> vector<64x32xf32>
    %127 = tpu.iota {dimensions = array<i32: 0>} : vector<64x1xi32>
    %c8_i32 = arith.constant 8 : i32
    %c0_i32_57 = arith.constant 0 : i32
    %128 = arith.cmpi eq, %c8_i32, %c0_i32_57 : i32
    %c1_i32_58 = arith.constant 1 : i32
    %129 = arith.select %128, %c1_i32_58, %c8_i32 : i32
    %130 = vector.broadcast %129 : i32 to vector<64x1xi32>
    %131 = arith.remsi %127, %130 : vector<64x1xi32>
    %c0_i32_59 = arith.constant 0 : i32
    %132 = vector.broadcast %c0_i32_59 : i32 to vector<64x1xi32>
    %133 = arith.cmpi ne, %131, %132 : vector<64x1xi32>
    %c0_i32_60 = arith.constant 0 : i32
    %134 = vector.broadcast %c0_i32_60 : i32 to vector<64x1xi32>
    %135 = arith.cmpi slt, %131, %134 : vector<64x1xi32>
    %c0_i32_61 = arith.constant 0 : i32
    %136 = arith.cmpi slt, %129, %c0_i32_61 : i32
    %137 = vector.broadcast %136 : i1 to vector<64x1xi1>
    %138 = vector.broadcast %137 : vector<64x1xi1> to vector<64x1xi1>
    %139 = arith.xori %135, %138 : vector<64x1xi1>
    %140 = arith.andi %139, %133 : vector<64x1xi1>
    %141 = vector.broadcast %129 : i32 to vector<64x1xi32>
    %142 = arith.addi %131, %141 : vector<64x1xi32>
    %143 = arith.select %140, %142, %131 : vector<64x1xi1>, vector<64x1xi32>
    %c1_i32_62 = arith.constant 1 : i32
    %144 = vector.broadcast %c1_i32_62 : i32 to vector<64x1xi32>
    %145 = arith.cmpi sge, %143, %144 : vector<64x1xi32>
    %c6_i32 = arith.constant 6 : i32
    %146 = vector.broadcast %c6_i32 : i32 to vector<64x1xi32>
    %147 = arith.cmpi sle, %143, %146 : vector<64x1xi32>
    %cst_63 = arith.constant 0.000000e+00 : f32
    %148 = vector.broadcast %cst_63 : f32 to vector<64x32xf32>
    %cst_64 = arith.constant 0.000000e+00 : f32
    %149 = vector.broadcast %cst_64 : f32 to vector<64x32xf32>
    %150 = tpu.concatenate %149, %126, %149 in 0 : vector<64x32xf32>, vector<64x32xf32>, vector<64x32xf32> -> vector<192x32xf32>
    %151 = vector.extract_strided_slice %150 {offsets = [55, 0], sizes = [64, 32], strides = [1, 1]} : vector<192x32xf32> to vector<64x32xf32>
    %cst_65 = arith.constant 0.000000e+00 : f32
    %152 = vector.shape_cast %145 : vector<64x1xi1> to vector<64x1xi1>
    %153 = vector.broadcast %152 : vector<64x1xi1> to vector<64x32xi1>
    %154 = vector.broadcast %cst_65 : f32 to vector<64x32xf32>
    %155 = arith.select %153, %151, %154 : vector<64x32xi1>, vector<64x32xf32>
    %c0_66 = arith.constant 0 : index
    %c0_67 = arith.constant 0 : index
    %c0_68 = arith.constant 0 : index
    %156 = vector.load %arg4[%c0_66, %c0_67, %c0_68] : memref<9x32x32xf32, #tpu.memory_space<vmem>>, vector<1x32x32xf32>
    %157 = vector.shape_cast %156 : vector<1x32x32xf32> to vector<32x32xf32>
    %cst_69 = arith.constant dense<0.000000e+00> : vector<64x32xf32>
    %158 = tpu.matmul %155, %157, %cst_69 {dimension_numbers = #tpu.dot_dimension_numbers<[1], [0], [0], [1], [0, 0, 1, 1], [], []>} : vector<64x32xf32>, vector<32x32xf32>, vector<64x32xf32> -> vector<64x32xf32>
    %159 = arith.addf %148, %158 : vector<64x32xf32>
    %cst_70 = arith.constant 0.000000e+00 : f32
    %160 = vector.broadcast %cst_70 : f32 to vector<64x32xf32>
    %161 = tpu.concatenate %160, %126, %160 in 0 : vector<64x32xf32>, vector<64x32xf32>, vector<64x32xf32> -> vector<192x32xf32>
    %162 = vector.extract_strided_slice %161 {offsets = [56, 0], sizes = [64, 32], strides = [1, 1]} : vector<192x32xf32> to vector<64x32xf32>
    %c1_71 = arith.constant 1 : index
    %c0_72 = arith.constant 0 : index
    %c0_73 = arith.constant 0 : index
    %163 = vector.load %arg4[%c1_71, %c0_72, %c0_73] : memref<9x32x32xf32, #tpu.memory_space<vmem>>, vector<1x32x32xf32>
    %164 = vector.shape_cast %163 : vector<1x32x32xf32> to vector<32x32xf32>
    %cst_74 = arith.constant dense<0.000000e+00> : vector<64x32xf32>
    %165 = tpu.matmul %162, %164, %cst_74 {dimension_numbers = #tpu.dot_dimension_numbers<[1], [0], [0], [1], [0, 0, 1, 1], [], []>} : vector<64x32xf32>, vector<32x32xf32>, vector<64x32xf32> -> vector<64x32xf32>
    %166 = arith.addf %159, %165 : vector<64x32xf32>
    %cst_75 = arith.constant 0.000000e+00 : f32
    %167 = vector.broadcast %cst_75 : f32 to vector<64x32xf32>
    %168 = tpu.concatenate %167, %126, %167 in 0 : vector<64x32xf32>, vector<64x32xf32>, vector<64x32xf32> -> vector<192x32xf32>
    %169 = vector.extract_strided_slice %168 {offsets = [57, 0], sizes = [64, 32], strides = [1, 1]} : vector<192x32xf32> to vector<64x32xf32>
    %cst_76 = arith.constant 0.000000e+00 : f32
    %170 = vector.shape_cast %147 : vector<64x1xi1> to vector<64x1xi1>
    %171 = vector.broadcast %170 : vector<64x1xi1> to vector<64x32xi1>
    %172 = vector.broadcast %cst_76 : f32 to vector<64x32xf32>
    %173 = arith.select %171, %169, %172 : vector<64x32xi1>, vector<64x32xf32>
    %c2_77 = arith.constant 2 : index
    %c0_78 = arith.constant 0 : index
    %c0_79 = arith.constant 0 : index
    %174 = vector.load %arg4[%c2_77, %c0_78, %c0_79] : memref<9x32x32xf32, #tpu.memory_space<vmem>>, vector<1x32x32xf32>
    %175 = vector.shape_cast %174 : vector<1x32x32xf32> to vector<32x32xf32>
    %cst_80 = arith.constant dense<0.000000e+00> : vector<64x32xf32>
    %176 = tpu.matmul %173, %175, %cst_80 {dimension_numbers = #tpu.dot_dimension_numbers<[1], [0], [0], [1], [0, 0, 1, 1], [], []>} : vector<64x32xf32>, vector<32x32xf32>, vector<64x32xf32> -> vector<64x32xf32>
    %177 = arith.addf %166, %176 : vector<64x32xf32>
    %cst_81 = arith.constant 0.000000e+00 : f32
    %178 = vector.broadcast %cst_81 : f32 to vector<64x32xf32>
    %179 = tpu.concatenate %178, %126, %178 in 0 : vector<64x32xf32>, vector<64x32xf32>, vector<64x32xf32> -> vector<192x32xf32>
    %180 = vector.extract_strided_slice %179 {offsets = [63, 0], sizes = [64, 32], strides = [1, 1]} : vector<192x32xf32> to vector<64x32xf32>
    %cst_82 = arith.constant 0.000000e+00 : f32
    %181 = vector.shape_cast %145 : vector<64x1xi1> to vector<64x1xi1>
    %182 = vector.broadcast %181 : vector<64x1xi1> to vector<64x32xi1>
    %183 = vector.broadcast %cst_82 : f32 to vector<64x32xf32>
    %184 = arith.select %182, %180, %183 : vector<64x32xi1>, vector<64x32xf32>
    %c3_83 = arith.constant 3 : index
    %c0_84 = arith.constant 0 : index
    %c0_85 = arith.constant 0 : index
    %185 = vector.load %arg4[%c3_83, %c0_84, %c0_85] : memref<9x32x32xf32, #tpu.memory_space<vmem>>, vector<1x32x32xf32>
    %186 = vector.shape_cast %185 : vector<1x32x32xf32> to vector<32x32xf32>
    %cst_86 = arith.constant dense<0.000000e+00> : vector<64x32xf32>
    %187 = tpu.matmul %184, %186, %cst_86 {dimension_numbers = #tpu.dot_dimension_numbers<[1], [0], [0], [1], [0, 0, 1, 1], [], []>} : vector<64x32xf32>, vector<32x32xf32>, vector<64x32xf32> -> vector<64x32xf32>
    %188 = arith.addf %177, %187 : vector<64x32xf32>
    %c4_87 = arith.constant 4 : index
    %c0_88 = arith.constant 0 : index
    %c0_89 = arith.constant 0 : index
    %189 = vector.load %arg4[%c4_87, %c0_88, %c0_89] : memref<9x32x32xf32, #tpu.memory_space<vmem>>, vector<1x32x32xf32>
    %190 = vector.shape_cast %189 : vector<1x32x32xf32> to vector<32x32xf32>
    %cst_90 = arith.constant dense<0.000000e+00> : vector<64x32xf32>
    %191 = tpu.matmul %126, %190, %cst_90 {dimension_numbers = #tpu.dot_dimension_numbers<[1], [0], [0], [1], [0, 0, 1, 1], [], []>} : vector<64x32xf32>, vector<32x32xf32>, vector<64x32xf32> -> vector<64x32xf32>
    %192 = arith.addf %188, %191 : vector<64x32xf32>
    %cst_91 = arith.constant 0.000000e+00 : f32
    %193 = vector.broadcast %cst_91 : f32 to vector<64x32xf32>
    %194 = tpu.concatenate %193, %126, %193 in 0 : vector<64x32xf32>, vector<64x32xf32>, vector<64x32xf32> -> vector<192x32xf32>
    %195 = vector.extract_strided_slice %194 {offsets = [65, 0], sizes = [64, 32], strides = [1, 1]} : vector<192x32xf32> to vector<64x32xf32>
    %cst_92 = arith.constant 0.000000e+00 : f32
    %196 = vector.shape_cast %147 : vector<64x1xi1> to vector<64x1xi1>
    %197 = vector.broadcast %196 : vector<64x1xi1> to vector<64x32xi1>
    %198 = vector.broadcast %cst_92 : f32 to vector<64x32xf32>
    %199 = arith.select %197, %195, %198 : vector<64x32xi1>, vector<64x32xf32>
    %c5_93 = arith.constant 5 : index
    %c0_94 = arith.constant 0 : index
    %c0_95 = arith.constant 0 : index
    %200 = vector.load %arg4[%c5_93, %c0_94, %c0_95] : memref<9x32x32xf32, #tpu.memory_space<vmem>>, vector<1x32x32xf32>
    %201 = vector.shape_cast %200 : vector<1x32x32xf32> to vector<32x32xf32>
    %cst_96 = arith.constant dense<0.000000e+00> : vector<64x32xf32>
    %202 = tpu.matmul %199, %201, %cst_96 {dimension_numbers = #tpu.dot_dimension_numbers<[1], [0], [0], [1], [0, 0, 1, 1], [], []>} : vector<64x32xf32>, vector<32x32xf32>, vector<64x32xf32> -> vector<64x32xf32>
    %203 = arith.addf %192, %202 : vector<64x32xf32>
    %cst_97 = arith.constant 0.000000e+00 : f32
    %204 = vector.broadcast %cst_97 : f32 to vector<64x32xf32>
    %205 = tpu.concatenate %204, %126, %204 in 0 : vector<64x32xf32>, vector<64x32xf32>, vector<64x32xf32> -> vector<192x32xf32>
    %206 = vector.extract_strided_slice %205 {offsets = [71, 0], sizes = [64, 32], strides = [1, 1]} : vector<192x32xf32> to vector<64x32xf32>
    %cst_98 = arith.constant 0.000000e+00 : f32
    %207 = vector.shape_cast %145 : vector<64x1xi1> to vector<64x1xi1>
    %208 = vector.broadcast %207 : vector<64x1xi1> to vector<64x32xi1>
    %209 = vector.broadcast %cst_98 : f32 to vector<64x32xf32>
    %210 = arith.select %208, %206, %209 : vector<64x32xi1>, vector<64x32xf32>
    %c6_99 = arith.constant 6 : index
    %c0_100 = arith.constant 0 : index
    %c0_101 = arith.constant 0 : index
    %211 = vector.load %arg4[%c6_99, %c0_100, %c0_101] : memref<9x32x32xf32, #tpu.memory_space<vmem>>, vector<1x32x32xf32>
    %212 = vector.shape_cast %211 : vector<1x32x32xf32> to vector<32x32xf32>
    %cst_102 = arith.constant dense<0.000000e+00> : vector<64x32xf32>
    %213 = tpu.matmul %210, %212, %cst_102 {dimension_numbers = #tpu.dot_dimension_numbers<[1], [0], [0], [1], [0, 0, 1, 1], [], []>} : vector<64x32xf32>, vector<32x32xf32>, vector<64x32xf32> -> vector<64x32xf32>
    %214 = arith.addf %203, %213 : vector<64x32xf32>
    %cst_103 = arith.constant 0.000000e+00 : f32
    %215 = vector.broadcast %cst_103 : f32 to vector<64x32xf32>
    %216 = tpu.concatenate %215, %126, %215 in 0 : vector<64x32xf32>, vector<64x32xf32>, vector<64x32xf32> -> vector<192x32xf32>
    %217 = vector.extract_strided_slice %216 {offsets = [72, 0], sizes = [64, 32], strides = [1, 1]} : vector<192x32xf32> to vector<64x32xf32>
    %c7_104 = arith.constant 7 : index
    %c0_105 = arith.constant 0 : index
    %c0_106 = arith.constant 0 : index
    %218 = vector.load %arg4[%c7_104, %c0_105, %c0_106] : memref<9x32x32xf32, #tpu.memory_space<vmem>>, vector<1x32x32xf32>
    %219 = vector.shape_cast %218 : vector<1x32x32xf32> to vector<32x32xf32>
    %cst_107 = arith.constant dense<0.000000e+00> : vector<64x32xf32>
    %220 = tpu.matmul %217, %219, %cst_107 {dimension_numbers = #tpu.dot_dimension_numbers<[1], [0], [0], [1], [0, 0, 1, 1], [], []>} : vector<64x32xf32>, vector<32x32xf32>, vector<64x32xf32> -> vector<64x32xf32>
    %221 = arith.addf %214, %220 : vector<64x32xf32>
    %cst_108 = arith.constant 0.000000e+00 : f32
    %222 = vector.broadcast %cst_108 : f32 to vector<64x32xf32>
    %223 = tpu.concatenate %222, %126, %222 in 0 : vector<64x32xf32>, vector<64x32xf32>, vector<64x32xf32> -> vector<192x32xf32>
    %224 = vector.extract_strided_slice %223 {offsets = [73, 0], sizes = [64, 32], strides = [1, 1]} : vector<192x32xf32> to vector<64x32xf32>
    %cst_109 = arith.constant 0.000000e+00 : f32
    %225 = vector.shape_cast %147 : vector<64x1xi1> to vector<64x1xi1>
    %226 = vector.broadcast %225 : vector<64x1xi1> to vector<64x32xi1>
    %227 = vector.broadcast %cst_109 : f32 to vector<64x32xf32>
    %228 = arith.select %226, %224, %227 : vector<64x32xi1>, vector<64x32xf32>
    %c8_110 = arith.constant 8 : index
    %c0_111 = arith.constant 0 : index
    %c0_112 = arith.constant 0 : index
    %229 = vector.load %arg4[%c8_110, %c0_111, %c0_112] : memref<9x32x32xf32, #tpu.memory_space<vmem>>, vector<1x32x32xf32>
    %230 = vector.shape_cast %229 : vector<1x32x32xf32> to vector<32x32xf32>
    %cst_113 = arith.constant dense<0.000000e+00> : vector<64x32xf32>
    %231 = tpu.matmul %228, %230, %cst_113 {dimension_numbers = #tpu.dot_dimension_numbers<[1], [0], [0], [1], [0, 0, 1, 1], [], []>} : vector<64x32xf32>, vector<32x32xf32>, vector<64x32xf32> -> vector<64x32xf32>
    %232 = arith.addf %221, %231 : vector<64x32xf32>
    %c0_114 = arith.constant 0 : index
    %c0_115 = arith.constant 0 : index
    %233 = vector.load %arg5[%c0_114, %c0_115] : memref<1x32xf32, #tpu.memory_space<vmem>>, vector<1x32xf32>
    %234 = vector.broadcast %233 : vector<1x32xf32> to vector<64x32xf32>
    %235 = arith.addf %232, %234 : vector<64x32xf32>
    %cst_116 = arith.constant 0.000000e+00 : f32
    %236 = vector.broadcast %cst_116 : f32 to vector<64x32xf32>
    %237 = arith.maximumf %235, %236 : vector<64x32xf32>
    %cst_117 = arith.constant 0.000000e+00 : f32
    %238 = vector.broadcast %cst_117 : f32 to vector<64x32xf32>
    %239 = tpu.concatenate %238, %237, %238 in 0 : vector<64x32xf32>, vector<64x32xf32>, vector<64x32xf32> -> vector<192x32xf32>
    %240 = vector.extract_strided_slice %239 {offsets = [65, 0], sizes = [64, 32], strides = [1, 1]} : vector<192x32xf32> to vector<64x32xf32>
    %241 = arith.maximumf %237, %240 : vector<64x32xf32>
    %cst_118 = arith.constant 0.000000e+00 : f32
    %242 = vector.broadcast %cst_118 : f32 to vector<64x32xf32>
    %243 = tpu.concatenate %242, %237, %242 in 0 : vector<64x32xf32>, vector<64x32xf32>, vector<64x32xf32> -> vector<192x32xf32>
    %244 = vector.extract_strided_slice %243 {offsets = [72, 0], sizes = [64, 32], strides = [1, 1]} : vector<192x32xf32> to vector<64x32xf32>
    %cst_119 = arith.constant 0.000000e+00 : f32
    %245 = vector.broadcast %cst_119 : f32 to vector<64x32xf32>
    %246 = tpu.concatenate %245, %237, %245 in 0 : vector<64x32xf32>, vector<64x32xf32>, vector<64x32xf32> -> vector<192x32xf32>
    %247 = vector.extract_strided_slice %246 {offsets = [73, 0], sizes = [64, 32], strides = [1, 1]} : vector<192x32xf32> to vector<64x32xf32>
    %248 = arith.maximumf %244, %247 : vector<64x32xf32>
    %249 = arith.maximumf %241, %248 : vector<64x32xf32>
    %c0_120 = arith.constant 0 : index
    %c0_121 = arith.constant 0 : index
    %250 = vector.load %arg7[%c0_120, %c0_121] : memref<16x64xf32, #tpu.memory_space<vmem>>, vector<16x64xf32>
    %cst_122 = arith.constant dense<0.000000e+00> : vector<16x32xf32>
    %251 = tpu.matmul %250, %249, %cst_122 {dimension_numbers = #tpu.dot_dimension_numbers<[1], [0], [0], [1], [0, 0, 1, 1], [], []>} : vector<16x64xf32>, vector<64x32xf32>, vector<16x32xf32> -> vector<16x32xf32>
    %c0_123 = arith.constant 0 : index
    %c0_124 = arith.constant 0 : index
    %252 = vector.load %arg9[%c0_123, %c0_124] : memref<1x128xf32, #tpu.memory_space<vmem>>, vector<1x128xf32>
    %253 = vector.extract_strided_slice %251 {offsets = [0, 0], sizes = [1, 32], strides = [1, 1]} : vector<16x32xf32> to vector<1x32xf32>
    %c0_125 = arith.constant 0 : index
    %c0_126 = arith.constant 0 : index
    %c0_127 = arith.constant 0 : index
    %254 = vector.load %arg8[%c0_125, %c0_126, %c0_127] : memref<16x32x128xf32, #tpu.memory_space<vmem>>, vector<1x32x128xf32>
    %255 = vector.shape_cast %254 : vector<1x32x128xf32> to vector<32x128xf32>
    %cst_128 = arith.constant dense<0.000000e+00> : vector<1x128xf32>
    %256 = tpu.matmul %253, %255, %cst_128 {dimension_numbers = #tpu.dot_dimension_numbers<[1], [0], [0], [1], [0, 0, 1, 1], [], []>} : vector<1x32xf32>, vector<32x128xf32>, vector<1x128xf32> -> vector<1x128xf32>
    %257 = arith.addf %252, %256 : vector<1x128xf32>
    %258 = vector.extract_strided_slice %251 {offsets = [1, 0], sizes = [1, 32], strides = [1, 1]} : vector<16x32xf32> to vector<1x32xf32>
    %c1_129 = arith.constant 1 : index
    %c0_130 = arith.constant 0 : index
    %c0_131 = arith.constant 0 : index
    %259 = vector.load %arg8[%c1_129, %c0_130, %c0_131] : memref<16x32x128xf32, #tpu.memory_space<vmem>>, vector<1x32x128xf32>
    %260 = vector.shape_cast %259 : vector<1x32x128xf32> to vector<32x128xf32>
    %cst_132 = arith.constant dense<0.000000e+00> : vector<1x128xf32>
    %261 = tpu.matmul %258, %260, %cst_132 {dimension_numbers = #tpu.dot_dimension_numbers<[1], [0], [0], [1], [0, 0, 1, 1], [], []>} : vector<1x32xf32>, vector<32x128xf32>, vector<1x128xf32> -> vector<1x128xf32>
    %262 = arith.addf %257, %261 : vector<1x128xf32>
    %263 = vector.extract_strided_slice %251 {offsets = [2, 0], sizes = [1, 32], strides = [1, 1]} : vector<16x32xf32> to vector<1x32xf32>
    %c2_133 = arith.constant 2 : index
    %c0_134 = arith.constant 0 : index
    %c0_135 = arith.constant 0 : index
    %264 = vector.load %arg8[%c2_133, %c0_134, %c0_135] : memref<16x32x128xf32, #tpu.memory_space<vmem>>, vector<1x32x128xf32>
    %265 = vector.shape_cast %264 : vector<1x32x128xf32> to vector<32x128xf32>
    %cst_136 = arith.constant dense<0.000000e+00> : vector<1x128xf32>
    %266 = tpu.matmul %263, %265, %cst_136 {dimension_numbers = #tpu.dot_dimension_numbers<[1], [0], [0], [1], [0, 0, 1, 1], [], []>} : vector<1x32xf32>, vector<32x128xf32>, vector<1x128xf32> -> vector<1x128xf32>
    %267 = arith.addf %262, %266 : vector<1x128xf32>
    %268 = vector.extract_strided_slice %251 {offsets = [3, 0], sizes = [1, 32], strides = [1, 1]} : vector<16x32xf32> to vector<1x32xf32>
    %c3_137 = arith.constant 3 : index
    %c0_138 = arith.constant 0 : index
    %c0_139 = arith.constant 0 : index
    %269 = vector.load %arg8[%c3_137, %c0_138, %c0_139] : memref<16x32x128xf32, #tpu.memory_space<vmem>>, vector<1x32x128xf32>
    %270 = vector.shape_cast %269 : vector<1x32x128xf32> to vector<32x128xf32>
    %cst_140 = arith.constant dense<0.000000e+00> : vector<1x128xf32>
    %271 = tpu.matmul %268, %270, %cst_140 {dimension_numbers = #tpu.dot_dimension_numbers<[1], [0], [0], [1], [0, 0, 1, 1], [], []>} : vector<1x32xf32>, vector<32x128xf32>, vector<1x128xf32> -> vector<1x128xf32>
    %272 = arith.addf %267, %271 : vector<1x128xf32>
    %273 = vector.extract_strided_slice %251 {offsets = [4, 0], sizes = [1, 32], strides = [1, 1]} : vector<16x32xf32> to vector<1x32xf32>
    %c4_141 = arith.constant 4 : index
    %c0_142 = arith.constant 0 : index
    %c0_143 = arith.constant 0 : index
    %274 = vector.load %arg8[%c4_141, %c0_142, %c0_143] : memref<16x32x128xf32, #tpu.memory_space<vmem>>, vector<1x32x128xf32>
    %275 = vector.shape_cast %274 : vector<1x32x128xf32> to vector<32x128xf32>
    %cst_144 = arith.constant dense<0.000000e+00> : vector<1x128xf32>
    %276 = tpu.matmul %273, %275, %cst_144 {dimension_numbers = #tpu.dot_dimension_numbers<[1], [0], [0], [1], [0, 0, 1, 1], [], []>} : vector<1x32xf32>, vector<32x128xf32>, vector<1x128xf32> -> vector<1x128xf32>
    %277 = arith.addf %272, %276 : vector<1x128xf32>
    %278 = vector.extract_strided_slice %251 {offsets = [5, 0], sizes = [1, 32], strides = [1, 1]} : vector<16x32xf32> to vector<1x32xf32>
    %c5_145 = arith.constant 5 : index
    %c0_146 = arith.constant 0 : index
    %c0_147 = arith.constant 0 : index
    %279 = vector.load %arg8[%c5_145, %c0_146, %c0_147] : memref<16x32x128xf32, #tpu.memory_space<vmem>>, vector<1x32x128xf32>
    %280 = vector.shape_cast %279 : vector<1x32x128xf32> to vector<32x128xf32>
    %cst_148 = arith.constant dense<0.000000e+00> : vector<1x128xf32>
    %281 = tpu.matmul %278, %280, %cst_148 {dimension_numbers = #tpu.dot_dimension_numbers<[1], [0], [0], [1], [0, 0, 1, 1], [], []>} : vector<1x32xf32>, vector<32x128xf32>, vector<1x128xf32> -> vector<1x128xf32>
    %282 = arith.addf %277, %281 : vector<1x128xf32>
    %283 = vector.extract_strided_slice %251 {offsets = [6, 0], sizes = [1, 32], strides = [1, 1]} : vector<16x32xf32> to vector<1x32xf32>
    %c6_149 = arith.constant 6 : index
    %c0_150 = arith.constant 0 : index
    %c0_151 = arith.constant 0 : index
    %284 = vector.load %arg8[%c6_149, %c0_150, %c0_151] : memref<16x32x128xf32, #tpu.memory_space<vmem>>, vector<1x32x128xf32>
    %285 = vector.shape_cast %284 : vector<1x32x128xf32> to vector<32x128xf32>
    %cst_152 = arith.constant dense<0.000000e+00> : vector<1x128xf32>
    %286 = tpu.matmul %283, %285, %cst_152 {dimension_numbers = #tpu.dot_dimension_numbers<[1], [0], [0], [1], [0, 0, 1, 1], [], []>} : vector<1x32xf32>, vector<32x128xf32>, vector<1x128xf32> -> vector<1x128xf32>
    %287 = arith.addf %282, %286 : vector<1x128xf32>
    %288 = vector.extract_strided_slice %251 {offsets = [7, 0], sizes = [1, 32], strides = [1, 1]} : vector<16x32xf32> to vector<1x32xf32>
    %c7_153 = arith.constant 7 : index
    %c0_154 = arith.constant 0 : index
    %c0_155 = arith.constant 0 : index
    %289 = vector.load %arg8[%c7_153, %c0_154, %c0_155] : memref<16x32x128xf32, #tpu.memory_space<vmem>>, vector<1x32x128xf32>
    %290 = vector.shape_cast %289 : vector<1x32x128xf32> to vector<32x128xf32>
    %cst_156 = arith.constant dense<0.000000e+00> : vector<1x128xf32>
    %291 = tpu.matmul %288, %290, %cst_156 {dimension_numbers = #tpu.dot_dimension_numbers<[1], [0], [0], [1], [0, 0, 1, 1], [], []>} : vector<1x32xf32>, vector<32x128xf32>, vector<1x128xf32> -> vector<1x128xf32>
    %292 = arith.addf %287, %291 : vector<1x128xf32>
    %293 = vector.extract_strided_slice %251 {offsets = [8, 0], sizes = [1, 32], strides = [1, 1]} : vector<16x32xf32> to vector<1x32xf32>
    %c8_157 = arith.constant 8 : index
    %c0_158 = arith.constant 0 : index
    %c0_159 = arith.constant 0 : index
    %294 = vector.load %arg8[%c8_157, %c0_158, %c0_159] : memref<16x32x128xf32, #tpu.memory_space<vmem>>, vector<1x32x128xf32>
    %295 = vector.shape_cast %294 : vector<1x32x128xf32> to vector<32x128xf32>
    %cst_160 = arith.constant dense<0.000000e+00> : vector<1x128xf32>
    %296 = tpu.matmul %293, %295, %cst_160 {dimension_numbers = #tpu.dot_dimension_numbers<[1], [0], [0], [1], [0, 0, 1, 1], [], []>} : vector<1x32xf32>, vector<32x128xf32>, vector<1x128xf32> -> vector<1x128xf32>
    %297 = arith.addf %292, %296 : vector<1x128xf32>
    %298 = vector.extract_strided_slice %251 {offsets = [9, 0], sizes = [1, 32], strides = [1, 1]} : vector<16x32xf32> to vector<1x32xf32>
    %c9 = arith.constant 9 : index
    %c0_161 = arith.constant 0 : index
    %c0_162 = arith.constant 0 : index
    %299 = vector.load %arg8[%c9, %c0_161, %c0_162] : memref<16x32x128xf32, #tpu.memory_space<vmem>>, vector<1x32x128xf32>
    %300 = vector.shape_cast %299 : vector<1x32x128xf32> to vector<32x128xf32>
    %cst_163 = arith.constant dense<0.000000e+00> : vector<1x128xf32>
    %301 = tpu.matmul %298, %300, %cst_163 {dimension_numbers = #tpu.dot_dimension_numbers<[1], [0], [0], [1], [0, 0, 1, 1], [], []>} : vector<1x32xf32>, vector<32x128xf32>, vector<1x128xf32> -> vector<1x128xf32>
    %302 = arith.addf %297, %301 : vector<1x128xf32>
    %303 = vector.extract_strided_slice %251 {offsets = [10, 0], sizes = [1, 32], strides = [1, 1]} : vector<16x32xf32> to vector<1x32xf32>
    %c10 = arith.constant 10 : index
    %c0_164 = arith.constant 0 : index
    %c0_165 = arith.constant 0 : index
    %304 = vector.load %arg8[%c10, %c0_164, %c0_165] : memref<16x32x128xf32, #tpu.memory_space<vmem>>, vector<1x32x128xf32>
    %305 = vector.shape_cast %304 : vector<1x32x128xf32> to vector<32x128xf32>
    %cst_166 = arith.constant dense<0.000000e+00> : vector<1x128xf32>
    %306 = tpu.matmul %303, %305, %cst_166 {dimension_numbers = #tpu.dot_dimension_numbers<[1], [0], [0], [1], [0, 0, 1, 1], [], []>} : vector<1x32xf32>, vector<32x128xf32>, vector<1x128xf32> -> vector<1x128xf32>
    %307 = arith.addf %302, %306 : vector<1x128xf32>
    %308 = vector.extract_strided_slice %251 {offsets = [11, 0], sizes = [1, 32], strides = [1, 1]} : vector<16x32xf32> to vector<1x32xf32>
    %c11 = arith.constant 11 : index
    %c0_167 = arith.constant 0 : index
    %c0_168 = arith.constant 0 : index
    %309 = vector.load %arg8[%c11, %c0_167, %c0_168] : memref<16x32x128xf32, #tpu.memory_space<vmem>>, vector<1x32x128xf32>
    %310 = vector.shape_cast %309 : vector<1x32x128xf32> to vector<32x128xf32>
    %cst_169 = arith.constant dense<0.000000e+00> : vector<1x128xf32>
    %311 = tpu.matmul %308, %310, %cst_169 {dimension_numbers = #tpu.dot_dimension_numbers<[1], [0], [0], [1], [0, 0, 1, 1], [], []>} : vector<1x32xf32>, vector<32x128xf32>, vector<1x128xf32> -> vector<1x128xf32>
    %312 = arith.addf %307, %311 : vector<1x128xf32>
    %313 = vector.extract_strided_slice %251 {offsets = [12, 0], sizes = [1, 32], strides = [1, 1]} : vector<16x32xf32> to vector<1x32xf32>
    %c12 = arith.constant 12 : index
    %c0_170 = arith.constant 0 : index
    %c0_171 = arith.constant 0 : index
    %314 = vector.load %arg8[%c12, %c0_170, %c0_171] : memref<16x32x128xf32, #tpu.memory_space<vmem>>, vector<1x32x128xf32>
    %315 = vector.shape_cast %314 : vector<1x32x128xf32> to vector<32x128xf32>
    %cst_172 = arith.constant dense<0.000000e+00> : vector<1x128xf32>
    %316 = tpu.matmul %313, %315, %cst_172 {dimension_numbers = #tpu.dot_dimension_numbers<[1], [0], [0], [1], [0, 0, 1, 1], [], []>} : vector<1x32xf32>, vector<32x128xf32>, vector<1x128xf32> -> vector<1x128xf32>
    %317 = arith.addf %312, %316 : vector<1x128xf32>
    %318 = vector.extract_strided_slice %251 {offsets = [13, 0], sizes = [1, 32], strides = [1, 1]} : vector<16x32xf32> to vector<1x32xf32>
    %c13 = arith.constant 13 : index
    %c0_173 = arith.constant 0 : index
    %c0_174 = arith.constant 0 : index
    %319 = vector.load %arg8[%c13, %c0_173, %c0_174] : memref<16x32x128xf32, #tpu.memory_space<vmem>>, vector<1x32x128xf32>
    %320 = vector.shape_cast %319 : vector<1x32x128xf32> to vector<32x128xf32>
    %cst_175 = arith.constant dense<0.000000e+00> : vector<1x128xf32>
    %321 = tpu.matmul %318, %320, %cst_175 {dimension_numbers = #tpu.dot_dimension_numbers<[1], [0], [0], [1], [0, 0, 1, 1], [], []>} : vector<1x32xf32>, vector<32x128xf32>, vector<1x128xf32> -> vector<1x128xf32>
    %322 = arith.addf %317, %321 : vector<1x128xf32>
    %323 = vector.extract_strided_slice %251 {offsets = [14, 0], sizes = [1, 32], strides = [1, 1]} : vector<16x32xf32> to vector<1x32xf32>
    %c14 = arith.constant 14 : index
    %c0_176 = arith.constant 0 : index
    %c0_177 = arith.constant 0 : index
    %324 = vector.load %arg8[%c14, %c0_176, %c0_177] : memref<16x32x128xf32, #tpu.memory_space<vmem>>, vector<1x32x128xf32>
    %325 = vector.shape_cast %324 : vector<1x32x128xf32> to vector<32x128xf32>
    %cst_178 = arith.constant dense<0.000000e+00> : vector<1x128xf32>
    %326 = tpu.matmul %323, %325, %cst_178 {dimension_numbers = #tpu.dot_dimension_numbers<[1], [0], [0], [1], [0, 0, 1, 1], [], []>} : vector<1x32xf32>, vector<32x128xf32>, vector<1x128xf32> -> vector<1x128xf32>
    %327 = arith.addf %322, %326 : vector<1x128xf32>
    %328 = vector.extract_strided_slice %251 {offsets = [15, 0], sizes = [1, 32], strides = [1, 1]} : vector<16x32xf32> to vector<1x32xf32>
    %c15 = arith.constant 15 : index
    %c0_179 = arith.constant 0 : index
    %c0_180 = arith.constant 0 : index
    %329 = vector.load %arg8[%c15, %c0_179, %c0_180] : memref<16x32x128xf32, #tpu.memory_space<vmem>>, vector<1x32x128xf32>
    %330 = vector.shape_cast %329 : vector<1x32x128xf32> to vector<32x128xf32>
    %cst_181 = arith.constant dense<0.000000e+00> : vector<1x128xf32>
    %331 = tpu.matmul %328, %330, %cst_181 {dimension_numbers = #tpu.dot_dimension_numbers<[1], [0], [0], [1], [0, 0, 1, 1], [], []>} : vector<1x32xf32>, vector<32x128xf32>, vector<1x128xf32> -> vector<1x128xf32>
    %332 = arith.addf %327, %331 : vector<1x128xf32>
    %c0_182 = arith.constant 0 : index
    %c0_183 = arith.constant 0 : index
    %c0_184 = arith.constant 0 : index
    %333 = vector.load %arg10[%c0_182, %c0_183, %c0_184] : memref<1x1x128xf32, #tpu.memory_space<vmem>>, vector<1x1x128xf32>
    %334 = vector.shape_cast %333 : vector<1x1x128xf32> to vector<1x128xf32>
    %335 = vector.shape_cast %332 : vector<1x128xf32> to vector<1x1x128xf32>
    tpu.vector_store %arg10[%c0_182, %c0_183, %c0_184], %335 {strides = array<i32>} : memref<1x1x128xf32, #tpu.memory_space<vmem>>, vector<1x1x128xf32>,
    return
  }
  func.func @transform_0(%arg0: i32) -> (i32, i32, i32) {
    %c0_i32 = arith.constant 0 : i32
    %c0_i32_0 = arith.constant 0 : i32
    %c0_i32_1 = arith.constant 0 : i32
    return %arg0, %c0_i32, %c0_i32_0 : i32, i32, i32
  }
  func.func @transform_1(%arg0: i32) -> (i32, i32, i32) {
    %c0_i32 = arith.constant 0 : i32
    %c0_i32_0 = arith.constant 0 : i32
    %c0_i32_1 = arith.constant 0 : i32
    %c0_i32_2 = arith.constant 0 : i32
    return %c0_i32, %c0_i32_0, %c0_i32_1 : i32, i32, i32
  }
  func.func @transform_2(%arg0: i32) -> (i32, i32) {
    %c0_i32 = arith.constant 0 : i32
    %c0_i32_0 = arith.constant 0 : i32
    %c0_i32_1 = arith.constant 0 : i32
    return %c0_i32, %c0_i32_0 : i32, i32
  }
  func.func @transform_3(%arg0: i32) -> (i32, i32, i32) {
    %c0_i32 = arith.constant 0 : i32
    %c0_i32_0 = arith.constant 0 : i32
    %c0_i32_1 = arith.constant 0 : i32
    %c0_i32_2 = arith.constant 0 : i32
    return %c0_i32, %c0_i32_0, %c0_i32_1 : i32, i32, i32
  }
  func.func @transform_4(%arg0: i32) -> (i32, i32) {
    %c0_i32 = arith.constant 0 : i32
    %c0_i32_0 = arith.constant 0 : i32
    %c0_i32_1 = arith.constant 0 : i32
    return %c0_i32, %c0_i32_0 : i32, i32
  }
  func.func @transform_5(%arg0: i32) -> (i32, i32) {
    %c0_i32 = arith.constant 0 : i32
    %c0_i32_0 = arith.constant 0 : i32
    %c0_i32_1 = arith.constant 0 : i32
    return %c0_i32, %c0_i32_0 : i32, i32
  }
  func.func @transform_6(%arg0: i32) -> (i32, i32) {
    %c0_i32 = arith.constant 0 : i32
    %c0_i32_0 = arith.constant 0 : i32
    %c0_i32_1 = arith.constant 0 : i32
    return %c0_i32, %c0_i32_0 : i32, i32
  }
  func.func @transform_7(%arg0: i32) -> (i32, i32, i32) {
    %c0_i32 = arith.constant 0 : i32
    %c0_i32_0 = arith.constant 0 : i32
    %c0_i32_1 = arith.constant 0 : i32
    %c0_i32_2 = arith.constant 0 : i32
    return %c0_i32, %c0_i32_0, %c0_i32_1 : i32, i32, i32
  }
  func.func @transform_8(%arg0: i32) -> (i32, i32) {
    %c0_i32 = arith.constant 0 : i32
    %c0_i32_0 = arith.constant 0 : i32
    %c0_i32_1 = arith.constant 0 : i32
    return %c0_i32, %c0_i32_0 : i32, i32
  }
  func.func @transform_9(%arg0: i32) -> (i32, i32, i32) {
    %c0_i32 = arith.constant 0 : i32
    %c0_i32_0 = arith.constant 0 : i32
    %c0_i32_1 = arith.constant 0 : i32
    return %arg0, %c0_i32, %c0_i32_0 : i32, i32, i32
  }
}

</mosaic_0001>

<llo_original>
// kernel: fine_tune_forward.1
$region0: #{fine_tune_forward.1}
  #allocation0 [shape = 'u32[]', space=smem, size = 0x4, offset = 0x4, fixed_abs, tag = 'smem constant byte address 0x4 - core index']
  #allocation1 [shape = 'u32[72,128]{1,0:T(1,128)}', space=vmem, size = 0x9000, scoped, tag = 'internal scratch']
  %s0 = inlined_call_operand.vmem [shape: f32[2,256,4], index: 0, kind: input, shape index: {}]
  %s1 = inlined_call_operand.hbm [shape: f32[9,4,32], index: 1, kind: input, shape index: {}]
  %s2 = inlined_call_operand.vmem [shape: f32[1,32], index: 2, kind: input, shape index: {}]
  %s3 = inlined_call_operand.hbm [shape: f32[9,32,32], index: 3, kind: input, shape index: {}]
  %s4 = inlined_call_operand.vmem [shape: f32[1,32], index: 4, kind: input, shape index: {}]
  %s5 = inlined_call_operand.vmem [shape: f32[64,256], index: 5, kind: input, shape index: {}]
  %s6 = inlined_call_operand.hbm [shape: f32[16,64], index: 6, kind: input, shape index: {}]
  %s7 = inlined_call_operand.vmem [shape: f32[16,32,128], index: 7, kind: input, shape index: {}]
  %s8 = inlined_call_operand.vmem [shape: f32[1,128], index: 8, kind: input, shape index: {}]
  %s9 = inlined_call_operand.hbm [shape: f32[2,1,128], index: 9, kind: output, shape index: {}]
  %s10 = sld [smem:[#allocation0]]
  $region81: #{fine_tune_forward.1} parent=0
    _
  %s12 = ssub.s32 1, %s10
  %s13 = scalar_select 0, %s12, %s10
  $region1: #{fine_tune_forward.1} parent=0
    #allocation2 [shape = 'u8[18432]{0}', space=vmem, size = 0x4800, scoped, tag = 'input window, operand 1, single buffered']
    #allocation3 [shape = 's32[2]{0}', space=sflag, size = 0x8, scoped, tag = 'scoped memory for fine_tune_forward.1']
    #allocation4 [shape = 's32[2]{0}', space=sflag, size = 0x8, scoped, tag = 'scoped memory for fine_tune_forward.1']
    #allocation5 [shape = 'u8[147456]{0}', space=vmem, size = 0x24000, scoped, tag = 'input window, operand 3, single buffered']
    #allocation6 [shape = 's32[1]{0}', space=sflag, size = 0x4, scoped, tag = 'scoped memory for fine_tune_forward.1']
    #allocation7 [shape = 'u8[8192]{0}', space=vmem, size = 0x2000, scoped, tag = 'input window, operand 6, single buffered']
    #allocation8 [shape = 'u8[1024]{0}', space=vmem, size = 0x400, scoped, tag = 'output window, operand 0']
    %14 = vsyncpa [#allocation3], 0
    %15 = vsyncpa [#allocation6], 0
    %16 = vsyncpa [#allocation4], 0
    %s17 = scalar_lea.sflag [#allocation4], 1
    %18 = vsyncpa %s17, 0
    loop: start=0, step=1, limit=4
    $region2: #{fine_tune_forward.1} parent=1 // loop_pre_header
      _
    $region3: #{fine_tune_forward.1} parent=1 // loop_header
      %s20 = sphi 0, %s24
      %p21 = scmp.ge.s32.totalorder %s20, 4
      %s30 = sphi 0, %s32
      %s33 = sphi 0, %s30
      %s34 = sphi 0, %s33
      %s50 = sphi 0, %s34
      %s54 = sphi 0, %s54
      %s56 = sphi 0, %s54
      %s57 = sphi 0, %s56
      %s71 = sphi 0, %s57
      %s75 = sphi 0, %s75
      %s77 = sphi 0, %s75
      %s78 = sphi 0, %s77
      %s92 = sphi 0, %s78
      %s96 = sphi 0, %s96
      %s98 = sphi 0, %s96
      %s99 = sphi 0, %s98
      %s113 = sphi 0, %s99
      %s117 = sphi 0, %s117
      %s119 = sphi 0, %s117
      %s120 = sphi 0, %s119
      %s134 = sphi 0, %s120
      %s138 = sphi 0, %s138
      %s140 = sphi 0, %s138
      %s141 = sphi 0, %s140
      %s155 = sphi 0, %s141
      %s159 = sphi 0, %s159
      %s161 = sphi 0, %s159
      %s162 = sphi 0, %s161
      %s176 = sphi 0, %s162
      %s180 = sphi 0, %s180
      %s182 = sphi 0, %s180
      %s183 = sphi 0, %s182
      %s197 = sphi 0, %s183
      %s201 = sphi 0, %s201
      %s203 = sphi 0, %s201
      %s204 = sphi 0, %s203
      %s218 = sphi 0, %s204
      %s224 = sphi 0, %s226
      %s227 = sphi 0, %s224
      %s228 = sphi 0, %s227
      %s244 = sphi 0, %s228
    $region4: #{fine_tune_forward.1} parent=1 // loop_header_branch
      %23 = sbr.rel (%p21) target = $region8
    $region5: #{fine_tune_forward.1} parent=1 // loop_body
      %s25 = ssub.s32 %s20, 1
      %s26 = ssub.s32 %s20, 2
      %s27 = sadd.s32 %s20, 1
      %s28 = ssub.s32 %s20, %s27
      %p29 = scmp.eq.s32.totalorder %s28, 0
      %s31 = sadd.s32 %s30, 1
      %s32 = scalar_select %p29, %s30, %s31
      %p35 = pneg %p29
      %p36 = scmp.eq.s32.totalorder %s20, 1
      %p37 = por %p35, %p36
      %p38 = scmp.ne.s32.totalorder %s30, %s33
      %p39 = scmp.eq.s32.totalorder %s20, 0
      %p40 = por %p38, %p39
      %p41 = scmp.ne.s32.totalorder %s30, %s33
      %p42 = scmp.eq.s32.totalorder %s25, 1
      %p43 = por %p41, %p42
      %p44 = scmp.ne.s32.totalorder %s33, %s34
      %p45 = scmp.eq.s32.totalorder %s25, 0
      %p46 = por %p44, %p45
      %p47 = scmp.ne.s32.totalorder %s33, %s34
      %p48 = scmp.eq.s32.totalorder %s26, 1
      %p49 = por %p47, %p48
      %p51 = scmp.ne.s32.totalorder %s34, %s50
      %p52 = scmp.eq.s32.totalorder %s26, 0
      %p53 = por %p51, %p52
      %s55 = sadd.s32 %s54, 1
      %p58 = scmp.eq.s32.totalorder %s20, 1
      %p59 = scmp.ne.s32.totalorder %s54, %s56
      %p60 = scmp.eq.s32.totalorder %s20, 0
      %p61 = por %p59, %p60
      %p62 = scmp.ne.s32.totalorder %s54, %s56
      %p63 = scmp.eq.s32.totalorder %s25, 1
      %p64 = por %p62, %p63
      %p65 = scmp.ne.s32.totalorder %s56, %s57
      %p66 = scmp.eq.s32.totalorder %s25, 0
      %p67 = por %p65, %p66
      %p68 = scmp.ne.s32.totalorder %s56, %s57
      %p69 = scmp.eq.s32.totalorder %s26, 1
      %p70 = por %p68, %p69
      %p72 = scmp.ne.s32.totalorder %s57, %s71
      %p73 = scmp.eq.s32.totalorder %s26, 0
      %p74 = por %p72, %p73
      %s76 = sadd.s32 %s75, 1
      %p79 = scmp.eq.s32.totalorder %s20, 1
      %p80 = scmp.ne.s32.totalorder %s75, %s77
      %p81 = scmp.eq.s32.totalorder %s20, 0
      %p82 = por %p80, %p81
      %p83 = scmp.ne.s32.totalorder %s75, %s77
      %p84 = scmp.eq.s32.totalorder %s25, 1
      %p85 = por %p83, %p84
      %p86 = scmp.ne.s32.totalorder %s77, %s78
      %p87 = scmp.eq.s32.totalorder %s25, 0
      %p88 = por %p86, %p87
      %p89 = scmp.ne.s32.totalorder %s77, %s78
      %p90 = scmp.eq.s32.totalorder %s26, 1
      %p91 = por %p89, %p90
      %p93 = scmp.ne.s32.totalorder %s78, %s92
      %p94 = scmp.eq.s32.totalorder %s26, 0
      %p95 = por %p93, %p94
      %s97 = sadd.s32 %s96, 1
      %p100 = scmp.eq.s32.totalorder %s20, 1
      %p101 = scmp.ne.s32.totalorder %s96, %s98
      %p102 = scmp.eq.s32.totalorder %s20, 0
      %p103 = por %p101, %p102
      %p104 = scmp.ne.s32.totalorder %s96, %s98
      %p105 = scmp.eq.s32.totalorder %s25, 1
      %p106 = por %p104, %p105
      %p107 = scmp.ne.s32.totalorder %s98, %s99
      %p108 = scmp.eq.s32.totalorder %s25, 0
      %p109 = por %p107, %p108
      %p110 = scmp.ne.s32.totalorder %s98, %s99
      %p111 = scmp.eq.s32.totalorder %s26, 1
      %p112 = por %p110, %p111
      %p114 = scmp.ne.s32.totalorder %s99, %s113
      %p115 = scmp.eq.s32.totalorder %s26, 0
      %p116 = por %p114, %p115
      %s118 = sadd.s32 %s117, 1
      %p121 = scmp.eq.s32.totalorder %s20, 1
      %p122 = scmp.ne.s32.totalorder %s117, %s119
      %p123 = scmp.eq.s32.totalorder %s20, 0
      %p124 = por %p122, %p123
      %p125 = scmp.ne.s32.totalorder %s117, %s119
      %p126 = scmp.eq.s32.totalorder %s25, 1
      %p127 = por %p125, %p126
      %p128 = scmp.ne.s32.totalorder %s119, %s120
      %p129 = scmp.eq.s32.totalorder %s25, 0
      %p130 = por %p128, %p129
      %p131 = scmp.ne.s32.totalorder %s119, %s120
      %p132 = scmp.eq.s32.totalorder %s26, 1
      %p133 = por %p131, %p132
      %p135 = scmp.ne.s32.totalorder %s120, %s134
      %p136 = scmp.eq.s32.totalorder %s26, 0
      %p137 = por %p135, %p136
      %s139 = sadd.s32 %s138, 1
      %p142 = scmp.eq.s32.totalorder %s20, 1
      %p143 = scmp.ne.s32.totalorder %s138, %s140
      %p144 = scmp.eq.s32.totalorder %s20, 0
      %p145 = por %p143, %p144
      %p146 = scmp.ne.s32.totalorder %s138, %s140
      %p147 = scmp.eq.s32.totalorder %s25, 1
      %p148 = por %p146, %p147
      %p149 = scmp.ne.s32.totalorder %s140, %s141
      %p150 = scmp.eq.s32.totalorder %s25, 0
      %p151 = por %p149, %p150
      %p152 = scmp.ne.s32.totalorder %s140, %s141
      %p153 = scmp.eq.s32.totalorder %s26, 1
      %p154 = por %p152, %p153
      %p156 = scmp.ne.s32.totalorder %s141, %s155
      %p157 = scmp.eq.s32.totalorder %s26, 0
      %p158 = por %p156, %p157
      %s160 = sadd.s32 %s159, 1
      %p163 = scmp.eq.s32.totalorder %s20, 1
      %p164 = scmp.ne.s32.totalorder %s159, %s161
      %p165 = scmp.eq.s32.totalorder %s20, 0
      %p166 = por %p164, %p165
      %p167 = scmp.ne.s32.totalorder %s159, %s161
      %p168 = scmp.eq.s32.totalorder %s25, 1
      %p169 = por %p167, %p168
      %p170 = scmp.ne.s32.totalorder %s161, %s162
      %p171 = scmp.eq.s32.totalorder %s25, 0
      %p172 = por %p170, %p171
      %p173 = scmp.ne.s32.totalorder %s161, %s162
      %p174 = scmp.eq.s32.totalorder %s26, 1
      %p175 = por %p173, %p174
      %p177 = scmp.ne.s32.totalorder %s162, %s176
      %p178 = scmp.eq.s32.totalorder %s26, 0
      %p179 = por %p177, %p178
      %s181 = sadd.s32 %s180, 1
      %p184 = scmp.eq.s32.totalorder %s20, 1
      %p185 = scmp.ne.s32.totalorder %s180, %s182
      %p186 = scmp.eq.s32.totalorder %s20, 0
      %p187 = por %p185, %p186
      %p188 = scmp.ne.s32.totalorder %s180, %s182
      %p189 = scmp.eq.s32.totalorder %s25, 1
      %p190 = por %p188, %p189
      %p191 = scmp.ne.s32.totalorder %s182, %s183
      %p192 = scmp.eq.s32.totalorder %s25, 0
      %p193 = por %p191, %p192
      %p194 = scmp.ne.s32.totalorder %s182, %s183
      %p195 = scmp.eq.s32.totalorder %s26, 1
      %p196 = por %p194, %p195
      %p198 = scmp.ne.s32.totalorder %s183, %s197
      %p199 = scmp.eq.s32.totalorder %s26, 0
      %p200 = por %p198, %p199
      %s202 = sadd.s32 %s201, 1
      %p205 = scmp.eq.s32.totalorder %s20, 1
      %p206 = scmp.ne.s32.totalorder %s201, %s203
      %p207 = scmp.eq.s32.totalorder %s20, 0
      %p208 = por %p206, %p207
      %p209 = scmp.ne.s32.totalorder %s201, %s203
      %p210 = scmp.eq.s32.totalorder %s25, 1
      %p211 = por %p209, %p210
      %p212 = scmp.ne.s32.totalorder %s203, %s204
      %p213 = scmp.eq.s32.totalorder %s25, 0
      %p214 = por %p212, %p213
      %p215 = scmp.ne.s32.totalorder %s203, %s204
      %p216 = scmp.eq.s32.totalorder %s26, 1
      %p217 = por %p215, %p216
      %p219 = scmp.ne.s32.totalorder %s204, %s218
      %p220 = scmp.eq.s32.totalorder %s26, 0
      %p221 = por %p219, %p220
      %s222 = ssub.s32 %s20, %s27
      %p223 = scmp.eq.s32.totalorder %s222, 0
      %s225 = sadd.s32 %s224, 1
      %s226 = scalar_select %p223, %s224, %s225
      %p229 = pneg %p223
      %p230 = scmp.eq.s32.totalorder %s20, 1
      %p231 = por %p229, %p230
      %p232 = scmp.ne.s32.totalorder %s224, %s227
      %p233 = scmp.eq.s32.totalorder %s20, 0
      %p234 = por %p232, %p233
      %p235 = scmp.ne.s32.totalorder %s224, %s227
      %p236 = scmp.eq.s32.totalorder %s25, 1
      %p237 = por %p235, %p236
      %p238 = scmp.ne.s32.totalorder %s227, %s228
      %p239 = scmp.eq.s32.totalorder %s25, 0
      %p240 = por %p238, %p239
      %p241 = scmp.ne.s32.totalorder %s227, %s228
      %p242 = scmp.eq.s32.totalorder %s26, 1
      %p243 = por %p241, %p242
      %p245 = scmp.ne.s32.totalorder %s228, %s244
      %p246 = scmp.eq.s32.totalorder %s26, 0
      %p247 = por %p245, %p246
      %p248 = scmp.le.s32.totalorder 1, %s20
      %p249 = scmp.lt.s32.totalorder %s20, 3
      %p250 = pnand %p248, %p249
      %p251 = pneg %p250
      // Predicated region
      $region9: #{fine_tune_forward.1} parent=5 // pred_check
        _
      $region10: #{fine_tune_forward.1} parent=5 // pred_check_branch
        %253 = sbr.rel (%p250) target = $region12
      $region11: #{fine_tune_forward.1} parent=5 // pred_region
        %s254 = ssub.s32 %s20, 1
        // Predicated region
        $region13: #{fine_tune_forward.1} parent=11 // pred_check
          %p255 = pneg %p67
        $region14: #{fine_tune_forward.1} parent=11 // pred_check_branch
          %257 = sbr.rel (%p255) target = $region16
        $region15: #{fine_tune_forward.1} parent=11 // pred_region
          %259 = vsyncadd [#allocation3], 0
          %s260 = sshll.u32 %s1, 4
          %s261 = int_to_ptr.hbm [resolvable:$true] %s260
          %s262 = sshll.u32 [#allocation2], 4
          %s263 = int_to_ptr.vmem [resolvable:$true] %s262
          %268 = dma.hbm_to_vmem [thread:$0]  %s261, 576, %s263, [#allocation3], 64, 64, 4
        $region16: #{fine_tune_forward.1} parent=11 // pred_fallthru
          _
        // Predicated region
        $region17: #{fine_tune_forward.1} parent=11 // pred_check
          %p269 = pneg %p88
        $region18: #{fine_tune_forward.1} parent=11 // pred_check_branch
          %271 = sbr.rel (%p269) target = $region20
        $region19: #{fine_tune_forward.1} parent=11 // pred_region
          _
        $region20: #{fine_tune_forward.1} parent=11 // pred_fallthru
          _
        // Predicated region
        $region21: #{fine_tune_forward.1} parent=11 // pred_check
          %p272 = pneg %p109
        $region22: #{fine_tune_forward.1} parent=11 // pred_check_branch
          %274 = sbr.rel (%p272) target = $region24
        $region23: #{fine_tune_forward.1} parent=11 // pred_region
          %276 = vsyncadd [#allocation6], 0
          %s277 = sshll.u32 %s3, 4
          %s278 = int_to_ptr.hbm [resolvable:$true] %s277
          %s279 = sshll.u32 [#allocation5], 4
          %s280 = int_to_ptr.vmem [resolvable:$true] %s279
          %285 = dma.hbm_to_vmem [thread:$0]  %s278, 4608, %s280, [#allocation6], 128, 128, 8
        $region24: #{fine_tune_forward.1} parent=11 // pred_fallthru
          _
        // Predicated region
        $region25: #{fine_tune_forward.1} parent=11 // pred_check
          %p286 = pneg %p130
        $region26: #{fine_tune_forward.1} parent=11 // pred_check_branch
          %288 = sbr.rel (%p286) target = $region28
        $region27: #{fine_tune_forward.1} parent=11 // pred_region
          _
        $region28: #{fine_tune_forward.1} parent=11 // pred_fallthru
          _
        // Predicated region
        $region29: #{fine_tune_forward.1} parent=11 // pred_check
          %p289 = pneg %p151
        $region30: #{fine_tune_forward.1} parent=11 // pred_check_branch
          %291 = sbr.rel (%p289) target = $region32
        $region31: #{fine_tune_forward.1} parent=11 // pred_region
          _
        $region32: #{fine_tune_forward.1} parent=11 // pred_fallthru
          _
        // Predicated region
        $region33: #{fine_tune_forward.1} parent=11 // pred_check
          %p292 = pneg %p172
        $region34: #{fine_tune_forward.1} parent=11 // pred_check_branch
          %294 = sbr.rel (%p292) target = $region36
        $region35: #{fine_tune_forward.1} parent=11 // pred_region
          %296 = vsyncadd [#allocation6], 0
          %s297 = sshll.u32 %s6, 4
          %s298 = int_to_ptr.hbm [resolvable:$true] %s297
          %s299 = sshll.u32 [#allocation7], 4
          %s300 = int_to_ptr.vmem [resolvable:$true] %s299
          %305 = dma.hbm_to_vmem [thread:$0]  %s298, 256, %s300, [#allocation6], 128, 128, 8
        $region36: #{fine_tune_forward.1} parent=11 // pred_fallthru
          _
        // Predicated region
        $region37: #{fine_tune_forward.1} parent=11 // pred_check
          %p306 = pneg %p193
        $region38: #{fine_tune_forward.1} parent=11 // pred_check_branch
          %308 = sbr.rel (%p306) target = $region40
        $region39: #{fine_tune_forward.1} parent=11 // pred_region
          _
        $region40: #{fine_tune_forward.1} parent=11 // pred_fallthru
          _
        // Predicated region
        $region41: #{fine_tune_forward.1} parent=11 // pred_check
          %p309 = pneg %p214
        $region42: #{fine_tune_forward.1} parent=11 // pred_check_branch
          %311 = sbr.rel (%p309) target = $region44
        $region43: #{fine_tune_forward.1} parent=11 // pred_region
          _
        $region44: #{fine_tune_forward.1} parent=11 // pred_fallthru
          _
      $region12: #{fine_tune_forward.1} parent=5 // pred_fallthru
        _
      %p312 = scmp.lt.s32.totalorder %s20, 2
      // Predicated region
      $region45: #{fine_tune_forward.1} parent=5 // pred_check
        %p313 = pneg %p312
      $region46: #{fine_tune_forward.1} parent=5 // pred_check_branch
        %315 = sbr.rel (%p313) target = $region48
      $region47: #{fine_tune_forward.1} parent=5 // pred_region
        // Predicated region
        $region49: #{fine_tune_forward.1} parent=47 // pred_check
          %p316 = pneg %p40
        $region50: #{fine_tune_forward.1} parent=47 // pred_check_branch
          %318 = sbr.rel (%p316) target = $region52
        $region51: #{fine_tune_forward.1} parent=47 // pred_region
          %p319 = scmp.lt.s32.totalorder %s20, 1
          %s320 = scalar_select %p319, %s20, 1
          %s321 = smul.addr %s320, 32
          %s322 = smul.addr %s321, 8
          %s323 = scalar_lea.vmem %s0, %s322
        $region52: #{fine_tune_forward.1} parent=47 // pred_fallthru
          _
      $region48: #{fine_tune_forward.1} parent=5 // pred_fallthru
        _
      %p324 = scmp.le.s32.totalorder 1, %s20
      %p325 = scmp.lt.s32.totalorder %s20, 3
      %p326 = pnand %p324, %p325
      %p327 = pneg %p326
      // Predicated region
      $region53: #{fine_tune_forward.1} parent=5 // pred_check
        _
      $region54: #{fine_tune_forward.1} parent=5 // pred_check_branch
        %329 = sbr.rel (%p326) target = $region56
      $region55: #{fine_tune_forward.1} parent=5 // pred_region
        %s330 = ssub.s32 %s20, 1
        // Predicated region
        $region57: #{fine_tune_forward.1} parent=55 // pred_check
          %p331 = pneg %p67
        $region58: #{fine_tune_forward.1} parent=55 // pred_check_branch
          %333 = sbr.rel (%p331) target = $region60
        $region59: #{fine_tune_forward.1} parent=55 // pred_region
          %335 = dma.done [#allocation3], 576
        $region60: #{fine_tune_forward.1} parent=55 // pred_fallthru
          _
        // Predicated region
        $region61: #{fine_tune_forward.1} parent=55 // pred_check
          %p336 = pneg %p109
        $region62: #{fine_tune_forward.1} parent=55 // pred_check_branch
          %338 = sbr.rel (%p336) target = $region64
        $region63: #{fine_tune_forward.1} parent=55 // pred_region
          %340 = dma.done [#allocation6], 4608
        $region64: #{fine_tune_forward.1} parent=55 // pred_fallthru
          _
        // Predicated region
        $region65: #{fine_tune_forward.1} parent=55 // pred_check
          %p341 = pneg %p172
        $region66: #{fine_tune_forward.1} parent=55 // pred_check_branch
          %343 = sbr.rel (%p341) target = $region68
        $region67: #{fine_tune_forward.1} parent=55 // pred_region
          %345 = dma.done [#allocation6], 256
        $region68: #{fine_tune_forward.1} parent=55 // pred_fallthru
          _
        %p346 = scmp.lt.s32.totalorder %s25, 1
        %s347 = scalar_select %p346, %s25, 1
        %s348 = smul.addr %s347, 32
        %s349 = smul.addr %s348, 8
        %s350 = scalar_lea.vmem %s0, %s349
        %p351 = pneg %p46
        %p352 = pneg %p43
        %p353 = pneg %p67
        %p354 = pneg %p64
        %p355 = pneg %p88
        %p356 = pneg %p85
        %p357 = pneg %p109
        %p358 = pneg %p106
        %p359 = pneg %p130
        %p360 = pneg %p127
        %p361 = pneg %p151
        %p362 = pneg %p148
        %p363 = pneg %p172
        %p364 = pneg %p169
        %p365 = pneg %p193
        %p366 = pneg %p190
        %p367 = pneg %p214
        %p368 = pneg %p211
        %p369 = pneg %p240
        %p370 = pneg %p237
        %s371 = sand.u32 %s227, 1
        %s372 = scalar_lea.sflag [#allocation4], %s371
        %s373 = sand.u32 %s227, 1
        %s374 = scalar_lea.vmem [#allocation8], %s373
        %p375 = scmp.lt.s32.totalorder %s25, 1
        %s376 = scalar_select %p375, %s25, 1
        %s377 = smul.addr %s376, 32
        %s378 = smul.addr %s377, 8
        %s379 = scalar_lea.vmem %s0, %s378
        %v380 = vld [vmem:[%s379] sm:$0xff]
        %v381 = vld [vmem:[%s379 + $0x8] sm:$0xff]
        %v382 = vld [vmem:[%s379 + $0x10] sm:$0xff]
        %v383 = vld [vmem:[%s379 + $0x18] sm:$0xff]
        %v384 = vld [vmem:[%s379 + $0x20] sm:$0xff]
        %v385 = vld [vmem:[%s379 + $0x28] sm:$0xff]
        %v386 = vld [vmem:[%s379 + $0x30] sm:$0xff]
        %v387 = vld [vmem:[%s379 + $0x38] sm:$0xff]
        %v388 = vld [vmem:[%s379 + $0x40] sm:$0xff]
        %v389 = vld [vmem:[%s379 + $0x48] sm:$0xff]
        %v390 = vld [vmem:[%s379 + $0x50] sm:$0xff]
        %v391 = vld [vmem:[%s379 + $0x58] sm:$0xff]
        %v392 = vld [vmem:[%s379 + $0x60] sm:$0xff]
        %v393 = vld [vmem:[%s379 + $0x68] sm:$0xff]
        %v394 = vld [vmem:[%s379 + $0x70] sm:$0xff]
        %v395 = vld [vmem:[%s379 + $0x78] sm:$0xff]
        %v396 = vld [vmem:[%s379 + $0x80] sm:$0xff]
        %v397 = vld [vmem:[%s379 + $0x88] sm:$0xff]
        %v398 = vld [vmem:[%s379 + $0x90] sm:$0xff]
        %v399 = vld [vmem:[%s379 + $0x98] sm:$0xff]
        %v400 = vld [vmem:[%s379 + $0xa0] sm:$0xff]
        %v401 = vld [vmem:[%s379 + $0xa8] sm:$0xff]
        %v402 = vld [vmem:[%s379 + $0xb0] sm:$0xff]
        %v403 = vld [vmem:[%s379 + $0xb8] sm:$0xff]
        %v404 = vld [vmem:[%s379 + $0xc0] sm:$0xff]
        %v405 = vld [vmem:[%s379 + $0xc8] sm:$0xff]
        %v406 = vld [vmem:[%s379 + $0xd0] sm:$0xff]
        %v407 = vld [vmem:[%s379 + $0xd8] sm:$0xff]
        %v408 = vld [vmem:[%s379 + $0xe0] sm:$0xff]
        %v409 = vld [vmem:[%s379 + $0xe8] sm:$0xff]
        %v410 = vld [vmem:[%s379 + $0xf0] sm:$0xff]
        %v411 = vld [vmem:[%s379 + $0xf8] sm:$0xff]
        %v412 = vlaneseq
        %v413 = vshrl.u32 %v412, 7
        %v414 = vadd.s32 %v413, 8
        %v415 = vadd.s32 %v413, 16
        %v416 = vadd.s32 %v413, 24
        %v417 = vadd.s32 %v413, 32
        %v418 = vadd.s32 %v413, 40
        %v419 = vadd.s32 %v413, 48
        %v420 = vadd.s32 %v413, 56
        %v421 = vadd.s32 %v413, 64
        %v422 = vadd.s32 %v413, 72
        %v423 = vadd.s32 %v413, 80
        %v424 = vadd.s32 %v413, 88
        %v425 = vadd.s32 %v413, 96
        %v426 = vadd.s32 %v413, 104
        %v427 = vadd.s32 %v413, 112
        %v428 = vadd.s32 %v413, 120
        %v429 = vadd.s32 %v413, 128
        %v430 = vadd.s32 %v413, 136
        %v431 = vadd.s32 %v413, 144
        %v432 = vadd.s32 %v413, 152
        %v433 = vadd.s32 %v413, 160
        %v434 = vadd.s32 %v413, 168
        %v435 = vadd.s32 %v413, 176
        %v436 = vadd.s32 %v413, 184
        %v437 = vadd.s32 %v413, 192
        %v438 = vadd.s32 %v413, 200
        %v439 = vadd.s32 %v413, 208
        %v440 = vadd.s32 %v413, 216
        %v441 = vadd.s32 %v413, 224
        %v442 = vadd.s32 %v413, 232
        %v443 = vadd.s32 %v413, 240
        %v444 = vadd.s32 %v413, 248
        %vm445 = vcmp.lt.s32.totalorder %v413, 0
        %v446 = vsub.s32 0, %v413
        %v447 = vsel %vm445, %v446, %v413
        %v448 = vshrl.u32 %v447, 4
        %v449 = vand.u32 %v447, 15
        %v450 = vsub.s32 0, %v449
        %v451 = vsel %vm445, %v450, %v449
        %vm452 = vcmp.lt.s32.totalorder %v414, 0
        %v453 = vsub.s32 0, %v414
        %v454 = vsel %vm452, %v453, %v414
        %v455 = vshrl.u32 %v454, 4
        %v456 = vand.u32 %v454, 15
        %v457 = vsub.s32 0, %v456
        %v458 = vsel %vm452, %v457, %v456
        %vm459 = vcmp.lt.s32.totalorder %v415, 0
        %v460 = vsub.s32 0, %v415
        %v461 = vsel %vm459, %v460, %v415
        %v462 = vshrl.u32 %v461, 4
        %v463 = vand.u32 %v461, 15
        %v464 = vsub.s32 0, %v463
        %v465 = vsel %vm459, %v464, %v463
        %vm466 = vcmp.lt.s32.totalorder %v416, 0
        %v467 = vsub.s32 0, %v416
        %v468 = vsel %vm466, %v467, %v416
        %v469 = vshrl.u32 %v468, 4
        %v470 = vand.u32 %v468, 15
        %v471 = vsub.s32 0, %v470
        %v472 = vsel %vm466, %v471, %v470
        %vm473 = vcmp.lt.s32.totalorder %v417, 0
        %v474 = vsub.s32 0, %v417
        %v475 = vsel %vm473, %v474, %v417
        %v476 = vshrl.u32 %v475, 4
        %v477 = vand.u32 %v475, 15
        %v478 = vsub.s32 0, %v477
        %v479 = vsel %vm473, %v478, %v477
        %vm480 = vcmp.lt.s32.totalorder %v418, 0
        %v481 = vsub.s32 0, %v418
        %v482 = vsel %vm480, %v481, %v418
        %v483 = vshrl.u32 %v482, 4
        %v484 = vand.u32 %v482, 15
        %v485 = vsub.s32 0, %v484
        %v486 = vsel %vm480, %v485, %v484
        %vm487 = vcmp.lt.s32.totalorder %v419, 0
        %v488 = vsub.s32 0, %v419
        %v489 = vsel %vm487, %v488, %v419
        %v490 = vshrl.u32 %v489, 4
        %v491 = vand.u32 %v489, 15
        %v492 = vsub.s32 0, %v491
        %v493 = vsel %vm487, %v492, %v491
        %vm494 = vcmp.lt.s32.totalorder %v420, 0
        %v495 = vsub.s32 0, %v420
        %v496 = vsel %vm494, %v495, %v420
        %v497 = vshrl.u32 %v496, 4
        %v498 = vand.u32 %v496, 15
        %v499 = vsub.s32 0, %v498
        %v500 = vsel %vm494, %v499, %v498
        %vm501 = vcmp.lt.s32.totalorder %v421, 0
        %v502 = vsub.s32 0, %v421
        %v503 = vsel %vm501, %v502, %v421
        %v504 = vshrl.u32 %v503, 4
        %v505 = vand.u32 %v503, 15
        %v506 = vsub.s32 0, %v505
        %v507 = vsel %vm501, %v506, %v505
        %vm508 = vcmp.lt.s32.totalorder %v422, 0
        %v509 = vsub.s32 0, %v422
        %v510 = vsel %vm508, %v509, %v422
        %v511 = vshrl.u32 %v510, 4
        %v512 = vand.u32 %v510, 15
        %v513 = vsub.s32 0, %v512
        %v514 = vsel %vm508, %v513, %v512
        %vm515 = vcmp.lt.s32.totalorder %v423, 0
        %v516 = vsub.s32 0, %v423
        %v517 = vsel %vm515, %v516, %v423
        %v518 = vshrl.u32 %v517, 4
        %v519 = vand.u32 %v517, 15
        %v520 = vsub.s32 0, %v519
        %v521 = vsel %vm515, %v520, %v519
        %vm522 = vcmp.lt.s32.totalorder %v424, 0
        %v523 = vsub.s32 0, %v424
        %v524 = vsel %vm522, %v523, %v424
        %v525 = vshrl.u32 %v524, 4
        %v526 = vand.u32 %v524, 15
        %v527 = vsub.s32 0, %v526
        %v528 = vsel %vm522, %v527, %v526
        %vm529 = vcmp.lt.s32.totalorder %v425, 0
        %v530 = vsub.s32 0, %v425
        %v531 = vsel %vm529, %v530, %v425
        %v532 = vshrl.u32 %v531, 4
        %v533 = vand.u32 %v531, 15
        %v534 = vsub.s32 0, %v533
        %v535 = vsel %vm529, %v534, %v533
        %vm536 = vcmp.lt.s32.totalorder %v426, 0
        %v537 = vsub.s32 0, %v426
        %v538 = vsel %vm536, %v537, %v426
        %v539 = vshrl.u32 %v538, 4
        %v540 = vand.u32 %v538, 15
        %v541 = vsub.s32 0, %v540
        %v542 = vsel %vm536, %v541, %v540
        %vm543 = vcmp.lt.s32.totalorder %v427, 0
        %v544 = vsub.s32 0, %v427
        %v545 = vsel %vm543, %v544, %v427
        %v546 = vshrl.u32 %v545, 4
        %v547 = vand.u32 %v545, 15
        %v548 = vsub.s32 0, %v547
        %v549 = vsel %vm543, %v548, %v547
        %vm550 = vcmp.lt.s32.totalorder %v428, 0
        %v551 = vsub.s32 0, %v428
        %v552 = vsel %vm550, %v551, %v428
        %v553 = vshrl.u32 %v552, 4
        %v554 = vand.u32 %v552, 15
        %v555 = vsub.s32 0, %v554
        %v556 = vsel %vm550, %v555, %v554
        %vm557 = vcmp.lt.s32.totalorder %v429, 0
        %v558 = vsub.s32 0, %v429
        %v559 = vsel %vm557, %v558, %v429
        %v560 = vshrl.u32 %v559, 4
        %v561 = vand.u32 %v559, 15
        %v562 = vsub.s32 0, %v561
        %v563 = vsel %vm557, %v562, %v561
        %vm564 = vcmp.lt.s32.totalorder %v430, 0
        %v565 = vsub.s32 0, %v430
        %v566 = vsel %vm564, %v565, %v430
        %v567 = vshrl.u32 %v566, 4
        %v568 = vand.u32 %v566, 15
        %v569 = vsub.s32 0, %v568
        %v570 = vsel %vm564, %v569, %v568
        %vm571 = vcmp.lt.s32.totalorder %v431, 0
        %v572 = vsub.s32 0, %v431
        %v573 = vsel %vm571, %v572, %v431
        %v574 = vshrl.u32 %v573, 4
        %v575 = vand.u32 %v573, 15
        %v576 = vsub.s32 0, %v575
        %v577 = vsel %vm571, %v576, %v575
        %vm578 = vcmp.lt.s32.totalorder %v432, 0
        %v579 = vsub.s32 0, %v432
        %v580 = vsel %vm578, %v579, %v432
        %v581 = vshrl.u32 %v580, 4
        %v582 = vand.u32 %v580, 15
        %v583 = vsub.s32 0, %v582
        %v584 = vsel %vm578, %v583, %v582
        %vm585 = vcmp.lt.s32.totalorder %v433, 0
        %v586 = vsub.s32 0, %v433
        %v587 = vsel %vm585, %v586, %v433
        %v588 = vshrl.u32 %v587, 4
        %v589 = vand.u32 %v587, 15
        %v590 = vsub.s32 0, %v589
        %v591 = vsel %vm585, %v590, %v589
        %vm592 = vcmp.lt.s32.totalorder %v434, 0
        %v593 = vsub.s32 0, %v434
        %v594 = vsel %vm592, %v593, %v434
        %v595 = vshrl.u32 %v594, 4
        %v596 = vand.u32 %v594, 15
        %v597 = vsub.s32 0, %v596
        %v598 = vsel %vm592, %v597, %v596
        %vm599 = vcmp.lt.s32.totalorder %v435, 0
        %v600 = vsub.s32 0, %v435
        %v601 = vsel %vm599, %v600, %v435
        %v602 = vshrl.u32 %v601, 4
        %v603 = vand.u32 %v601, 15
        %v604 = vsub.s32 0, %v603
        %v605 = vsel %vm599, %v604, %v603
        %vm606 = vcmp.lt.s32.totalorder %v436, 0
        %v607 = vsub.s32 0, %v436
        %v608 = vsel %vm606, %v607, %v436
        %v609 = vshrl.u32 %v608, 4
        %v610 = vand.u32 %v608, 15
        %v611 = vsub.s32 0, %v610
        %v612 = vsel %vm606, %v611, %v610
        %vm613 = vcmp.lt.s32.totalorder %v437, 0
        %v614 = vsub.s32 0, %v437
        %v615 = vsel %vm613, %v614, %v437
        %v616 = vshrl.u32 %v615, 4
        %v617 = vand.u32 %v615, 15
        %v618 = vsub.s32 0, %v617
        %v619 = vsel %vm613, %v618, %v617
        %vm620 = vcmp.lt.s32.totalorder %v438, 0
        %v621 = vsub.s32 0, %v438
        %v622 = vsel %vm620, %v621, %v438
        %v623 = vshrl.u32 %v622, 4
        %v624 = vand.u32 %v622, 15
        %v625 = vsub.s32 0, %v624
        %v626 = vsel %vm620, %v625, %v624
        %vm627 = vcmp.lt.s32.totalorder %v439, 0
        %v628 = vsub.s32 0, %v439
        %v629 = vsel %vm627, %v628, %v439
        %v630 = vshrl.u32 %v629, 4
        %v631 = vand.u32 %v629, 15
        %v632 = vsub.s32 0, %v631
        %v633 = vsel %vm627, %v632, %v631
        %vm634 = vcmp.lt.s32.totalorder %v440, 0
        %v635 = vsub.s32 0, %v440
        %v636 = vsel %vm634, %v635, %v440
        %v637 = vshrl.u32 %v636, 4
        %v638 = vand.u32 %v636, 15
        %v639 = vsub.s32 0, %v638
        %v640 = vsel %vm634, %v639, %v638
        %vm641 = vcmp.lt.s32.totalorder %v441, 0
        %v642 = vsub.s32 0, %v441
        %v643 = vsel %vm641, %v642, %v441
        %v644 = vshrl.u32 %v643, 4
        %v645 = vand.u32 %v643, 15
        %v646 = vsub.s32 0, %v645
        %v647 = vsel %vm641, %v646, %v645
        %vm648 = vcmp.lt.s32.totalorder %v442, 0
        %v649 = vsub.s32 0, %v442
        %v650 = vsel %vm648, %v649, %v442
        %v651 = vshrl.u32 %v650, 4
        %v652 = vand.u32 %v650, 15
        %v653 = vsub.s32 0, %v652
        %v654 = vsel %vm648, %v653, %v652
        %vm655 = vcmp.lt.s32.totalorder %v443, 0
        %v656 = vsub.s32 0, %v443
        %v657 = vsel %vm655, %v656, %v443
        %v658 = vshrl.u32 %v657, 4
        %v659 = vand.u32 %v657, 15
        %v660 = vsub.s32 0, %v659
        %v661 = vsel %vm655, %v660, %v659
        %vm662 = vcmp.lt.s32.totalorder %v444, 0
        %v663 = vsub.s32 0, %v444
        %v664 = vsel %vm662, %v663, %v444
        %v665 = vshrl.u32 %v664, 4
        %v666 = vand.u32 %v664, 15
        %v667 = vsub.s32 0, %v666
        %v668 = vsel %vm662, %v667, %v666
        %vm669 = vcmp.ne.s32.totalorder %v451, 0
        %vm670 = vcmp.ne.s32.totalorder %v458, 0
        %vm671 = vcmp.ne.s32.totalorder %v465, 0
        %vm672 = vcmp.ne.s32.totalorder %v472, 0
        %vm673 = vcmp.ne.s32.totalorder %v479, 0
        %vm674 = vcmp.ne.s32.totalorder %v486, 0
        %vm675 = vcmp.ne.s32.totalorder %v493, 0
        %vm676 = vcmp.ne.s32.totalorder %v500, 0
        %vm677 = vcmp.ne.s32.totalorder %v507, 0
        %vm678 = vcmp.ne.s32.totalorder %v514, 0
        %vm679 = vcmp.ne.s32.totalorder %v521, 0
        %vm680 = vcmp.ne.s32.totalorder %v528, 0
        %vm681 = vcmp.ne.s32.totalorder %v535, 0
        %vm682 = vcmp.ne.s32.totalorder %v542, 0
        %vm683 = vcmp.ne.s32.totalorder %v549, 0
        %vm684 = vcmp.ne.s32.totalorder %v556, 0
        %vm685 = vcmp.ne.s32.totalorder %v563, 0
        %vm686 = vcmp.ne.s32.totalorder %v570, 0
        %vm687 = vcmp.ne.s32.totalorder %v577, 0
        %vm688 = vcmp.ne.s32.totalorder %v584, 0
        %vm689 = vcmp.ne.s32.totalorder %v591, 0
        %vm690 = vcmp.ne.s32.totalorder %v598, 0
        %vm691 = vcmp.ne.s32.totalorder %v605, 0
        %vm692 = vcmp.ne.s32.totalorder %v612, 0
        %vm693 = vcmp.ne.s32.totalorder %v619, 0
        %vm694 = vcmp.ne.s32.totalorder %v626, 0
        %vm695 = vcmp.ne.s32.totalorder %v633, 0
        %vm696 = vcmp.ne.s32.totalorder %v640, 0
        %vm697 = vcmp.ne.s32.totalorder %v647, 0
        %vm698 = vcmp.ne.s32.totalorder %v654, 0
        %vm699 = vcmp.ne.s32.totalorder %v661, 0
        %vm700 = vcmp.ne.s32.totalorder %v668, 0
        %vm701 = vcmp.lt.s32.totalorder %v451, 0
        %vm702 = vcmp.lt.s32.totalorder %v458, 0
        %vm703 = vcmp.lt.s32.totalorder %v465, 0
        %vm704 = vcmp.lt.s32.totalorder %v472, 0
        %vm705 = vcmp.lt.s32.totalorder %v479, 0
        %vm706 = vcmp.lt.s32.totalorder %v486, 0
        %vm707 = vcmp.lt.s32.totalorder %v493, 0
        %vm708 = vcmp.lt.s32.totalorder %v500, 0
        %vm709 = vcmp.lt.s32.totalorder %v507, 0
        %vm710 = vcmp.lt.s32.totalorder %v514, 0
        %vm711 = vcmp.lt.s32.totalorder %v521, 0
        %vm712 = vcmp.lt.s32.totalorder %v528, 0
        %vm713 = vcmp.lt.s32.totalorder %v535, 0
        %vm714 = vcmp.lt.s32.totalorder %v542, 0
        %vm715 = vcmp.lt.s32.totalorder %v549, 0
        %vm716 = vcmp.lt.s32.totalorder %v556, 0
        %vm717 = vcmp.lt.s32.totalorder %v563, 0
        %vm718 = vcmp.lt.s32.totalorder %v570, 0
        %vm719 = vcmp.lt.s32.totalorder %v577, 0
        %vm720 = vcmp.lt.s32.totalorder %v584, 0
        %vm721 = vcmp.lt.s32.totalorder %v591, 0
        %vm722 = vcmp.lt.s32.totalorder %v598, 0
        %vm723 = vcmp.lt.s32.totalorder %v605, 0
        %vm724 = vcmp.lt.s32.totalorder %v612, 0
        %vm725 = vcmp.lt.s32.totalorder %v619, 0
        %vm726 = vcmp.lt.s32.totalorder %v626, 0
        %vm727 = vcmp.lt.s32.totalorder %v633, 0
        %vm728 = vcmp.lt.s32.totalorder %v640, 0
        %vm729 = vcmp.lt.s32.totalorder %v647, 0
        %vm730 = vcmp.lt.s32.totalorder %v654, 0
        %vm731 = vcmp.lt.s32.totalorder %v661, 0
        %vm732 = vcmp.lt.s32.totalorder %v668, 0
        %vm733 = vmand %vm701, %vm669
        %vm734 = vmand %vm702, %vm670
        %vm735 = vmand %vm703, %vm671
        %vm736 = vmand %vm704, %vm672
        %vm737 = vmand %vm705, %vm673
        %vm738 = vmand %vm706, %vm674
        %vm739 = vmand %vm707, %vm675
        %vm740 = vmand %vm708, %vm676
        %vm741 = vmand %vm709, %vm677
        %vm742 = vmand %vm710, %vm678
        %vm743 = vmand %vm711, %vm679
        %vm744 = vmand %vm712, %vm680
        %vm745 = vmand %vm713, %vm681
        %vm746 = vmand %vm714, %vm682
        %vm747 = vmand %vm715, %vm683
        %vm748 = vmand %vm716, %vm684
        %vm749 = vmand %vm717, %vm685
        %vm750 = vmand %vm718, %vm686
        %vm751 = vmand %vm719, %vm687
        %vm752 = vmand %vm720, %vm688
        %vm753 = vmand %vm721, %vm689
        %vm754 = vmand %vm722, %vm690
        %vm755 = vmand %vm723, %vm691
        %vm756 = vmand %vm724, %vm692
        %vm757 = vmand %vm725, %vm693
        %vm758 = vmand %vm726, %vm694
        %vm759 = vmand %vm727, %vm695
        %vm760 = vmand %vm728, %vm696
        %vm761 = vmand %vm729, %vm697
        %vm762 = vmand %vm730, %vm698
        %vm763 = vmand %vm731, %vm699
        %vm764 = vmand %vm732, %vm700
        %v765 = vadd.s32 %v451, 16
        %v766 = vadd.s32 %v458, 16
        %v767 = vadd.s32 %v465, 16
        %v768 = vadd.s32 %v472, 16
        %v769 = vadd.s32 %v479, 16
        %v770 = vadd.s32 %v486, 16
        %v771 = vadd.s32 %v493, 16
        %v772 = vadd.s32 %v500, 16
        %v773 = vadd.s32 %v507, 16
        %v774 = vadd.s32 %v514, 16
        %v775 = vadd.s32 %v521, 16
        %v776 = vadd.s32 %v528, 16
        %v777 = vadd.s32 %v535, 16
        %v778 = vadd.s32 %v542, 16
        %v779 = vadd.s32 %v549, 16
        %v780 = vadd.s32 %v556, 16
        %v781 = vadd.s32 %v563, 16
        %v782 = vadd.s32 %v570, 16
        %v783 = vadd.s32 %v577, 16
        %v784 = vadd.s32 %v584, 16
        %v785 = vadd.s32 %v591, 16
        %v786 = vadd.s32 %v598, 16
        %v787 = vadd.s32 %v605, 16
        %v788 = vadd.s32 %v612, 16
        %v789 = vadd.s32 %v619, 16
        %v790 = vadd.s32 %v626, 16
        %v791 = vadd.s32 %v633, 16
        %v792 = vadd.s32 %v640, 16
        %v793 = vadd.s32 %v647, 16
        %v794 = vadd.s32 %v654, 16
        %v795 = vadd.s32 %v661, 16
        %v796 = vadd.s32 %v668, 16
        %v797 = vsel %vm733, %v765, %v451
        %v798 = vsel %vm734, %v766, %v458
        %v799 = vsel %vm735, %v767, %v465
        %v800 = vsel %vm736, %v768, %v472
        %v801 = vsel %vm737, %v769, %v479
        %v802 = vsel %vm738, %v770, %v486
        %v803 = vsel %vm739, %v771, %v493
        %v804 = vsel %vm740, %v772, %v500
        %v805 = vsel %vm741, %v773, %v507
        %v806 = vsel %vm742, %v774, %v514
        %v807 = vsel %vm743, %v775, %v521
        %v808 = vsel %vm744, %v776, %v528
        %v809 = vsel %vm745, %v777, %v535
        %v810 = vsel %vm746, %v778, %v542
        %v811 = vsel %vm747, %v779, %v549
        %v812 = vsel %vm748, %v780, %v556
        %v813 = vsel %vm749, %v781, %v563
        %v814 = vsel %vm750, %v782, %v570
        %v815 = vsel %vm751, %v783, %v577
        %v816 = vsel %vm752, %v784, %v584
        %v817 = vsel %vm753, %v785, %v591
        %v818 = vsel %vm754, %v786, %v598
        %v819 = vsel %vm755, %v787, %v605
        %v820 = vsel %vm756, %v788, %v612
        %v821 = vsel %vm757, %v789, %v619
        %v822 = vsel %vm758, %v790, %v626
        %v823 = vsel %vm759, %v791, %v633
        %v824 = vsel %vm760, %v792, %v640
        %v825 = vsel %vm761, %v793, %v647
        %v826 = vsel %vm762, %v794, %v654
        %v827 = vsel %vm763, %v795, %v661
        %v828 = vsel %vm764, %v796, %v668
        %vm829 = vcmp.ge.s32.totalorder %v797, 1
        %vm830 = vcmp.ge.s32.totalorder %v798, 1
        %vm831 = vcmp.ge.s32.totalorder %v799, 1
        %vm832 = vcmp.ge.s32.totalorder %v800, 1
        %vm833 = vcmp.ge.s32.totalorder %v801, 1
        %vm834 = vcmp.ge.s32.totalorder %v802, 1
        %vm835 = vcmp.ge.s32.totalorder %v803, 1
        %vm836 = vcmp.ge.s32.totalorder %v804, 1
        %vm837 = vcmp.ge.s32.totalorder %v805, 1
        %vm838 = vcmp.ge.s32.totalorder %v806, 1
        %vm839 = vcmp.ge.s32.totalorder %v807, 1
        %vm840 = vcmp.ge.s32.totalorder %v808, 1
        %vm841 = vcmp.ge.s32.totalorder %v809, 1
        %vm842 = vcmp.ge.s32.totalorder %v810, 1
        %vm843 = vcmp.ge.s32.totalorder %v811, 1
        %vm844 = vcmp.ge.s32.totalorder %v812, 1
        %vm845 = vcmp.ge.s32.totalorder %v813, 1
        %vm846 = vcmp.ge.s32.totalorder %v814, 1
        %vm847 = vcmp.ge.s32.totalorder %v815, 1
        %vm848 = vcmp.ge.s32.totalorder %v816, 1
        %vm849 = vcmp.ge.s32.totalorder %v817, 1
        %vm850 = vcmp.ge.s32.totalorder %v818, 1
        %vm851 = vcmp.ge.s32.totalorder %v819, 1
        %vm852 = vcmp.ge.s32.totalorder %v820, 1
        %vm853 = vcmp.ge.s32.totalorder %v821, 1
        %vm854 = vcmp.ge.s32.totalorder %v822, 1
        %vm855 = vcmp.ge.s32.totalorder %v823, 1
        %vm856 = vcmp.ge.s32.totalorder %v824, 1
        %vm857 = vcmp.ge.s32.totalorder %v825, 1
        %vm858 = vcmp.ge.s32.totalorder %v826, 1
        %vm859 = vcmp.ge.s32.totalorder %v827, 1
        %vm860 = vcmp.ge.s32.totalorder %v828, 1
        %vm861 = vcmp.le.s32.totalorder %v797, 14
        %vm862 = vcmp.le.s32.totalorder %v798, 14
        %vm863 = vcmp.le.s32.totalorder %v799, 14
        %vm864 = vcmp.le.s32.totalorder %v800, 14
        %vm865 = vcmp.le.s32.totalorder %v801, 14
        %vm866 = vcmp.le.s32.totalorder %v802, 14
        %vm867 = vcmp.le.s32.totalorder %v803, 14
        %vm868 = vcmp.le.s32.totalorder %v804, 14
        %vm869 = vcmp.le.s32.totalorder %v805, 14
        %vm870 = vcmp.le.s32.totalorder %v806, 14
        %vm871 = vcmp.le.s32.totalorder %v807, 14
        %vm872 = vcmp.le.s32.totalorder %v808, 14
        %vm873 = vcmp.le.s32.totalorder %v809, 14
        %vm874 = vcmp.le.s32.totalorder %v810, 14
        %vm875 = vcmp.le.s32.totalorder %v811, 14
        %vm876 = vcmp.le.s32.totalorder %v812, 14
        %vm877 = vcmp.le.s32.totalorder %v813, 14
        %vm878 = vcmp.le.s32.totalorder %v814, 14
        %vm879 = vcmp.le.s32.totalorder %v815, 14
        %vm880 = vcmp.le.s32.totalorder %v816, 14
        %vm881 = vcmp.le.s32.totalorder %v817, 14
        %vm882 = vcmp.le.s32.totalorder %v818, 14
        %vm883 = vcmp.le.s32.totalorder %v819, 14
        %vm884 = vcmp.le.s32.totalorder %v820, 14
        %vm885 = vcmp.le.s32.totalorder %v821, 14
        %vm886 = vcmp.le.s32.totalorder %v822, 14
        %vm887 = vcmp.le.s32.totalorder %v823, 14
        %vm888 = vcmp.le.s32.totalorder %v824, 14
        %vm889 = vcmp.le.s32.totalorder %v825, 14
        %vm890 = vcmp.le.s32.totalorder %v826, 14
        %vm891 = vcmp.le.s32.totalorder %v827, 14
        %vm892 = vcmp.le.s32.totalorder %v828, 14
        %v893 = vsel %vm829, 1, 0
        %v894 = vsel %vm830, 1, 0
        %v895 = vsel %vm831, 1, 0
        %v896 = vsel %vm832, 1, 0
        %v897 = vsel %vm833, 1, 0
        %v898 = vsel %vm834, 1, 0
        %v899 = vsel %vm835, 1, 0
        %v900 = vsel %vm836, 1, 0
        %v901 = vsel %vm837, 1, 0
        %v902 = vsel %vm838, 1, 0
        %v903 = vsel %vm839, 1, 0
        %v904 = vsel %vm840, 1, 0
        %v905 = vsel %vm841, 1, 0
        %v906 = vsel %vm842, 1, 0
        %v907 = vsel %vm843, 1, 0
        %v908 = vsel %vm844, 1, 0
        %v909 = vsel %vm845, 1, 0
        %v910 = vsel %vm846, 1, 0
        %v911 = vsel %vm847, 1, 0
        %v912 = vsel %vm848, 1, 0
        %v913 = vsel %vm849, 1, 0
        %v914 = vsel %vm850, 1, 0
        %v915 = vsel %vm851, 1, 0
        %v916 = vsel %vm852, 1, 0
        %v917 = vsel %vm853, 1, 0
        %v918 = vsel %vm854, 1, 0
        %v919 = vsel %vm855, 1, 0
        %v920 = vsel %vm856, 1, 0
        %v921 = vsel %vm857, 1, 0
        %v922 = vsel %vm858, 1, 0
        %v923 = vsel %vm859, 1, 0
        %v924 = vsel %vm860, 1, 0
        %vm925 = vcmp.eq.s32.totalorder %v893, 1
        %vm926 = vcmp.eq.s32.totalorder %v894, 1
        %vm927 = vcmp.eq.s32.totalorder %v895, 1
        %vm928 = vcmp.eq.s32.totalorder %v896, 1
        %vm929 = vcmp.eq.s32.totalorder %v897, 1
        %vm930 = vcmp.eq.s32.totalorder %v898, 1
        %vm931 = vcmp.eq.s32.totalorder %v899, 1
        %vm932 = vcmp.eq.s32.totalorder %v900, 1
        %vm933 = vcmp.eq.s32.totalorder %v901, 1
        %vm934 = vcmp.eq.s32.totalorder %v902, 1
        %vm935 = vcmp.eq.s32.totalorder %v903, 1
        %vm936 = vcmp.eq.s32.totalorder %v904, 1
        %vm937 = vcmp.eq.s32.totalorder %v905, 1
        %vm938 = vcmp.eq.s32.totalorder %v906, 1
        %vm939 = vcmp.eq.s32.totalorder %v907, 1
        %vm940 = vcmp.eq.s32.totalorder %v908, 1
        %vm941 = vcmp.eq.s32.totalorder %v909, 1
        %vm942 = vcmp.eq.s32.totalorder %v910, 1
        %vm943 = vcmp.eq.s32.totalorder %v911, 1
        %vm944 = vcmp.eq.s32.totalorder %v912, 1
        %vm945 = vcmp.eq.s32.totalorder %v913, 1
        %vm946 = vcmp.eq.s32.totalorder %v914, 1
        %vm947 = vcmp.eq.s32.totalorder %v915, 1
        %vm948 = vcmp.eq.s32.totalorder %v916, 1
        %vm949 = vcmp.eq.s32.totalorder %v917, 1
        %vm950 = vcmp.eq.s32.totalorder %v918, 1
        %vm951 = vcmp.eq.s32.totalorder %v919, 1
        %vm952 = vcmp.eq.s32.totalorder %v920, 1
        %vm953 = vcmp.eq.s32.totalorder %v921, 1
        %vm954 = vcmp.eq.s32.totalorder %v922, 1
        %vm955 = vcmp.eq.s32.totalorder %v923, 1
        %vm956 = vcmp.eq.s32.totalorder %v924, 1
        %vm988 = vcmask 1040384
        %v989 = vrot.slane 0.0, 7
        %v990 = vsel %vm988, %v989, %v989
        %v991 = vrot.slane %v380, 7
        %v992 = vsel %vm988, %v989, %v991
        %v993 = vrot.slane %v381, 7
        %v994 = vsel %vm988, %v991, %v993
        %v995 = vrot.slane %v382, 7
        %v996 = vsel %vm988, %v993, %v995
        %v997 = vrot.slane %v383, 7
        %v998 = vsel %vm988, %v995, %v997
        %v999 = vrot.slane %v384, 7
        %v1000 = vsel %vm988, %v997, %v999
        %v1001 = vrot.slane %v385, 7
        %v1002 = vsel %vm988, %v999, %v1001
        %v1003 = vrot.slane %v386, 7
        %v1004 = vsel %vm988, %v1001, %v1003
        %v1005 = vrot.slane %v387, 7
        %v1006 = vsel %vm988, %v1003, %v1005
        %v1007 = vrot.slane %v388, 7
        %v1008 = vsel %vm988, %v1005, %v1007
        %v1009 = vrot.slane %v389, 7
        %v1010 = vsel %vm988, %v1007, %v1009
        %v1011 = vrot.slane %v390, 7
        %v1012 = vsel %vm988, %v1009, %v1011
        %v1013 = vrot.slane %v391, 7
        %v1014 = vsel %vm988, %v1011, %v1013
        %v1015 = vrot.slane %v392, 7
        %v1016 = vsel %vm988, %v1013, %v1015
        %v1017 = vrot.slane %v393, 7
        %v1018 = vsel %vm988, %v1015, %v1017
        %v1019 = vrot.slane %v394, 7
        %v1020 = vsel %vm988, %v1017, %v1019
        %v1021 = vrot.slane %v395, 7
        %v1022 = vsel %vm988, %v1019, %v1021
        %v1023 = vrot.slane %v396, 7
        %v1024 = vsel %vm988, %v1021, %v1023
        %v1025 = vrot.slane %v397, 7
        %v1026 = vsel %vm988, %v1023, %v1025
        %v1027 = vrot.slane %v398, 7
        %v1028 = vsel %vm988, %v1025, %v1027
        %v1029 = vrot.slane %v399, 7
        %v1030 = vsel %vm988, %v1027, %v1029
        %v1031 = vrot.slane %v400, 7
        %v1032 = vsel %vm988, %v1029, %v1031
        %v1033 = vrot.slane %v401, 7
        %v1034 = vsel %vm988, %v1031, %v1033
        %v1035 = vrot.slane %v402, 7
        %v1036 = vsel %vm988, %v1033, %v1035
        %v1037 = vrot.slane %v403, 7
        %v1038 = vsel %vm988, %v1035, %v1037
        %v1039 = vrot.slane %v404, 7
        %v1040 = vsel %vm988, %v1037, %v1039
        %v1041 = vrot.slane %v405, 7
        %v1042 = vsel %vm988, %v1039, %v1041
        %v1043 = vrot.slane %v406, 7
        %v1044 = vsel %vm988, %v1041, %v1043
        %v1045 = vrot.slane %v407, 7
        %v1046 = vsel %vm988, %v1043, %v1045
        %v1047 = vrot.slane %v408, 7
        %v1048 = vsel %vm988, %v1045, %v1047
        %v1049 = vrot.slane %v409, 7
        %v1050 = vsel %vm988, %v1047, %v1049
        %v1082 = vsel %vm925, %v990, 0.0
        %v1083 = vsel %vm926, %v990, 0.0
        %v1084 = vsel %vm927, %v992, 0.0
        %v1085 = vsel %vm928, %v994, 0.0
        %v1086 = vsel %vm929, %v996, 0.0
        %v1087 = vsel %vm930, %v998, 0.0
        %v1088 = vsel %vm931, %v1000, 0.0
        %v1089 = vsel %vm932, %v1002, 0.0
        %v1090 = vsel %vm933, %v1004, 0.0
        %v1091 = vsel %vm934, %v1006, 0.0
        %v1092 = vsel %vm935, %v1008, 0.0
        %v1093 = vsel %vm936, %v1010, 0.0
        %v1094 = vsel %vm937, %v1012, 0.0
        %v1095 = vsel %vm938, %v1014, 0.0
        %v1096 = vsel %vm939, %v1016, 0.0
        %v1097 = vsel %vm940, %v1018, 0.0
        %v1098 = vsel %vm941, %v1020, 0.0
        %v1099 = vsel %vm942, %v1022, 0.0
        %v1100 = vsel %vm943, %v1024, 0.0
        %v1101 = vsel %vm944, %v1026, 0.0
        %v1102 = vsel %vm945, %v1028, 0.0
        %v1103 = vsel %vm946, %v1030, 0.0
        %v1104 = vsel %vm947, %v1032, 0.0
        %v1105 = vsel %vm948, %v1034, 0.0
        %v1106 = vsel %vm949, %v1036, 0.0
        %v1107 = vsel %vm950, %v1038, 0.0
        %v1108 = vsel %vm951, %v1040, 0.0
        %v1109 = vsel %vm952, %v1042, 0.0
        %v1110 = vsel %vm953, %v1044, 0.0
        %v1111 = vsel %vm954, %v1046, 0.0
        %v1112 = vsel %vm955, %v1048, 0.0
        %v1113 = vsel %vm956, %v1050, 0.0
        %v1114 = vld [vmem:[#allocation2] sm:$0xf]
        %s1115 = scalar_lea.vmem [#allocation2], 4
        %v1116 = vld [vmem:[%s1115] sm:$0xf]
        %vm1117 = vcmask 31744
        %v1118 = vsel %vm1117, 0.0, 0
        %v1120 = vsel %vm1117, %v380, 0
        %v1122 = vsel %vm1117, %v381, 0
        %v1124 = vsel %vm1117, %v382, 0
        %v1126 = vsel %vm1117, %v383, 0
        %v1128 = vsel %vm1117, %v384, 0
        %v1130 = vsel %vm1117, %v385, 0
        %v1132 = vsel %vm1117, %v386, 0
        %v1134 = vsel %vm1117, %v387, 0
        %v1136 = vsel %vm1117, %v388, 0
        %v1138 = vsel %vm1117, %v389, 0
        %v1140 = vsel %vm1117, %v390, 0
        %v1142 = vsel %vm1117, %v391, 0
        %v1144 = vsel %vm1117, %v392, 0
        %v1146 = vsel %vm1117, %v393, 0
        %v1148 = vsel %vm1117, %v394, 0
        %v1150 = vsel %vm1117, %v395, 0
        %v1152 = vsel %vm1117, %v396, 0
        %v1154 = vsel %vm1117, %v397, 0
        %v1156 = vsel %vm1117, %v398, 0
        %v1158 = vsel %vm1117, %v399, 0
        %v1160 = vsel %vm1117, %v400, 0
        %v1162 = vsel %vm1117, %v401, 0
        %v1164 = vsel %vm1117, %v402, 0
        %v1166 = vsel %vm1117, %v403, 0
        %v1168 = vsel %vm1117, %v404, 0
        %v1170 = vsel %vm1117, %v405, 0
        %v1172 = vsel %vm1117, %v406, 0
        %v1174 = vsel %vm1117, %v407, 0
        %v1176 = vsel %vm1117, %v408, 0
        %v1178 = vsel %vm1117, %v409, 0
        %vm1180 = vcmask 1043456
        %v1182 = vsel %vm1180, %v1116, 0
        %1184 = vmatpush.msra.mxu0 0.0
        %1185 = vmatpush.msra.mxu0 0.0
        %1186 = vmatpush.msra.mxu0 0.0
        %1187 = vmatpush.msra.mxu0 0.0
        %1188 = vmatpush.msra.mxu0 0.0
        %1189 = vmatpush.msra.mxu0 0.0
        %1190 = vmatpush.msra.mxu0 0.0
        %1191 = vmatpush.msra.mxu0 0.0
        %1192 = vmatpush.msra.mxu0 0.0
        %1193 = vmatpush.msra.mxu0 0.0
        %1194 = vmatpush.msra.mxu0 0.0
        %1195 = vmatpush.msra.mxu0 0.0
        %1196 = vmatpush.msra.mxu0 0.0
        %1197 = vmatpush.msra.mxu0 0.0
        %1198 = vmatpush.msra.mxu0 0.0
        %1199 = vmatpush.msra.mxu0 %v1182
        %1200 = vmatmul.f32.gmra.mxu0 %v1118
        %v1201 = vpop.f32.mrf.mxu0
        %v1202 = vadd.f32 0.0, %v1201
        %1203 = vmatmul.f32.gmra.mxu0 %v1118
        %v1204 = vpop.f32.mrf.mxu0
        %v1205 = vadd.f32 0.0, %v1204
        %1206 = vmatmul.f32.gmra.mxu0 %v1120
        %v1207 = vpop.f32.mrf.mxu0
        %v1208 = vadd.f32 0.0, %v1207
        %1209 = vmatmul.f32.gmra.mxu0 %v1122
        %v1210 = vpop.f32.mrf.mxu0
        %v1211 = vadd.f32 0.0, %v1210
        %1212 = vmatmul.f32.gmra.mxu0 %v1124
        %v1213 = vpop.f32.mrf.mxu0
        %v1214 = vadd.f32 0.0, %v1213
        %1215 = vmatmul.f32.gmra.mxu0 %v1126
        %v1216 = vpop.f32.mrf.mxu0
        %v1217 = vadd.f32 0.0, %v1216
        %1218 = vmatmul.f32.gmra.mxu0 %v1128
        %v1219 = vpop.f32.mrf.mxu0
        %v1220 = vadd.f32 0.0, %v1219
        %1221 = vmatmul.f32.gmra.mxu0 %v1130
        %v1222 = vpop.f32.mrf.mxu0
        %v1223 = vadd.f32 0.0, %v1222
        %1224 = vmatmul.f32.gmra.mxu0 %v1132
        %v1225 = vpop.f32.mrf.mxu0
        %v1226 = vadd.f32 0.0, %v1225
        %1227 = vmatmul.f32.gmra.mxu0 %v1134
        %v1228 = vpop.f32.mrf.mxu0
        %v1229 = vadd.f32 0.0, %v1228
        %1230 = vmatmul.f32.gmra.mxu0 %v1136
        %v1231 = vpop.f32.mrf.mxu0
        %v1232 = vadd.f32 0.0, %v1231
        %1233 = vmatmul.f32.gmra.mxu0 %v1138
        %v1234 = vpop.f32.mrf.mxu0
        %v1235 = vadd.f32 0.0, %v1234
        %1236 = vmatmul.f32.gmra.mxu0 %v1140
        %v1237 = vpop.f32.mrf.mxu0
        %v1238 = vadd.f32 0.0, %v1237
        %1239 = vmatmul.f32.gmra.mxu0 %v1142
        %v1240 = vpop.f32.mrf.mxu0
        %v1241 = vadd.f32 0.0, %v1240
        %1242 = vmatmul.f32.gmra.mxu0 %v1144
        %v1243 = vpop.f32.mrf.mxu0
        %v1244 = vadd.f32 0.0, %v1243
        %1245 = vmatmul.f32.gmra.mxu0 %v1146
        %v1246 = vpop.f32.mrf.mxu0
        %v1247 = vadd.f32 0.0, %v1246
        %1248 = vmatmul.f32.gmra.mxu0 %v1148
        %v1249 = vpop.f32.mrf.mxu0
        %v1250 = vadd.f32 0.0, %v1249
        %1251 = vmatmul.f32.gmra.mxu0 %v1150
        %v1252 = vpop.f32.mrf.mxu0
        %v1253 = vadd.f32 0.0, %v1252
        %1254 = vmatmul.f32.gmra.mxu0 %v1152
        %v1255 = vpop.f32.mrf.mxu0
        %v1256 = vadd.f32 0.0, %v1255
        %1257 = vmatmul.f32.gmra.mxu0 %v1154
        %v1258 = vpop.f32.mrf.mxu0
        %v1259 = vadd.f32 0.0, %v1258
        %1260 = vmatmul.f32.gmra.mxu0 %v1156
        %v1261 = vpop.f32.mrf.mxu0
        %v1262 = vadd.f32 0.0, %v1261
        %1263 = vmatmul.f32.gmra.mxu0 %v1158
        %v1264 = vpop.f32.mrf.mxu0
        %v1265 = vadd.f32 0.0, %v1264
        %1266 = vmatmul.f32.gmra.mxu0 %v1160
        %v1267 = vpop.f32.mrf.mxu0
        %v1268 = vadd.f32 0.0, %v1267
        %1269 = vmatmul.f32.gmra.mxu0 %v1162
        %v1270 = vpop.f32.mrf.mxu0
        %v1271 = vadd.f32 0.0, %v1270
        %1272 = vmatmul.f32.gmra.mxu0 %v1164
        %v1273 = vpop.f32.mrf.mxu0
        %v1274 = vadd.f32 0.0, %v1273
        %1275 = vmatmul.f32.gmra.mxu0 %v1166
        %v1276 = vpop.f32.mrf.mxu0
        %v1277 = vadd.f32 0.0, %v1276
        %1278 = vmatmul.f32.gmra.mxu0 %v1168
        %v1279 = vpop.f32.mrf.mxu0
        %v1280 = vadd.f32 0.0, %v1279
        %1281 = vmatmul.f32.gmra.mxu0 %v1170
        %v1282 = vpop.f32.mrf.mxu0
        %v1283 = vadd.f32 0.0, %v1282
        %1284 = vmatmul.f32.gmra.mxu0 %v1172
        %v1285 = vpop.f32.mrf.mxu0
        %v1286 = vadd.f32 0.0, %v1285
        %1287 = vmatmul.f32.gmra.mxu0 %v1174
        %v1288 = vpop.f32.mrf.mxu0
        %v1289 = vadd.f32 0.0, %v1288
        %1290 = vmatmul.f32.gmra.mxu0 %v1176
        %v1291 = vpop.f32.mrf.mxu0
        %v1292 = vadd.f32 0.0, %v1291
        %1293 = vmatmul.f32.gmra.mxu0 %v1178
        %v1294 = vpop.f32.mrf.mxu0
        %v1295 = vadd.f32 0.0, %v1294
        %1296 = vdwg.mxu0
        %v1298 = vsel %vm1117, %v1082, 0
        %v1301 = vsel %vm1117, %v1083, 0
        %v1304 = vsel %vm1117, %v1084, 0
        %v1307 = vsel %vm1117, %v1085, 0
        %v1310 = vsel %vm1117, %v1086, 0
        %v1313 = vsel %vm1117, %v1087, 0
        %v1316 = vsel %vm1117, %v1088, 0
        %v1319 = vsel %vm1117, %v1089, 0
        %v1322 = vsel %vm1117, %v1090, 0
        %v1325 = vsel %vm1117, %v1091, 0
        %v1328 = vsel %vm1117, %v1092, 0
        %v1331 = vsel %vm1117, %v1093, 0
        %v1334 = vsel %vm1117, %v1094, 0
        %v1337 = vsel %vm1117, %v1095, 0
        %v1340 = vsel %vm1117, %v1096, 0
        %v1343 = vsel %vm1117, %v1097, 0
        %v1346 = vsel %vm1117, %v1098, 0
        %v1349 = vsel %vm1117, %v1099, 0
        %v1352 = vsel %vm1117, %v1100, 0
        %v1355 = vsel %vm1117, %v1101, 0
        %v1358 = vsel %vm1117, %v1102, 0
        %v1361 = vsel %vm1117, %v1103, 0
        %v1364 = vsel %vm1117, %v1104, 0
        %v1367 = vsel %vm1117, %v1105, 0
        %v1370 = vsel %vm1117, %v1106, 0
        %v1373 = vsel %vm1117, %v1107, 0
        %v1376 = vsel %vm1117, %v1108, 0
        %v1379 = vsel %vm1117, %v1109, 0
        %v1382 = vsel %vm1117, %v1110, 0
        %v1385 = vsel %vm1117, %v1111, 0
        %v1388 = vsel %vm1117, %v1112, 0
        %v1391 = vsel %vm1117, %v1113, 0
        %v1394 = vsel %vm1180, %v1114, 0
        %1396 = vmatpush.msra.mxu0 0.0
        %1397 = vmatpush.msra.mxu0 0.0
        %1398 = vmatpush.msra.mxu0 0.0
        %1399 = vmatpush.msra.mxu0 0.0
        %1400 = vmatpush.msra.mxu0 0.0
        %1401 = vmatpush.msra.mxu0 0.0
        %1402 = vmatpush.msra.mxu0 0.0
        %1403 = vmatpush.msra.mxu0 0.0
        %1404 = vmatpush.msra.mxu0 0.0
        %1405 = vmatpush.msra.mxu0 0.0
        %1406 = vmatpush.msra.mxu0 0.0
        %1407 = vmatpush.msra.mxu0 0.0
        %1408 = vmatpush.msra.mxu0 0.0
        %1409 = vmatpush.msra.mxu0 0.0
        %1410 = vmatpush.msra.mxu0 0.0
        %1411 = vmatpush.msra.mxu0 %v1394
        %1412 = vmatmul.f32.gmra.mxu0 %v1298
        %v1413 = vpop.f32.mrf.mxu0
        %v1414 = vadd.f32 %v1202, %v1413
        %1415 = vmatmul.f32.gmra.mxu0 %v1301
        %v1416 = vpop.f32.mrf.mxu0
        %v1417 = vadd.f32 %v1205, %v1416
        %1418 = vmatmul.f32.gmra.mxu0 %v1304
        %v1419 = vpop.f32.mrf.mxu0
        %v1420 = vadd.f32 %v1208, %v1419
        %1421 = vmatmul.f32.gmra.mxu0 %v1307
        %v1422 = vpop.f32.mrf.mxu0
        %v1423 = vadd.f32 %v1211, %v1422
        %1424 = vmatmul.f32.gmra.mxu0 %v1310
        %v1425 = vpop.f32.mrf.mxu0
        %v1426 = vadd.f32 %v1214, %v1425
        %1427 = vmatmul.f32.gmra.mxu0 %v1313
        %v1428 = vpop.f32.mrf.mxu0
        %v1429 = vadd.f32 %v1217, %v1428
        %1430 = vmatmul.f32.gmra.mxu0 %v1316
        %v1431 = vpop.f32.mrf.mxu0
        %v1432 = vadd.f32 %v1220, %v1431
        %1433 = vmatmul.f32.gmra.mxu0 %v1319
        %v1434 = vpop.f32.mrf.mxu0
        %v1435 = vadd.f32 %v1223, %v1434
        %1436 = vmatmul.f32.gmra.mxu0 %v1322
        %v1437 = vpop.f32.mrf.mxu0
        %v1438 = vadd.f32 %v1226, %v1437
        %1439 = vmatmul.f32.gmra.mxu0 %v1325
        %v1440 = vpop.f32.mrf.mxu0
        %v1441 = vadd.f32 %v1229, %v1440
        %1442 = vmatmul.f32.gmra.mxu0 %v1328
        %v1443 = vpop.f32.mrf.mxu0
        %v1444 = vadd.f32 %v1232, %v1443
        %1445 = vmatmul.f32.gmra.mxu0 %v1331
        %v1446 = vpop.f32.mrf.mxu0
        %v1447 = vadd.f32 %v1235, %v1446
        %1448 = vmatmul.f32.gmra.mxu0 %v1334
        %v1449 = vpop.f32.mrf.mxu0
        %v1450 = vadd.f32 %v1238, %v1449
        %1451 = vmatmul.f32.gmra.mxu0 %v1337
        %v1452 = vpop.f32.mrf.mxu0
        %v1453 = vadd.f32 %v1241, %v1452
        %1454 = vmatmul.f32.gmra.mxu0 %v1340
        %v1455 = vpop.f32.mrf.mxu0
        %v1456 = vadd.f32 %v1244, %v1455
        %1457 = vmatmul.f32.gmra.mxu0 %v1343
        %v1458 = vpop.f32.mrf.mxu0
        %v1459 = vadd.f32 %v1247, %v1458
        %1460 = vmatmul.f32.gmra.mxu0 %v1346
        %v1461 = vpop.f32.mrf.mxu0
        %v1462 = vadd.f32 %v1250, %v1461
        %1463 = vmatmul.f32.gmra.mxu0 %v1349
        %v1464 = vpop.f32.mrf.mxu0
        %v1465 = vadd.f32 %v1253, %v1464
        %1466 = vmatmul.f32.gmra.mxu0 %v1352
        %v1467 = vpop.f32.mrf.mxu0
        %v1468 = vadd.f32 %v1256, %v1467
        %1469 = vmatmul.f32.gmra.mxu0 %v1355
        %v1470 = vpop.f32.mrf.mxu0
        %v1471 = vadd.f32 %v1259, %v1470
        %1472 = vmatmul.f32.gmra.mxu0 %v1358
        %v1473 = vpop.f32.mrf.mxu0
        %v1474 = vadd.f32 %v1262, %v1473
        %1475 = vmatmul.f32.gmra.mxu0 %v1361
        %v1476 = vpop.f32.mrf.mxu0
        %v1477 = vadd.f32 %v1265, %v1476
        %1478 = vmatmul.f32.gmra.mxu0 %v1364
        %v1479 = vpop.f32.mrf.mxu0
        %v1480 = vadd.f32 %v1268, %v1479
        %1481 = vmatmul.f32.gmra.mxu0 %v1367
        %v1482 = vpop.f32.mrf.mxu0
        %v1483 = vadd.f32 %v1271, %v1482
        %1484 = vmatmul.f32.gmra.mxu0 %v1370
        %v1485 = vpop.f32.mrf.mxu0
        %v1486 = vadd.f32 %v1274, %v1485
        %1487 = vmatmul.f32.gmra.mxu0 %v1373
        %v1488 = vpop.f32.mrf.mxu0
        %v1489 = vadd.f32 %v1277, %v1488
        %1490 = vmatmul.f32.gmra.mxu0 %v1376
        %v1491 = vpop.f32.mrf.mxu0
        %v1492 = vadd.f32 %v1280, %v1491
        %1493 = vmatmul.f32.gmra.mxu0 %v1379
        %v1494 = vpop.f32.mrf.mxu0
        %v1495 = vadd.f32 %v1283, %v1494
        %1496 = vmatmul.f32.gmra.mxu0 %v1382
        %v1497 = vpop.f32.mrf.mxu0
        %v1498 = vadd.f32 %v1286, %v1497
        %1499 = vmatmul.f32.gmra.mxu0 %v1385
        %v1500 = vpop.f32.mrf.mxu0
        %v1501 = vadd.f32 %v1289, %v1500
        %1502 = vmatmul.f32.gmra.mxu0 %v1388
        %v1503 = vpop.f32.mrf.mxu0
        %v1504 = vadd.f32 %v1292, %v1503
        %1505 = vmatmul.f32.gmra.mxu0 %v1391
        %v1506 = vpop.f32.mrf.mxu0
        %v1507 = vadd.f32 %v1295, %v1506
        %1508 = vdwg.mxu0
        %v1509 = vsel %vm861, 1, 0
        %v1510 = vsel %vm862, 1, 0
        %v1511 = vsel %vm863, 1, 0
        %v1512 = vsel %vm864, 1, 0
        %v1513 = vsel %vm865, 1, 0
        %v1514 = vsel %vm866, 1, 0
        %v1515 = vsel %vm867, 1, 0
        %v1516 = vsel %vm868, 1, 0
        %v1517 = vsel %vm869, 1, 0
        %v1518 = vsel %vm870, 1, 0
        %v1519 = vsel %vm871, 1, 0
        %v1520 = vsel %vm872, 1, 0
        %v1521 = vsel %vm873, 1, 0
        %v1522 = vsel %vm874, 1, 0
        %v1523 = vsel %vm875, 1, 0
        %v1524 = vsel %vm876, 1, 0
        %v1525 = vsel %vm877, 1, 0
        %v1526 = vsel %vm878, 1, 0
        %v1527 = vsel %vm879, 1, 0
        %v1528 = vsel %vm880, 1, 0
        %v1529 = vsel %vm881, 1, 0
        %v1530 = vsel %vm882, 1, 0
        %v1531 = vsel %vm883, 1, 0
        %v1532 = vsel %vm884, 1, 0
        %v1533 = vsel %vm885, 1, 0
        %v1534 = vsel %vm886, 1, 0
        %v1535 = vsel %vm887, 1, 0
        %v1536 = vsel %vm888, 1, 0
        %v1537 = vsel %vm889, 1, 0
        %v1538 = vsel %vm890, 1, 0
        %v1539 = vsel %vm891, 1, 0
        %v1540 = vsel %vm892, 1, 0
        %vm1541 = vcmp.eq.s32.totalorder %v1509, 1
        %vm1542 = vcmp.eq.s32.totalorder %v1510, 1
        %vm1543 = vcmp.eq.s32.totalorder %v1511, 1
        %vm1544 = vcmp.eq.s32.totalorder %v1512, 1
        %vm1545 = vcmp.eq.s32.totalorder %v1513, 1
        %vm1546 = vcmp.eq.s32.totalorder %v1514, 1
        %vm1547 = vcmp.eq.s32.totalorder %v1515, 1
        %vm1548 = vcmp.eq.s32.totalorder %v1516, 1
        %vm1549 = vcmp.eq.s32.totalorder %v1517, 1
        %vm1550 = vcmp.eq.s32.totalorder %v1518, 1
        %vm1551 = vcmp.eq.s32.totalorder %v1519, 1
        %vm1552 = vcmp.eq.s32.totalorder %v1520, 1
        %vm1553 = vcmp.eq.s32.totalorder %v1521, 1
        %vm1554 = vcmp.eq.s32.totalorder %v1522, 1
        %vm1555 = vcmp.eq.s32.totalorder %v1523, 1
        %vm1556 = vcmp.eq.s32.totalorder %v1524, 1
        %vm1557 = vcmp.eq.s32.totalorder %v1525, 1
        %vm1558 = vcmp.eq.s32.totalorder %v1526, 1
        %vm1559 = vcmp.eq.s32.totalorder %v1527, 1
        %vm1560 = vcmp.eq.s32.totalorder %v1528, 1
        %vm1561 = vcmp.eq.s32.totalorder %v1529, 1
        %vm1562 = vcmp.eq.s32.totalorder %v1530, 1
        %vm1563 = vcmp.eq.s32.totalorder %v1531, 1
        %vm1564 = vcmp.eq.s32.totalorder %v1532, 1
        %vm1565 = vcmp.eq.s32.totalorder %v1533, 1
        %vm1566 = vcmp.eq.s32.totalorder %v1534, 1
        %vm1567 = vcmp.eq.s32.totalorder %v1535, 1
        %vm1568 = vcmp.eq.s32.totalorder %v1536, 1
        %vm1569 = vcmp.eq.s32.totalorder %v1537, 1
        %vm1570 = vcmp.eq.s32.totalorder %v1538, 1
        %vm1571 = vcmp.eq.s32.totalorder %v1539, 1
        %vm1572 = vcmp.eq.s32.totalorder %v1540, 1
        %vm1574 = vcmask 1046528
        %v1575 = vrot.slane 0.0, 1
        %v1576 = vsel %vm1574, %v1575, %v1575
        %v1577 = vrot.slane %v380, 1
        %v1578 = vsel %vm1574, %v1575, %v1577
        %v1579 = vrot.slane %v381, 1
        %v1580 = vsel %vm1574, %v1577, %v1579
        %v1581 = vrot.slane %v382, 1
        %v1582 = vsel %vm1574, %v1579, %v1581
        %v1583 = vrot.slane %v383, 1
        %v1584 = vsel %vm1574, %v1581, %v1583
        %v1585 = vrot.slane %v384, 1
        %v1586 = vsel %vm1574, %v1583, %v1585
        %v1587 = vrot.slane %v385, 1
        %v1588 = vsel %vm1574, %v1585, %v1587
        %v1589 = vrot.slane %v386, 1
        %v1590 = vsel %vm1574, %v1587, %v1589
        %v1591 = vrot.slane %v387, 1
        %v1592 = vsel %vm1574, %v1589, %v1591
        %v1593 = vrot.slane %v388, 1
        %v1594 = vsel %vm1574, %v1591, %v1593
        %v1595 = vrot.slane %v389, 1
        %v1596 = vsel %vm1574, %v1593, %v1595
        %v1597 = vrot.slane %v390, 1
        %v1598 = vsel %vm1574, %v1595, %v1597
        %v1599 = vrot.slane %v391, 1
        %v1600 = vsel %vm1574, %v1597, %v1599
        %v1601 = vrot.slane %v392, 1
        %v1602 = vsel %vm1574, %v1599, %v1601
        %v1603 = vrot.slane %v393, 1
        %v1604 = vsel %vm1574, %v1601, %v1603
        %v1605 = vrot.slane %v394, 1
        %v1606 = vsel %vm1574, %v1603, %v1605
        %v1607 = vrot.slane %v395, 1
        %v1608 = vsel %vm1574, %v1605, %v1607
        %v1609 = vrot.slane %v396, 1
        %v1610 = vsel %vm1574, %v1607, %v1609
        %v1611 = vrot.slane %v397, 1
        %v1612 = vsel %vm1574, %v1609, %v1611
        %v1613 = vrot.slane %v398, 1
        %v1614 = vsel %vm1574, %v1611, %v1613
        %v1615 = vrot.slane %v399, 1
        %v1616 = vsel %vm1574, %v1613, %v1615
        %v1617 = vrot.slane %v400, 1
        %v1618 = vsel %vm1574, %v1615, %v1617
        %v1619 = vrot.slane %v401, 1
        %v1620 = vsel %vm1574, %v1617, %v1619
        %v1621 = vrot.slane %v402, 1
        %v1622 = vsel %vm1574, %v1619, %v1621
        %v1623 = vrot.slane %v403, 1
        %v1624 = vsel %vm1574, %v1621, %v1623
        %v1625 = vrot.slane %v404, 1
        %v1626 = vsel %vm1574, %v1623, %v1625
        %v1627 = vrot.slane %v405, 1
        %v1628 = vsel %vm1574, %v1625, %v1627
        %v1629 = vrot.slane %v406, 1
        %v1630 = vsel %vm1574, %v1627, %v1629
        %v1631 = vrot.slane %v407, 1
        %v1632 = vsel %vm1574, %v1629, %v1631
        %v1633 = vrot.slane %v408, 1
        %v1634 = vsel %vm1574, %v1631, %v1633
        %v1635 = vrot.slane %v409, 1
        %v1636 = vsel %vm1574, %v1633, %v1635
        %v1637 = vrot.slane %v410, 1
        %v1638 = vsel %vm1574, %v1635, %v1637
        %v1671 = vsel %vm1541, %v1576, 0.0
        %v1672 = vsel %vm1542, %v1578, 0.0
        %v1673 = vsel %vm1543, %v1580, 0.0
        %v1674 = vsel %vm1544, %v1582, 0.0
        %v1675 = vsel %vm1545, %v1584, 0.0
        %v1676 = vsel %vm1546, %v1586, 0.0
        %v1677 = vsel %vm1547, %v1588, 0.0
        %v1678 = vsel %vm1548, %v1590, 0.0
        %v1679 = vsel %vm1549, %v1592, 0.0
        %v1680 = vsel %vm1550, %v1594, 0.0
        %v1681 = vsel %vm1551, %v1596, 0.0
        %v1682 = vsel %vm1552, %v1598, 0.0
        %v1683 = vsel %vm1553, %v1600, 0.0
        %v1684 = vsel %vm1554, %v1602, 0.0
        %v1685 = vsel %vm1555, %v1604, 0.0
        %v1686 = vsel %vm1556, %v1606, 0.0
        %v1687 = vsel %vm1557, %v1608, 0.0
        %v1688 = vsel %vm1558, %v1610, 0.0
        %v1689 = vsel %vm1559, %v1612, 0.0
        %v1690 = vsel %vm1560, %v1614, 0.0
        %v1691 = vsel %vm1561, %v1616, 0.0
        %v1692 = vsel %vm1562, %v1618, 0.0
        %v1693 = vsel %vm1563, %v1620, 0.0
        %v1694 = vsel %vm1564, %v1622, 0.0
        %v1695 = vsel %vm1565, %v1624, 0.0
        %v1696 = vsel %vm1566, %v1626, 0.0
        %v1697 = vsel %vm1567, %v1628, 0.0
        %v1698 = vsel %vm1568, %v1630, 0.0
        %v1699 = vsel %vm1569, %v1632, 0.0
        %v1700 = vsel %vm1570, %v1634, 0.0
        %v1701 = vsel %vm1571, %v1636, 0.0
        %v1702 = vsel %vm1572, %v1638, 0.0
        %s1703 = scalar_lea.vmem [#allocation2], 8
        %v1704 = vld [vmem:[%s1703] sm:$0xf]
        %v1706 = vsel %vm1117, %v1671, 0
        %v1709 = vsel %vm1117, %v1672, 0
        %v1712 = vsel %vm1117, %v1673, 0
        %v1715 = vsel %vm1117, %v1674, 0
        %v1718 = vsel %vm1117, %v1675, 0
        %v1721 = vsel %vm1117, %v1676, 0
        %v1724 = vsel %vm1117, %v1677, 0
        %v1727 = vsel %vm1117, %v1678, 0
        %v1730 = vsel %vm1117, %v1679, 0
        %v1733 = vsel %vm1117, %v1680, 0
        %v1736 = vsel %vm1117, %v1681, 0
        %v1739 = vsel %vm1117, %v1682, 0
        %v1742 = vsel %vm1117, %v1683, 0
        %v1745 = vsel %vm1117, %v1684, 0
        %v1748 = vsel %vm1117, %v1685, 0
        %v1751 = vsel %vm1117, %v1686, 0
        %v1754 = vsel %vm1117, %v1687, 0
        %v1757 = vsel %vm1117, %v1688, 0
        %v1760 = vsel %vm1117, %v1689, 0
        %v1763 = vsel %vm1117, %v1690, 0
        %v1766 = vsel %vm1117, %v1691, 0
        %v1769 = vsel %vm1117, %v1692, 0
        %v1772 = vsel %vm1117, %v1693, 0
        %v1775 = vsel %vm1117, %v1694, 0
        %v1778 = vsel %vm1117, %v1695, 0
        %v1781 = vsel %vm1117, %v1696, 0
        %v1784 = vsel %vm1117, %v1697, 0
        %v1787 = vsel %vm1117, %v1698, 0
        %v1790 = vsel %vm1117, %v1699, 0
        %v1793 = vsel %vm1117, %v1700, 0
        %v1796 = vsel %vm1117, %v1701, 0
        %v1799 = vsel %vm1117, %v1702, 0
        %v1802 = vsel %vm1180, %v1704, 0
        %1804 = vmatpush.msra.mxu0 0.0
        %1805 = vmatpush.msra.mxu0 0.0
        %1806 = vmatpush.msra.mxu0 0.0
        %1807 = vmatpush.msra.mxu0 0.0
        %1808 = vmatpush.msra.mxu0 0.0
        %1809 = vmatpush.msra.mxu0 0.0
        %1810 = vmatpush.msra.mxu0 0.0
        %1811 = vmatpush.msra.mxu0 0.0
        %1812 = vmatpush.msra.mxu0 0.0
        %1813 = vmatpush.msra.mxu0 0.0
        %1814 = vmatpush.msra.mxu0 0.0
        %1815 = vmatpush.msra.mxu0 0.0
        %1816 = vmatpush.msra.mxu0 0.0
        %1817 = vmatpush.msra.mxu0 0.0
        %1818 = vmatpush.msra.mxu0 0.0
        %1819 = vmatpush.msra.mxu0 %v1802
        %1820 = vmatmul.f32.gmra.mxu0 %v1706
        %v1821 = vpop.f32.mrf.mxu0
        %v1822 = vadd.f32 0.0, %v1821
        %1823 = vmatmul.f32.gmra.mxu0 %v1709
        %v1824 = vpop.f32.mrf.mxu0
        %v1825 = vadd.f32 0.0, %v1824
        %1826 = vmatmul.f32.gmra.mxu0 %v1712
        %v1827 = vpop.f32.mrf.mxu0
        %v1828 = vadd.f32 0.0, %v1827
        %1829 = vmatmul.f32.gmra.mxu0 %v1715
        %v1830 = vpop.f32.mrf.mxu0
        %v1831 = vadd.f32 0.0, %v1830
        %1832 = vmatmul.f32.gmra.mxu0 %v1718
        %v1833 = vpop.f32.mrf.mxu0
        %v1834 = vadd.f32 0.0, %v1833
        %1835 = vmatmul.f32.gmra.mxu0 %v1721
        %v1836 = vpop.f32.mrf.mxu0
        %v1837 = vadd.f32 0.0, %v1836
        %1838 = vmatmul.f32.gmra.mxu0 %v1724
        %v1839 = vpop.f32.mrf.mxu0
        %v1840 = vadd.f32 0.0, %v1839
        %1841 = vmatmul.f32.gmra.mxu0 %v1727
        %v1842 = vpop.f32.mrf.mxu0
        %v1843 = vadd.f32 0.0, %v1842
        %1844 = vmatmul.f32.gmra.mxu0 %v1730
        %v1845 = vpop.f32.mrf.mxu0
        %v1846 = vadd.f32 0.0, %v1845
        %1847 = vmatmul.f32.gmra.mxu0 %v1733
        %v1848 = vpop.f32.mrf.mxu0
        %v1849 = vadd.f32 0.0, %v1848
        %1850 = vmatmul.f32.gmra.mxu0 %v1736
        %v1851 = vpop.f32.mrf.mxu0
        %v1852 = vadd.f32 0.0, %v1851
        %1853 = vmatmul.f32.gmra.mxu0 %v1739
        %v1854 = vpop.f32.mrf.mxu0
        %v1855 = vadd.f32 0.0, %v1854
        %1856 = vmatmul.f32.gmra.mxu0 %v1742
        %v1857 = vpop.f32.mrf.mxu0
        %v1858 = vadd.f32 0.0, %v1857
        %1859 = vmatmul.f32.gmra.mxu0 %v1745
        %v1860 = vpop.f32.mrf.mxu0
        %v1861 = vadd.f32 0.0, %v1860
        %1862 = vmatmul.f32.gmra.mxu0 %v1748
        %v1863 = vpop.f32.mrf.mxu0
        %v1864 = vadd.f32 0.0, %v1863
        %1865 = vmatmul.f32.gmra.mxu0 %v1751
        %v1866 = vpop.f32.mrf.mxu0
        %v1867 = vadd.f32 0.0, %v1866
        %1868 = vmatmul.f32.gmra.mxu0 %v1754
        %v1869 = vpop.f32.mrf.mxu0
        %v1870 = vadd.f32 0.0, %v1869
        %1871 = vmatmul.f32.gmra.mxu0 %v1757
        %v1872 = vpop.f32.mrf.mxu0
        %v1873 = vadd.f32 0.0, %v1872
        %1874 = vmatmul.f32.gmra.mxu0 %v1760
        %v1875 = vpop.f32.mrf.mxu0
        %v1876 = vadd.f32 0.0, %v1875
        %1877 = vmatmul.f32.gmra.mxu0 %v1763
        %v1878 = vpop.f32.mrf.mxu0
        %v1879 = vadd.f32 0.0, %v1878
        %1880 = vmatmul.f32.gmra.mxu0 %v1766
        %v1881 = vpop.f32.mrf.mxu0
        %v1882 = vadd.f32 0.0, %v1881
        %1883 = vmatmul.f32.gmra.mxu0 %v1769
        %v1884 = vpop.f32.mrf.mxu0
        %v1885 = vadd.f32 0.0, %v1884
        %1886 = vmatmul.f32.gmra.mxu0 %v1772
        %v1887 = vpop.f32.mrf.mxu0
        %v1888 = vadd.f32 0.0, %v1887
        %1889 = vmatmul.f32.gmra.mxu0 %v1775
        %v1890 = vpop.f32.mrf.mxu0
        %v1891 = vadd.f32 0.0, %v1890
        %1892 = vmatmul.f32.gmra.mxu0 %v1778
        %v1893 = vpop.f32.mrf.mxu0
        %v1894 = vadd.f32 0.0, %v1893
        %1895 = vmatmul.f32.gmra.mxu0 %v1781
        %v1896 = vpop.f32.mrf.mxu0
        %v1897 = vadd.f32 0.0, %v1896
        %1898 = vmatmul.f32.gmra.mxu0 %v1784
        %v1899 = vpop.f32.mrf.mxu0
        %v1900 = vadd.f32 0.0, %v1899
        %1901 = vmatmul.f32.gmra.mxu0 %v1787
        %v1902 = vpop.f32.mrf.mxu0
        %v1903 = vadd.f32 0.0, %v1902
        %1904 = vmatmul.f32.gmra.mxu0 %v1790
        %v1905 = vpop.f32.mrf.mxu0
        %v1906 = vadd.f32 0.0, %v1905
        %1907 = vmatmul.f32.gmra.mxu0 %v1793
        %v1908 = vpop.f32.mrf.mxu0
        %v1909 = vadd.f32 0.0, %v1908
        %1910 = vmatmul.f32.gmra.mxu0 %v1796
        %v1911 = vpop.f32.mrf.mxu0
        %v1912 = vadd.f32 0.0, %v1911
        %1913 = vmatmul.f32.gmra.mxu0 %v1799
        %v1914 = vpop.f32.mrf.mxu0
        %v1915 = vadd.f32 0.0, %v1914
        %1916 = vdwg.mxu0
        %v1917 = vadd.f32 %v1414, %v1822
        %v1918 = vadd.f32 %v1417, %v1825
        %v1919 = vadd.f32 %v1420, %v1828
        %v1920 = vadd.f32 %v1423, %v1831
        %v1921 = vadd.f32 %v1426, %v1834
        %v1922 = vadd.f32 %v1429, %v1837
        %v1923 = vadd.f32 %v1432, %v1840
        %v1924 = vadd.f32 %v1435, %v1843
        %v1925 = vadd.f32 %v1438, %v1846
        %v1926 = vadd.f32 %v1441, %v1849
        %v1927 = vadd.f32 %v1444, %v1852
        %v1928 = vadd.f32 %v1447, %v1855
        %v1929 = vadd.f32 %v1450, %v1858
        %v1930 = vadd.f32 %v1453, %v1861
        %v1931 = vadd.f32 %v1456, %v1864
        %v1932 = vadd.f32 %v1459, %v1867
        %v1933 = vadd.f32 %v1462, %v1870
        %v1934 = vadd.f32 %v1465, %v1873
        %v1935 = vadd.f32 %v1468, %v1876
        %v1936 = vadd.f32 %v1471, %v1879
        %v1937 = vadd.f32 %v1474, %v1882
        %v1938 = vadd.f32 %v1477, %v1885
        %v1939 = vadd.f32 %v1480, %v1888
        %v1940 = vadd.f32 %v1483, %v1891
        %v1941 = vadd.f32 %v1486, %v1894
        %v1942 = vadd.f32 %v1489, %v1897
        %v1943 = vadd.f32 %v1492, %v1900
        %v1944 = vadd.f32 %v1495, %v1903
        %v1945 = vadd.f32 %v1498, %v1906
        %v1946 = vadd.f32 %v1501, %v1909
        %v1947 = vadd.f32 %v1504, %v1912
        %v1948 = vadd.f32 %v1507, %v1915
        %v1950 = vrot.slane %v410, 7
        %v1951 = vsel %vm988, %v1049, %v1950
        %v1952 = vrot.slane %v411, 7
        %v1953 = vsel %vm988, %v1950, %v1952
        %v1956 = vsel %vm925, %v992, 0.0
        %v1957 = vsel %vm926, %v994, 0.0
        %v1958 = vsel %vm927, %v996, 0.0
        %v1959 = vsel %vm928, %v998, 0.0
        %v1960 = vsel %vm929, %v1000, 0.0
        %v1961 = vsel %vm930, %v1002, 0.0
        %v1962 = vsel %vm931, %v1004, 0.0
        %v1963 = vsel %vm932, %v1006, 0.0
        %v1964 = vsel %vm933, %v1008, 0.0
        %v1965 = vsel %vm934, %v1010, 0.0
        %v1966 = vsel %vm935, %v1012, 0.0
        %v1967 = vsel %vm936, %v1014, 0.0
        %v1968 = vsel %vm937, %v1016, 0.0
        %v1969 = vsel %vm938, %v1018, 0.0
        %v1970 = vsel %vm939, %v1020, 0.0
        %v1971 = vsel %vm940, %v1022, 0.0
        %v1972 = vsel %vm941, %v1024, 0.0
        %v1973 = vsel %vm942, %v1026, 0.0
        %v1974 = vsel %vm943, %v1028, 0.0
        %v1975 = vsel %vm944, %v1030, 0.0
        %v1976 = vsel %vm945, %v1032, 0.0
        %v1977 = vsel %vm946, %v1034, 0.0
        %v1978 = vsel %vm947, %v1036, 0.0
        %v1979 = vsel %vm948, %v1038, 0.0
        %v1980 = vsel %vm949, %v1040, 0.0
        %v1981 = vsel %vm950, %v1042, 0.0
        %v1982 = vsel %vm951, %v1044, 0.0
        %v1983 = vsel %vm952, %v1046, 0.0
        %v1984 = vsel %vm953, %v1048, 0.0
        %v1985 = vsel %vm954, %v1050, 0.0
        %v1986 = vsel %vm955, %v1951, 0.0
        %v1987 = vsel %vm956, %v1953, 0.0
        %s1988 = scalar_lea.vmem [#allocation2], 12
        %v1989 = vld [vmem:[%s1988] sm:$0xf]
        %v1991 = vsel %vm1117, %v1956, 0
        %v1994 = vsel %vm1117, %v1957, 0
        %v1997 = vsel %vm1117, %v1958, 0
        %v2000 = vsel %vm1117, %v1959, 0
        %v2003 = vsel %vm1117, %v1960, 0
        %v2006 = vsel %vm1117, %v1961, 0
        %v2009 = vsel %vm1117, %v1962, 0
        %v2012 = vsel %vm1117, %v1963, 0
        %v2015 = vsel %vm1117, %v1964, 0
        %v2018 = vsel %vm1117, %v1965, 0
        %v2021 = vsel %vm1117, %v1966, 0
        %v2024 = vsel %vm1117, %v1967, 0
        %v2027 = vsel %vm1117, %v1968, 0
        %v2030 = vsel %vm1117, %v1969, 0
        %v2033 = vsel %vm1117, %v1970, 0
        %v2036 = vsel %vm1117, %v1971, 0
        %v2039 = vsel %vm1117, %v1972, 0
        %v2042 = vsel %vm1117, %v1973, 0
        %v2045 = vsel %vm1117, %v1974, 0
        %v2048 = vsel %vm1117, %v1975, 0
        %v2051 = vsel %vm1117, %v1976, 0
        %v2054 = vsel %vm1117, %v1977, 0
        %v2057 = vsel %vm1117, %v1978, 0
        %v2060 = vsel %vm1117, %v1979, 0
        %v2063 = vsel %vm1117, %v1980, 0
        %v2066 = vsel %vm1117, %v1981, 0
        %v2069 = vsel %vm1117, %v1982, 0
        %v2072 = vsel %vm1117, %v1983, 0
        %v2075 = vsel %vm1117, %v1984, 0
        %v2078 = vsel %vm1117, %v1985, 0
        %v2081 = vsel %vm1117, %v1986, 0
        %v2084 = vsel %vm1117, %v1987, 0
        %v2087 = vsel %vm1180, %v1989, 0
        %2089 = vmatpush.msra.mxu0 0.0
        %2090 = vmatpush.msra.mxu0 0.0
        %2091 = vmatpush.msra.mxu0 0.0
        %2092 = vmatpush.msra.mxu0 0.0
        %2093 = vmatpush.msra.mxu0 0.0
        %2094 = vmatpush.msra.mxu0 0.0
        %2095 = vmatpush.msra.mxu0 0.0
        %2096 = vmatpush.msra.mxu0 0.0
        %2097 = vmatpush.msra.mxu0 0.0
        %2098 = vmatpush.msra.mxu0 0.0
        %2099 = vmatpush.msra.mxu0 0.0
        %2100 = vmatpush.msra.mxu0 0.0
        %2101 = vmatpush.msra.mxu0 0.0
        %2102 = vmatpush.msra.mxu0 0.0
        %2103 = vmatpush.msra.mxu0 0.0
        %2104 = vmatpush.msra.mxu0 %v2087
        %2105 = vmatmul.f32.gmra.mxu0 %v1991
        %v2106 = vpop.f32.mrf.mxu0
        %v2107 = vadd.f32 0.0, %v2106
        %2108 = vmatmul.f32.gmra.mxu0 %v1994
        %v2109 = vpop.f32.mrf.mxu0
        %v2110 = vadd.f32 0.0, %v2109
        %2111 = vmatmul.f32.gmra.mxu0 %v1997
        %v2112 = vpop.f32.mrf.mxu0
        %v2113 = vadd.f32 0.0, %v2112
        %2114 = vmatmul.f32.gmra.mxu0 %v2000
        %v2115 = vpop.f32.mrf.mxu0
        %v2116 = vadd.f32 0.0, %v2115
        %2117 = vmatmul.f32.gmra.mxu0 %v2003
        %v2118 = vpop.f32.mrf.mxu0
        %v2119 = vadd.f32 0.0, %v2118
        %2120 = vmatmul.f32.gmra.mxu0 %v2006
        %v2121 = vpop.f32.mrf.mxu0
        %v2122 = vadd.f32 0.0, %v2121
        %2123 = vmatmul.f32.gmra.mxu0 %v2009
        %v2124 = vpop.f32.mrf.mxu0
        %v2125 = vadd.f32 0.0, %v2124
        %2126 = vmatmul.f32.gmra.mxu0 %v2012
        %v2127 = vpop.f32.mrf.mxu0
        %v2128 = vadd.f32 0.0, %v2127
        %2129 = vmatmul.f32.gmra.mxu0 %v2015
        %v2130 = vpop.f32.mrf.mxu0
        %v2131 = vadd.f32 0.0, %v2130
        %2132 = vmatmul.f32.gmra.mxu0 %v2018
        %v2133 = vpop.f32.mrf.mxu0
        %v2134 = vadd.f32 0.0, %v2133
        %2135 = vmatmul.f32.gmra.mxu0 %v2021
        %v2136 = vpop.f32.mrf.mxu0
        %v2137 = vadd.f32 0.0, %v2136
        %2138 = vmatmul.f32.gmra.mxu0 %v2024
        %v2139 = vpop.f32.mrf.mxu0
        %v2140 = vadd.f32 0.0, %v2139
        %2141 = vmatmul.f32.gmra.mxu0 %v2027
        %v2142 = vpop.f32.mrf.mxu0
        %v2143 = vadd.f32 0.0, %v2142
        %2144 = vmatmul.f32.gmra.mxu0 %v2030
        %v2145 = vpop.f32.mrf.mxu0
        %v2146 = vadd.f32 0.0, %v2145
        %2147 = vmatmul.f32.gmra.mxu0 %v2033
        %v2148 = vpop.f32.mrf.mxu0
        %v2149 = vadd.f32 0.0, %v2148
        %2150 = vmatmul.f32.gmra.mxu0 %v2036
        %v2151 = vpop.f32.mrf.mxu0
        %v2152 = vadd.f32 0.0, %v2151
        %2153 = vmatmul.f32.gmra.mxu0 %v2039
        %v2154 = vpop.f32.mrf.mxu0
        %v2155 = vadd.f32 0.0, %v2154
        %2156 = vmatmul.f32.gmra.mxu0 %v2042
        %v2157 = vpop.f32.mrf.mxu0
        %v2158 = vadd.f32 0.0, %v2157
        %2159 = vmatmul.f32.gmra.mxu0 %v2045
        %v2160 = vpop.f32.mrf.mxu0
        %v2161 = vadd.f32 0.0, %v2160
        %2162 = vmatmul.f32.gmra.mxu0 %v2048
        %v2163 = vpop.f32.mrf.mxu0
        %v2164 = vadd.f32 0.0, %v2163
        %2165 = vmatmul.f32.gmra.mxu0 %v2051
        %v2166 = vpop.f32.mrf.mxu0
        %v2167 = vadd.f32 0.0, %v2166
        %2168 = vmatmul.f32.gmra.mxu0 %v2054
        %v2169 = vpop.f32.mrf.mxu0
        %v2170 = vadd.f32 0.0, %v2169
        %2171 = vmatmul.f32.gmra.mxu0 %v2057
        %v2172 = vpop.f32.mrf.mxu0
        %v2173 = vadd.f32 0.0, %v2172
        %2174 = vmatmul.f32.gmra.mxu0 %v2060
        %v2175 = vpop.f32.mrf.mxu0
        %v2176 = vadd.f32 0.0, %v2175
        %2177 = vmatmul.f32.gmra.mxu0 %v2063
        %v2178 = vpop.f32.mrf.mxu0
        %v2179 = vadd.f32 0.0, %v2178
        %2180 = vmatmul.f32.gmra.mxu0 %v2066
        %v2181 = vpop.f32.mrf.mxu0
        %v2182 = vadd.f32 0.0, %v2181
        %2183 = vmatmul.f32.gmra.mxu0 %v2069
        %v2184 = vpop.f32.mrf.mxu0
        %v2185 = vadd.f32 0.0, %v2184
        %2186 = vmatmul.f32.gmra.mxu0 %v2072
        %v2187 = vpop.f32.mrf.mxu0
        %v2188 = vadd.f32 0.0, %v2187
        %2189 = vmatmul.f32.gmra.mxu0 %v2075
        %v2190 = vpop.f32.mrf.mxu0
        %v2191 = vadd.f32 0.0, %v2190
        %2192 = vmatmul.f32.gmra.mxu0 %v2078
        %v2193 = vpop.f32.mrf.mxu0
        %v2194 = vadd.f32 0.0, %v2193
        %2195 = vmatmul.f32.gmra.mxu0 %v2081
        %v2196 = vpop.f32.mrf.mxu0
        %v2197 = vadd.f32 0.0, %v2196
        %2198 = vmatmul.f32.gmra.mxu0 %v2084
        %v2199 = vpop.f32.mrf.mxu0
        %v2200 = vadd.f32 0.0, %v2199
        %2201 = vdwg.mxu0
        %v2202 = vadd.f32 %v1917, %v2107
        %v2203 = vadd.f32 %v1918, %v2110
        %v2204 = vadd.f32 %v1919, %v2113
        %v2205 = vadd.f32 %v1920, %v2116
        %v2206 = vadd.f32 %v1921, %v2119
        %v2207 = vadd.f32 %v1922, %v2122
        %v2208 = vadd.f32 %v1923, %v2125
        %v2209 = vadd.f32 %v1924, %v2128
        %v2210 = vadd.f32 %v1925, %v2131
        %v2211 = vadd.f32 %v1926, %v2134
        %v2212 = vadd.f32 %v1927, %v2137
        %v2213 = vadd.f32 %v1928, %v2140
        %v2214 = vadd.f32 %v1929, %v2143
        %v2215 = vadd.f32 %v1930, %v2146
        %v2216 = vadd.f32 %v1931, %v2149
        %v2217 = vadd.f32 %v1932, %v2152
        %v2218 = vadd.f32 %v1933, %v2155
        %v2219 = vadd.f32 %v1934, %v2158
        %v2220 = vadd.f32 %v1935, %v2161
        %v2221 = vadd.f32 %v1936, %v2164
        %v2222 = vadd.f32 %v1937, %v2167
        %v2223 = vadd.f32 %v1938, %v2170
        %v2224 = vadd.f32 %v1939, %v2173
        %v2225 = vadd.f32 %v1940, %v2176
        %v2226 = vadd.f32 %v1941, %v2179
        %v2227 = vadd.f32 %v1942, %v2182
        %v2228 = vadd.f32 %v1943, %v2185
        %v2229 = vadd.f32 %v1944, %v2188
        %v2230 = vadd.f32 %v1945, %v2191
        %v2231 = vadd.f32 %v1946, %v2194
        %v2232 = vadd.f32 %v1947, %v2197
        %v2233 = vadd.f32 %v1948, %v2200
        %s2234 = scalar_lea.vmem [#allocation2], 16
        %v2235 = vld [vmem:[%s2234] sm:$0xf]
        %v2236 = vsel %vm1117, %v410, 0
        %v2238 = vsel %vm1117, %v411, 0
        %v2241 = vsel %vm1180, %v2235, 0
        %2243 = vmatpush.msra.mxu0 0.0
        %2244 = vmatpush.msra.mxu0 0.0
        %2245 = vmatpush.msra.mxu0 0.0
        %2246 = vmatpush.msra.mxu0 0.0
        %2247 = vmatpush.msra.mxu0 0.0
        %2248 = vmatpush.msra.mxu0 0.0
        %2249 = vmatpush.msra.mxu0 0.0
        %2250 = vmatpush.msra.mxu0 0.0
        %2251 = vmatpush.msra.mxu0 0.0
        %2252 = vmatpush.msra.mxu0 0.0
        %2253 = vmatpush.msra.mxu0 0.0
        %2254 = vmatpush.msra.mxu0 0.0
        %2255 = vmatpush.msra.mxu0 0.0
        %2256 = vmatpush.msra.mxu0 0.0
        %2257 = vmatpush.msra.mxu0 0.0
        %2258 = vmatpush.msra.mxu0 %v2241
        %2259 = vmatmul.f32.gmra.mxu0 %v1120
        %v2260 = vpop.f32.mrf.mxu0
        %v2261 = vadd.f32 0.0, %v2260
        %2262 = vmatmul.f32.gmra.mxu0 %v1122
        %v2263 = vpop.f32.mrf.mxu0
        %v2264 = vadd.f32 0.0, %v2263
        %2265 = vmatmul.f32.gmra.mxu0 %v1124
        %v2266 = vpop.f32.mrf.mxu0
        %v2267 = vadd.f32 0.0, %v2266
        %2268 = vmatmul.f32.gmra.mxu0 %v1126
        %v2269 = vpop.f32.mrf.mxu0
        %v2270 = vadd.f32 0.0, %v2269
        %2271 = vmatmul.f32.gmra.mxu0 %v1128
        %v2272 = vpop.f32.mrf.mxu0
        %v2273 = vadd.f32 0.0, %v2272
        %2274 = vmatmul.f32.gmra.mxu0 %v1130
        %v2275 = vpop.f32.mrf.mxu0
        %v2276 = vadd.f32 0.0, %v2275
        %2277 = vmatmul.f32.gmra.mxu0 %v1132
        %v2278 = vpop.f32.mrf.mxu0
        %v2279 = vadd.f32 0.0, %v2278
        %2280 = vmatmul.f32.gmra.mxu0 %v1134
        %v2281 = vpop.f32.mrf.mxu0
        %v2282 = vadd.f32 0.0, %v2281
        %2283 = vmatmul.f32.gmra.mxu0 %v1136
        %v2284 = vpop.f32.mrf.mxu0
        %v2285 = vadd.f32 0.0, %v2284
        %2286 = vmatmul.f32.gmra.mxu0 %v1138
        %v2287 = vpop.f32.mrf.mxu0
        %v2288 = vadd.f32 0.0, %v2287
        %2289 = vmatmul.f32.gmra.mxu0 %v1140
        %v2290 = vpop.f32.mrf.mxu0
        %v2291 = vadd.f32 0.0, %v2290
        %2292 = vmatmul.f32.gmra.mxu0 %v1142
        %v2293 = vpop.f32.mrf.mxu0
        %v2294 = vadd.f32 0.0, %v2293
        %2295 = vmatmul.f32.gmra.mxu0 %v1144
        %v2296 = vpop.f32.mrf.mxu0
        %v2297 = vadd.f32 0.0, %v2296
        %2298 = vmatmul.f32.gmra.mxu0 %v1146
        %v2299 = vpop.f32.mrf.mxu0
        %v2300 = vadd.f32 0.0, %v2299
        %2301 = vmatmul.f32.gmra.mxu0 %v1148
        %v2302 = vpop.f32.mrf.mxu0
        %v2303 = vadd.f32 0.0, %v2302
        %2304 = vmatmul.f32.gmra.mxu0 %v1150
        %v2305 = vpop.f32.mrf.mxu0
        %v2306 = vadd.f32 0.0, %v2305
        %2307 = vmatmul.f32.gmra.mxu0 %v1152
        %v2308 = vpop.f32.mrf.mxu0
        %v2309 = vadd.f32 0.0, %v2308
        %2310 = vmatmul.f32.gmra.mxu0 %v1154
        %v2311 = vpop.f32.mrf.mxu0
        %v2312 = vadd.f32 0.0, %v2311
        %2313 = vmatmul.f32.gmra.mxu0 %v1156
        %v2314 = vpop.f32.mrf.mxu0
        %v2315 = vadd.f32 0.0, %v2314
        %2316 = vmatmul.f32.gmra.mxu0 %v1158
        %v2317 = vpop.f32.mrf.mxu0
        %v2318 = vadd.f32 0.0, %v2317
        %2319 = vmatmul.f32.gmra.mxu0 %v1160
        %v2320 = vpop.f32.mrf.mxu0
        %v2321 = vadd.f32 0.0, %v2320
        %2322 = vmatmul.f32.gmra.mxu0 %v1162
        %v2323 = vpop.f32.mrf.mxu0
        %v2324 = vadd.f32 0.0, %v2323
        %2325 = vmatmul.f32.gmra.mxu0 %v1164
        %v2326 = vpop.f32.mrf.mxu0
        %v2327 = vadd.f32 0.0, %v2326
        %2328 = vmatmul.f32.gmra.mxu0 %v1166
        %v2329 = vpop.f32.mrf.mxu0
        %v2330 = vadd.f32 0.0, %v2329
        %2331 = vmatmul.f32.gmra.mxu0 %v1168
        %v2332 = vpop.f32.mrf.mxu0
        %v2333 = vadd.f32 0.0, %v2332
        %2334 = vmatmul.f32.gmra.mxu0 %v1170
        %v2335 = vpop.f32.mrf.mxu0
        %v2336 = vadd.f32 0.0, %v2335
        %2337 = vmatmul.f32.gmra.mxu0 %v1172
        %v2338 = vpop.f32.mrf.mxu0
        %v2339 = vadd.f32 0.0, %v2338
        %2340 = vmatmul.f32.gmra.mxu0 %v1174
        %v2341 = vpop.f32.mrf.mxu0
        %v2342 = vadd.f32 0.0, %v2341
        %2343 = vmatmul.f32.gmra.mxu0 %v1176
        %v2344 = vpop.f32.mrf.mxu0
        %v2345 = vadd.f32 0.0, %v2344
        %2346 = vmatmul.f32.gmra.mxu0 %v1178
        %v2347 = vpop.f32.mrf.mxu0
        %v2348 = vadd.f32 0.0, %v2347
        %2349 = vmatmul.f32.gmra.mxu0 %v2236
        %v2350 = vpop.f32.mrf.mxu0
        %v2351 = vadd.f32 0.0, %v2350
        %2352 = vmatmul.f32.gmra.mxu0 %v2238
        %v2353 = vpop.f32.mrf.mxu0
        %v2354 = vadd.f32 0.0, %v2353
        %2355 = vdwg.mxu0
        %v2356 = vadd.f32 %v2202, %v2261
        %v2357 = vadd.f32 %v2203, %v2264
        %v2358 = vadd.f32 %v2204, %v2267
        %v2359 = vadd.f32 %v2205, %v2270
        %v2360 = vadd.f32 %v2206, %v2273
        %v2361 = vadd.f32 %v2207, %v2276
        %v2362 = vadd.f32 %v2208, %v2279
        %v2363 = vadd.f32 %v2209, %v2282
        %v2364 = vadd.f32 %v2210, %v2285
        %v2365 = vadd.f32 %v2211, %v2288
        %v2366 = vadd.f32 %v2212, %v2291
        %v2367 = vadd.f32 %v2213, %v2294
        %v2368 = vadd.f32 %v2214, %v2297
        %v2369 = vadd.f32 %v2215, %v2300
        %v2370 = vadd.f32 %v2216, %v2303
        %v2371 = vadd.f32 %v2217, %v2306
        %v2372 = vadd.f32 %v2218, %v2309
        %v2373 = vadd.f32 %v2219, %v2312
        %v2374 = vadd.f32 %v2220, %v2315
        %v2375 = vadd.f32 %v2221, %v2318
        %v2376 = vadd.f32 %v2222, %v2321
        %v2377 = vadd.f32 %v2223, %v2324
        %v2378 = vadd.f32 %v2224, %v2327
        %v2379 = vadd.f32 %v2225, %v2330
        %v2380 = vadd.f32 %v2226, %v2333
        %v2381 = vadd.f32 %v2227, %v2336
        %v2382 = vadd.f32 %v2228, %v2339
        %v2383 = vadd.f32 %v2229, %v2342
        %v2384 = vadd.f32 %v2230, %v2345
        %v2385 = vadd.f32 %v2231, %v2348
        %v2386 = vadd.f32 %v2232, %v2351
        %v2387 = vadd.f32 %v2233, %v2354
        %v2388 = vrot.slane %v411, 1
        %v2389 = vsel %vm1574, %v1637, %v2388
        %v2390 = vsel %vm1574, %v2388, %v1575
        %v2393 = vsel %vm1541, %v1580, 0.0
        %v2394 = vsel %vm1542, %v1582, 0.0
        %v2395 = vsel %vm1543, %v1584, 0.0
        %v2396 = vsel %vm1544, %v1586, 0.0
        %v2397 = vsel %vm1545, %v1588, 0.0
        %v2398 = vsel %vm1546, %v1590, 0.0
        %v2399 = vsel %vm1547, %v1592, 0.0
        %v2400 = vsel %vm1548, %v1594, 0.0
        %v2401 = vsel %vm1549, %v1596, 0.0
        %v2402 = vsel %vm1550, %v1598, 0.0
        %v2403 = vsel %vm1551, %v1600, 0.0
        %v2404 = vsel %vm1552, %v1602, 0.0
        %v2405 = vsel %vm1553, %v1604, 0.0
        %v2406 = vsel %vm1554, %v1606, 0.0
        %v2407 = vsel %vm1555, %v1608, 0.0
        %v2408 = vsel %vm1556, %v1610, 0.0
        %v2409 = vsel %vm1557, %v1612, 0.0
        %v2410 = vsel %vm1558, %v1614, 0.0
        %v2411 = vsel %vm1559, %v1616, 0.0
        %v2412 = vsel %vm1560, %v1618, 0.0
        %v2413 = vsel %vm1561, %v1620, 0.0
        %v2414 = vsel %vm1562, %v1622, 0.0
        %v2415 = vsel %vm1563, %v1624, 0.0
        %v2416 = vsel %vm1564, %v1626, 0.0
        %v2417 = vsel %vm1565, %v1628, 0.0
        %v2418 = vsel %vm1566, %v1630, 0.0
        %v2419 = vsel %vm1567, %v1632, 0.0
        %v2420 = vsel %vm1568, %v1634, 0.0
        %v2421 = vsel %vm1569, %v1636, 0.0
        %v2422 = vsel %vm1570, %v1638, 0.0
        %v2423 = vsel %vm1571, %v2389, 0.0
        %v2424 = vsel %vm1572, %v2390, 0.0
        %s2425 = scalar_lea.vmem [#allocation2], 20
        %v2426 = vld [vmem:[%s2425] sm:$0xf]
        %v2428 = vsel %vm1117, %v2393, 0
        %v2431 = vsel %vm1117, %v2394, 0
        %v2434 = vsel %vm1117, %v2395, 0
        %v2437 = vsel %vm1117, %v2396, 0
        %v2440 = vsel %vm1117, %v2397, 0
        %v2443 = vsel %vm1117, %v2398, 0
        %v2446 = vsel %vm1117, %v2399, 0
        %v2449 = vsel %vm1117, %v2400, 0
        %v2452 = vsel %vm1117, %v2401, 0
        %v2455 = vsel %vm1117, %v2402, 0
        %v2458 = vsel %vm1117, %v2403, 0
        %v2461 = vsel %vm1117, %v2404, 0
        %v2464 = vsel %vm1117, %v2405, 0
        %v2467 = vsel %vm1117, %v2406, 0
        %v2470 = vsel %vm1117, %v2407, 0
        %v2473 = vsel %vm1117, %v2408, 0
        %v2476 = vsel %vm1117, %v2409, 0
        %v2479 = vsel %vm1117, %v2410, 0
        %v2482 = vsel %vm1117, %v2411, 0
        %v2485 = vsel %vm1117, %v2412, 0
        %v2488 = vsel %vm1117, %v2413, 0
        %v2491 = vsel %vm1117, %v2414, 0
        %v2494 = vsel %vm1117, %v2415, 0
        %v2497 = vsel %vm1117, %v2416, 0
        %v2500 = vsel %vm1117, %v2417, 0
        %v2503 = vsel %vm1117, %v2418, 0
        %v2506 = vsel %vm1117, %v2419, 0
        %v2509 = vsel %vm1117, %v2420, 0
        %v2512 = vsel %vm1117, %v2421, 0
        %v2515 = vsel %vm1117, %v2422, 0
        %v2518 = vsel %vm1117, %v2423, 0
        %v2521 = vsel %vm1117, %v2424, 0
        %v2524 = vsel %vm1180, %v2426, 0
        %2526 = vmatpush.msra.mxu0 0.0
        %2527 = vmatpush.msra.mxu0 0.0
        %2528 = vmatpush.msra.mxu0 0.0
        %2529 = vmatpush.msra.mxu0 0.0
        %2530 = vmatpush.msra.mxu0 0.0
        %2531 = vmatpush.msra.mxu0 0.0
        %2532 = vmatpush.msra.mxu0 0.0
        %2533 = vmatpush.msra.mxu0 0.0
        %2534 = vmatpush.msra.mxu0 0.0
        %2535 = vmatpush.msra.mxu0 0.0
        %2536 = vmatpush.msra.mxu0 0.0
        %2537 = vmatpush.msra.mxu0 0.0
        %2538 = vmatpush.msra.mxu0 0.0
        %2539 = vmatpush.msra.mxu0 0.0
        %2540 = vmatpush.msra.mxu0 0.0
        %2541 = vmatpush.msra.mxu0 %v2524
        %2542 = vmatmul.f32.gmra.mxu0 %v2428
        %v2543 = vpop.f32.mrf.mxu0
        %v2544 = vadd.f32 0.0, %v2543
        %2545 = vmatmul.f32.gmra.mxu0 %v2431
        %v2546 = vpop.f32.mrf.mxu0
        %v2547 = vadd.f32 0.0, %v2546
        %2548 = vmatmul.f32.gmra.mxu0 %v2434
        %v2549 = vpop.f32.mrf.mxu0
        %v2550 = vadd.f32 0.0, %v2549
        %2551 = vmatmul.f32.gmra.mxu0 %v2437
        %v2552 = vpop.f32.mrf.mxu0
        %v2553 = vadd.f32 0.0, %v2552
        %2554 = vmatmul.f32.gmra.mxu0 %v2440
        %v2555 = vpop.f32.mrf.mxu0
        %v2556 = vadd.f32 0.0, %v2555
        %2557 = vmatmul.f32.gmra.mxu0 %v2443
        %v2558 = vpop.f32.mrf.mxu0
        %v2559 = vadd.f32 0.0, %v2558
        %2560 = vmatmul.f32.gmra.mxu0 %v2446
        %v2561 = vpop.f32.mrf.mxu0
        %v2562 = vadd.f32 0.0, %v2561
        %2563 = vmatmul.f32.gmra.mxu0 %v2449
        %v2564 = vpop.f32.mrf.mxu0
        %v2565 = vadd.f32 0.0, %v2564
        %2566 = vmatmul.f32.gmra.mxu0 %v2452
        %v2567 = vpop.f32.mrf.mxu0
        %v2568 = vadd.f32 0.0, %v2567
        %2569 = vmatmul.f32.gmra.mxu0 %v2455
        %v2570 = vpop.f32.mrf.mxu0
        %v2571 = vadd.f32 0.0, %v2570
        %2572 = vmatmul.f32.gmra.mxu0 %v2458
        %v2573 = vpop.f32.mrf.mxu0
        %v2574 = vadd.f32 0.0, %v2573
        %2575 = vmatmul.f32.gmra.mxu0 %v2461
        %v2576 = vpop.f32.mrf.mxu0
        %v2577 = vadd.f32 0.0, %v2576
        %2578 = vmatmul.f32.gmra.mxu0 %v2464
        %v2579 = vpop.f32.mrf.mxu0
        %v2580 = vadd.f32 0.0, %v2579
        %2581 = vmatmul.f32.gmra.mxu0 %v2467
        %v2582 = vpop.f32.mrf.mxu0
        %v2583 = vadd.f32 0.0, %v2582
        %2584 = vmatmul.f32.gmra.mxu0 %v2470
        %v2585 = vpop.f32.mrf.mxu0
        %v2586 = vadd.f32 0.0, %v2585
        %2587 = vmatmul.f32.gmra.mxu0 %v2473
        %v2588 = vpop.f32.mrf.mxu0
        %v2589 = vadd.f32 0.0, %v2588
        %2590 = vmatmul.f32.gmra.mxu0 %v2476
        %v2591 = vpop.f32.mrf.mxu0
        %v2592 = vadd.f32 0.0, %v2591
        %2593 = vmatmul.f32.gmra.mxu0 %v2479
        %v2594 = vpop.f32.mrf.mxu0
        %v2595 = vadd.f32 0.0, %v2594
        %2596 = vmatmul.f32.gmra.mxu0 %v2482
        %v2597 = vpop.f32.mrf.mxu0
        %v2598 = vadd.f32 0.0, %v2597
        %2599 = vmatmul.f32.gmra.mxu0 %v2485
        %v2600 = vpop.f32.mrf.mxu0
        %v2601 = vadd.f32 0.0, %v2600
        %2602 = vmatmul.f32.gmra.mxu0 %v2488
        %v2603 = vpop.f32.mrf.mxu0
        %v2604 = vadd.f32 0.0, %v2603
        %2605 = vmatmul.f32.gmra.mxu0 %v2491
        %v2606 = vpop.f32.mrf.mxu0
        %v2607 = vadd.f32 0.0, %v2606
        %2608 = vmatmul.f32.gmra.mxu0 %v2494
        %v2609 = vpop.f32.mrf.mxu0
        %v2610 = vadd.f32 0.0, %v2609
        %2611 = vmatmul.f32.gmra.mxu0 %v2497
        %v2612 = vpop.f32.mrf.mxu0
        %v2613 = vadd.f32 0.0, %v2612
        %2614 = vmatmul.f32.gmra.mxu0 %v2500
        %v2615 = vpop.f32.mrf.mxu0
        %v2616 = vadd.f32 0.0, %v2615
        %2617 = vmatmul.f32.gmra.mxu0 %v2503
        %v2618 = vpop.f32.mrf.mxu0
        %v2619 = vadd.f32 0.0, %v2618
        %2620 = vmatmul.f32.gmra.mxu0 %v2506
        %v2621 = vpop.f32.mrf.mxu0
        %v2622 = vadd.f32 0.0, %v2621
        %2623 = vmatmul.f32.gmra.mxu0 %v2509
        %v2624 = vpop.f32.mrf.mxu0
        %v2625 = vadd.f32 0.0, %v2624
        %2626 = vmatmul.f32.gmra.mxu0 %v2512
        %v2627 = vpop.f32.mrf.mxu0
        %v2628 = vadd.f32 0.0, %v2627
        %2629 = vmatmul.f32.gmra.mxu0 %v2515
        %v2630 = vpop.f32.mrf.mxu0
        %v2631 = vadd.f32 0.0, %v2630
        %2632 = vmatmul.f32.gmra.mxu0 %v2518
        %v2633 = vpop.f32.mrf.mxu0
        %v2634 = vadd.f32 0.0, %v2633
        %2635 = vmatmul.f32.gmra.mxu0 %v2521
        %v2636 = vpop.f32.mrf.mxu0
        %v2637 = vadd.f32 0.0, %v2636
        %2638 = vdwg.mxu0
        %v2639 = vadd.f32 %v2356, %v2544
        %v2640 = vadd.f32 %v2357, %v2547
        %v2641 = vadd.f32 %v2358, %v2550
        %v2642 = vadd.f32 %v2359, %v2553
        %v2643 = vadd.f32 %v2360, %v2556
        %v2644 = vadd.f32 %v2361, %v2559
        %v2645 = vadd.f32 %v2362, %v2562
        %v2646 = vadd.f32 %v2363, %v2565
        %v2647 = vadd.f32 %v2364, %v2568
        %v2648 = vadd.f32 %v2365, %v2571
        %v2649 = vadd.f32 %v2366, %v2574
        %v2650 = vadd.f32 %v2367, %v2577
        %v2651 = vadd.f32 %v2368, %v2580
        %v2652 = vadd.f32 %v2369, %v2583
        %v2653 = vadd.f32 %v2370, %v2586
        %v2654 = vadd.f32 %v2371, %v2589
        %v2655 = vadd.f32 %v2372, %v2592
        %v2656 = vadd.f32 %v2373, %v2595
        %v2657 = vadd.f32 %v2374, %v2598
        %v2658 = vadd.f32 %v2375, %v2601
        %v2659 = vadd.f32 %v2376, %v2604
        %v2660 = vadd.f32 %v2377, %v2607
        %v2661 = vadd.f32 %v2378, %v2610
        %v2662 = vadd.f32 %v2379, %v2613
        %v2663 = vadd.f32 %v2380, %v2616
        %v2664 = vadd.f32 %v2381, %v2619
        %v2665 = vadd.f32 %v2382, %v2622
        %v2666 = vadd.f32 %v2383, %v2625
        %v2667 = vadd.f32 %v2384, %v2628
        %v2668 = vadd.f32 %v2385, %v2631
        %v2669 = vadd.f32 %v2386, %v2634
        %v2670 = vadd.f32 %v2387, %v2637
        %v2671 = vsel %vm988, %v1952, %v989
        %v2673 = vsel %vm925, %v996, 0.0
        %v2674 = vsel %vm926, %v998, 0.0
        %v2675 = vsel %vm927, %v1000, 0.0
        %v2676 = vsel %vm928, %v1002, 0.0
        %v2677 = vsel %vm929, %v1004, 0.0
        %v2678 = vsel %vm930, %v1006, 0.0
        %v2679 = vsel %vm931, %v1008, 0.0
        %v2680 = vsel %vm932, %v1010, 0.0
        %v2681 = vsel %vm933, %v1012, 0.0
        %v2682 = vsel %vm934, %v1014, 0.0
        %v2683 = vsel %vm935, %v1016, 0.0
        %v2684 = vsel %vm936, %v1018, 0.0
        %v2685 = vsel %vm937, %v1020, 0.0
        %v2686 = vsel %vm938, %v1022, 0.0
        %v2687 = vsel %vm939, %v1024, 0.0
        %v2688 = vsel %vm940, %v1026, 0.0
        %v2689 = vsel %vm941, %v1028, 0.0
        %v2690 = vsel %vm942, %v1030, 0.0
        %v2691 = vsel %vm943, %v1032, 0.0
        %v2692 = vsel %vm944, %v1034, 0.0
        %v2693 = vsel %vm945, %v1036, 0.0
        %v2694 = vsel %vm946, %v1038, 0.0
        %v2695 = vsel %vm947, %v1040, 0.0
        %v2696 = vsel %vm948, %v1042, 0.0
        %v2697 = vsel %vm949, %v1044, 0.0
        %v2698 = vsel %vm950, %v1046, 0.0
        %v2699 = vsel %vm951, %v1048, 0.0
        %v2700 = vsel %vm952, %v1050, 0.0
        %v2701 = vsel %vm953, %v1951, 0.0
        %v2702 = vsel %vm954, %v1953, 0.0
        %v2703 = vsel %vm955, %v2671, 0.0
        %v2704 = vsel %vm956, %v990, 0.0
        %s2705 = scalar_lea.vmem [#allocation2], 24
        %v2706 = vld [vmem:[%s2705] sm:$0xf]
        %v2708 = vsel %vm1117, %v2673, 0
        %v2711 = vsel %vm1117, %v2674, 0
        %v2714 = vsel %vm1117, %v2675, 0
        %v2717 = vsel %vm1117, %v2676, 0
        %v2720 = vsel %vm1117, %v2677, 0
        %v2723 = vsel %vm1117, %v2678, 0
        %v2726 = vsel %vm1117, %v2679, 0
        %v2729 = vsel %vm1117, %v2680, 0
        %v2732 = vsel %vm1117, %v2681, 0
        %v2735 = vsel %vm1117, %v2682, 0
        %v2738 = vsel %vm1117, %v2683, 0
        %v2741 = vsel %vm1117, %v2684, 0
        %v2744 = vsel %vm1117, %v2685, 0
        %v2747 = vsel %vm1117, %v2686, 0
        %v2750 = vsel %vm1117, %v2687, 0
        %v2753 = vsel %vm1117, %v2688, 0
        %v2756 = vsel %vm1117, %v2689, 0
        %v2759 = vsel %vm1117, %v2690, 0
        %v2762 = vsel %vm1117, %v2691, 0
        %v2765 = vsel %vm1117, %v2692, 0
        %v2768 = vsel %vm1117, %v2693, 0
        %v2771 = vsel %vm1117, %v2694, 0
        %v2774 = vsel %vm1117, %v2695, 0
        %v2777 = vsel %vm1117, %v2696, 0
        %v2780 = vsel %vm1117, %v2697, 0
        %v2783 = vsel %vm1117, %v2698, 0
        %v2786 = vsel %vm1117, %v2699, 0
        %v2789 = vsel %vm1117, %v2700, 0
        %v2792 = vsel %vm1117, %v2701, 0
        %v2795 = vsel %vm1117, %v2702, 0
        %v2798 = vsel %vm1117, %v2703, 0
        %v2801 = vsel %vm1117, %v2704, 0
        %v2804 = vsel %vm1180, %v2706, 0
        %2806 = vmatpush.msra.mxu0 0.0
        %2807 = vmatpush.msra.mxu0 0.0
        %2808 = vmatpush.msra.mxu0 0.0
        %2809 = vmatpush.msra.mxu0 0.0
        %2810 = vmatpush.msra.mxu0 0.0
        %2811 = vmatpush.msra.mxu0 0.0
        %2812 = vmatpush.msra.mxu0 0.0
        %2813 = vmatpush.msra.mxu0 0.0
        %2814 = vmatpush.msra.mxu0 0.0
        %2815 = vmatpush.msra.mxu0 0.0
        %2816 = vmatpush.msra.mxu0 0.0
        %2817 = vmatpush.msra.mxu0 0.0
        %2818 = vmatpush.msra.mxu0 0.0
        %2819 = vmatpush.msra.mxu0 0.0
        %2820 = vmatpush.msra.mxu0 0.0
        %2821 = vmatpush.msra.mxu0 %v2804
        %2822 = vmatmul.f32.gmra.mxu0 %v2708
        %v2823 = vpop.f32.mrf.mxu0
        %v2824 = vadd.f32 0.0, %v2823
        %2825 = vmatmul.f32.gmra.mxu0 %v2711
        %v2826 = vpop.f32.mrf.mxu0
        %v2827 = vadd.f32 0.0, %v2826
        %2828 = vmatmul.f32.gmra.mxu0 %v2714
        %v2829 = vpop.f32.mrf.mxu0
        %v2830 = vadd.f32 0.0, %v2829
        %2831 = vmatmul.f32.gmra.mxu0 %v2717
        %v2832 = vpop.f32.mrf.mxu0
        %v2833 = vadd.f32 0.0, %v2832
        %2834 = vmatmul.f32.gmra.mxu0 %v2720
        %v2835 = vpop.f32.mrf.mxu0
        %v2836 = vadd.f32 0.0, %v2835
        %2837 = vmatmul.f32.gmra.mxu0 %v2723
        %v2838 = vpop.f32.mrf.mxu0
        %v2839 = vadd.f32 0.0, %v2838
        %2840 = vmatmul.f32.gmra.mxu0 %v2726
        %v2841 = vpop.f32.mrf.mxu0
        %v2842 = vadd.f32 0.0, %v2841
        %2843 = vmatmul.f32.gmra.mxu0 %v2729
        %v2844 = vpop.f32.mrf.mxu0
        %v2845 = vadd.f32 0.0, %v2844
        %2846 = vmatmul.f32.gmra.mxu0 %v2732
        %v2847 = vpop.f32.mrf.mxu0
        %v2848 = vadd.f32 0.0, %v2847
        %2849 = vmatmul.f32.gmra.mxu0 %v2735
        %v2850 = vpop.f32.mrf.mxu0
        %v2851 = vadd.f32 0.0, %v2850
        %2852 = vmatmul.f32.gmra.mxu0 %v2738
        %v2853 = vpop.f32.mrf.mxu0
        %v2854 = vadd.f32 0.0, %v2853
        %2855 = vmatmul.f32.gmra.mxu0 %v2741
        %v2856 = vpop.f32.mrf.mxu0
        %v2857 = vadd.f32 0.0, %v2856
        %2858 = vmatmul.f32.gmra.mxu0 %v2744
        %v2859 = vpop.f32.mrf.mxu0
        %v2860 = vadd.f32 0.0, %v2859
        %2861 = vmatmul.f32.gmra.mxu0 %v2747
        %v2862 = vpop.f32.mrf.mxu0
        %v2863 = vadd.f32 0.0, %v2862
        %2864 = vmatmul.f32.gmra.mxu0 %v2750
        %v2865 = vpop.f32.mrf.mxu0
        %v2866 = vadd.f32 0.0, %v2865
        %2867 = vmatmul.f32.gmra.mxu0 %v2753
        %v2868 = vpop.f32.mrf.mxu0
        %v2869 = vadd.f32 0.0, %v2868
        %2870 = vmatmul.f32.gmra.mxu0 %v2756
        %v2871 = vpop.f32.mrf.mxu0
        %v2872 = vadd.f32 0.0, %v2871
        %2873 = vmatmul.f32.gmra.mxu0 %v2759
        %v2874 = vpop.f32.mrf.mxu0
        %v2875 = vadd.f32 0.0, %v2874
        %2876 = vmatmul.f32.gmra.mxu0 %v2762
        %v2877 = vpop.f32.mrf.mxu0
        %v2878 = vadd.f32 0.0, %v2877
        %2879 = vmatmul.f32.gmra.mxu0 %v2765
        %v2880 = vpop.f32.mrf.mxu0
        %v2881 = vadd.f32 0.0, %v2880
        %2882 = vmatmul.f32.gmra.mxu0 %v2768
        %v2883 = vpop.f32.mrf.mxu0
        %v2884 = vadd.f32 0.0, %v2883
        %2885 = vmatmul.f32.gmra.mxu0 %v2771
        %v2886 = vpop.f32.mrf.mxu0
        %v2887 = vadd.f32 0.0, %v2886
        %2888 = vmatmul.f32.gmra.mxu0 %v2774
        %v2889 = vpop.f32.mrf.mxu0
        %v2890 = vadd.f32 0.0, %v2889
        %2891 = vmatmul.f32.gmra.mxu0 %v2777
        %v2892 = vpop.f32.mrf.mxu0
        %v2893 = vadd.f32 0.0, %v2892
        %2894 = vmatmul.f32.gmra.mxu0 %v2780
        %v2895 = vpop.f32.mrf.mxu0
        %v2896 = vadd.f32 0.0, %v2895
        %2897 = vmatmul.f32.gmra.mxu0 %v2783
        %v2898 = vpop.f32.mrf.mxu0
        %v2899 = vadd.f32 0.0, %v2898
        %2900 = vmatmul.f32.gmra.mxu0 %v2786
        %v2901 = vpop.f32.mrf.mxu0
        %v2902 = vadd.f32 0.0, %v2901
        %2903 = vmatmul.f32.gmra.mxu0 %v2789
        %v2904 = vpop.f32.mrf.mxu0
        %v2905 = vadd.f32 0.0, %v2904
        %2906 = vmatmul.f32.gmra.mxu0 %v2792
        %v2907 = vpop.f32.mrf.mxu0
        %v2908 = vadd.f32 0.0, %v2907
        %2909 = vmatmul.f32.gmra.mxu0 %v2795
        %v2910 = vpop.f32.mrf.mxu0
        %v2911 = vadd.f32 0.0, %v2910
        %2912 = vmatmul.f32.gmra.mxu0 %v2798
        %v2913 = vpop.f32.mrf.mxu0
        %v2914 = vadd.f32 0.0, %v2913
        %2915 = vmatmul.f32.gmra.mxu0 %v2801
        %v2916 = vpop.f32.mrf.mxu0
        %v2917 = vadd.f32 0.0, %v2916
        %2918 = vdwg.mxu0
        %v2919 = vadd.f32 %v2639, %v2824
        %v2920 = vadd.f32 %v2640, %v2827
        %v2921 = vadd.f32 %v2641, %v2830
        %v2922 = vadd.f32 %v2642, %v2833
        %v2923 = vadd.f32 %v2643, %v2836
        %v2924 = vadd.f32 %v2644, %v2839
        %v2925 = vadd.f32 %v2645, %v2842
        %v2926 = vadd.f32 %v2646, %v2845
        %v2927 = vadd.f32 %v2647, %v2848
        %v2928 = vadd.f32 %v2648, %v2851
        %v2929 = vadd.f32 %v2649, %v2854
        %v2930 = vadd.f32 %v2650, %v2857
        %v2931 = vadd.f32 %v2651, %v2860
        %v2932 = vadd.f32 %v2652, %v2863
        %v2933 = vadd.f32 %v2653, %v2866
        %v2934 = vadd.f32 %v2654, %v2869
        %v2935 = vadd.f32 %v2655, %v2872
        %v2936 = vadd.f32 %v2656, %v2875
        %v2937 = vadd.f32 %v2657, %v2878
        %v2938 = vadd.f32 %v2658, %v2881
        %v2939 = vadd.f32 %v2659, %v2884
        %v2940 = vadd.f32 %v2660, %v2887
        %v2941 = vadd.f32 %v2661, %v2890
        %v2942 = vadd.f32 %v2662, %v2893
        %v2943 = vadd.f32 %v2663, %v2896
        %v2944 = vadd.f32 %v2664, %v2899
        %v2945 = vadd.f32 %v2665, %v2902
        %v2946 = vadd.f32 %v2666, %v2905
        %v2947 = vadd.f32 %v2667, %v2908
        %v2948 = vadd.f32 %v2668, %v2911
        %v2949 = vadd.f32 %v2669, %v2914
        %v2950 = vadd.f32 %v2670, %v2917
        %s2951 = scalar_lea.vmem [#allocation2], 28
        %v2952 = vld [vmem:[%s2951] sm:$0xf]
        %v2954 = vsel %vm1180, %v2952, 0
        %2956 = vmatpush.msra.mxu0 0.0
        %2957 = vmatpush.msra.mxu0 0.0
        %2958 = vmatpush.msra.mxu0 0.0
        %2959 = vmatpush.msra.mxu0 0.0
        %2960 = vmatpush.msra.mxu0 0.0
        %2961 = vmatpush.msra.mxu0 0.0
        %2962 = vmatpush.msra.mxu0 0.0
        %2963 = vmatpush.msra.mxu0 0.0
        %2964 = vmatpush.msra.mxu0 0.0
        %2965 = vmatpush.msra.mxu0 0.0
        %2966 = vmatpush.msra.mxu0 0.0
        %2967 = vmatpush.msra.mxu0 0.0
        %2968 = vmatpush.msra.mxu0 0.0
        %2969 = vmatpush.msra.mxu0 0.0
        %2970 = vmatpush.msra.mxu0 0.0
        %2971 = vmatpush.msra.mxu0 %v2954
        %2972 = vmatmul.f32.gmra.mxu0 %v1124
        %v2973 = vpop.f32.mrf.mxu0
        %v2974 = vadd.f32 0.0, %v2973
        %2975 = vmatmul.f32.gmra.mxu0 %v1126
        %v2976 = vpop.f32.mrf.mxu0
        %v2977 = vadd.f32 0.0, %v2976
        %2978 = vmatmul.f32.gmra.mxu0 %v1128
        %v2979 = vpop.f32.mrf.mxu0
        %v2980 = vadd.f32 0.0, %v2979
        %2981 = vmatmul.f32.gmra.mxu0 %v1130
        %v2982 = vpop.f32.mrf.mxu0
        %v2983 = vadd.f32 0.0, %v2982
        %2984 = vmatmul.f32.gmra.mxu0 %v1132
        %v2985 = vpop.f32.mrf.mxu0
        %v2986 = vadd.f32 0.0, %v2985
        %2987 = vmatmul.f32.gmra.mxu0 %v1134
        %v2988 = vpop.f32.mrf.mxu0
        %v2989 = vadd.f32 0.0, %v2988
        %2990 = vmatmul.f32.gmra.mxu0 %v1136
        %v2991 = vpop.f32.mrf.mxu0
        %v2992 = vadd.f32 0.0, %v2991
        %2993 = vmatmul.f32.gmra.mxu0 %v1138
        %v2994 = vpop.f32.mrf.mxu0
        %v2995 = vadd.f32 0.0, %v2994
        %2996 = vmatmul.f32.gmra.mxu0 %v1140
        %v2997 = vpop.f32.mrf.mxu0
        %v2998 = vadd.f32 0.0, %v2997
        %2999 = vmatmul.f32.gmra.mxu0 %v1142
        %v3000 = vpop.f32.mrf.mxu0
        %v3001 = vadd.f32 0.0, %v3000
        %3002 = vmatmul.f32.gmra.mxu0 %v1144
        %v3003 = vpop.f32.mrf.mxu0
        %v3004 = vadd.f32 0.0, %v3003
        %3005 = vmatmul.f32.gmra.mxu0 %v1146
        %v3006 = vpop.f32.mrf.mxu0
        %v3007 = vadd.f32 0.0, %v3006
        %3008 = vmatmul.f32.gmra.mxu0 %v1148
        %v3009 = vpop.f32.mrf.mxu0
        %v3010 = vadd.f32 0.0, %v3009
        %3011 = vmatmul.f32.gmra.mxu0 %v1150
        %v3012 = vpop.f32.mrf.mxu0
        %v3013 = vadd.f32 0.0, %v3012
        %3014 = vmatmul.f32.gmra.mxu0 %v1152
        %v3015 = vpop.f32.mrf.mxu0
        %v3016 = vadd.f32 0.0, %v3015
        %3017 = vmatmul.f32.gmra.mxu0 %v1154
        %v3018 = vpop.f32.mrf.mxu0
        %v3019 = vadd.f32 0.0, %v3018
        %3020 = vmatmul.f32.gmra.mxu0 %v1156
        %v3021 = vpop.f32.mrf.mxu0
        %v3022 = vadd.f32 0.0, %v3021
        %3023 = vmatmul.f32.gmra.mxu0 %v1158
        %v3024 = vpop.f32.mrf.mxu0
        %v3025 = vadd.f32 0.0, %v3024
        %3026 = vmatmul.f32.gmra.mxu0 %v1160
        %v3027 = vpop.f32.mrf.mxu0
        %v3028 = vadd.f32 0.0, %v3027
        %3029 = vmatmul.f32.gmra.mxu0 %v1162
        %v3030 = vpop.f32.mrf.mxu0
        %v3031 = vadd.f32 0.0, %v3030
        %3032 = vmatmul.f32.gmra.mxu0 %v1164
        %v3033 = vpop.f32.mrf.mxu0
        %v3034 = vadd.f32 0.0, %v3033
        %3035 = vmatmul.f32.gmra.mxu0 %v1166
        %v3036 = vpop.f32.mrf.mxu0
        %v3037 = vadd.f32 0.0, %v3036
        %3038 = vmatmul.f32.gmra.mxu0 %v1168
        %v3039 = vpop.f32.mrf.mxu0
        %v3040 = vadd.f32 0.0, %v3039
        %3041 = vmatmul.f32.gmra.mxu0 %v1170
        %v3042 = vpop.f32.mrf.mxu0
        %v3043 = vadd.f32 0.0, %v3042
        %3044 = vmatmul.f32.gmra.mxu0 %v1172
        %v3045 = vpop.f32.mrf.mxu0
        %v3046 = vadd.f32 0.0, %v3045
        %3047 = vmatmul.f32.gmra.mxu0 %v1174
        %v3048 = vpop.f32.mrf.mxu0
        %v3049 = vadd.f32 0.0, %v3048
        %3050 = vmatmul.f32.gmra.mxu0 %v1176
        %v3051 = vpop.f32.mrf.mxu0
        %v3052 = vadd.f32 0.0, %v3051
        %3053 = vmatmul.f32.gmra.mxu0 %v1178
        %v3054 = vpop.f32.mrf.mxu0
        %v3055 = vadd.f32 0.0, %v3054
        %3056 = vmatmul.f32.gmra.mxu0 %v2236
        %v3057 = vpop.f32.mrf.mxu0
        %v3058 = vadd.f32 0.0, %v3057
        %3059 = vmatmul.f32.gmra.mxu0 %v2238
        %v3060 = vpop.f32.mrf.mxu0
        %v3061 = vadd.f32 0.0, %v3060
        %3062 = vmatmul.f32.gmra.mxu0 %v1118
        %v3063 = vpop.f32.mrf.mxu0
        %v3064 = vadd.f32 0.0, %v3063
        %3065 = vmatmul.f32.gmra.mxu0 %v1118
        %v3066 = vpop.f32.mrf.mxu0
        %v3067 = vadd.f32 0.0, %v3066
        %3068 = vdwg.mxu0
        %v3069 = vadd.f32 %v2919, %v2974
        %v3070 = vadd.f32 %v2920, %v2977
        %v3071 = vadd.f32 %v2921, %v2980
        %v3072 = vadd.f32 %v2922, %v2983
        %v3073 = vadd.f32 %v2923, %v2986
        %v3074 = vadd.f32 %v2924, %v2989
        %v3075 = vadd.f32 %v2925, %v2992
        %v3076 = vadd.f32 %v2926, %v2995
        %v3077 = vadd.f32 %v2927, %v2998
        %v3078 = vadd.f32 %v2928, %v3001
        %v3079 = vadd.f32 %v2929, %v3004
        %v3080 = vadd.f32 %v2930, %v3007
        %v3081 = vadd.f32 %v2931, %v3010
        %v3082 = vadd.f32 %v2932, %v3013
        %v3083 = vadd.f32 %v2933, %v3016
        %v3084 = vadd.f32 %v2934, %v3019
        %v3085 = vadd.f32 %v2935, %v3022
        %v3086 = vadd.f32 %v2936, %v3025
        %v3087 = vadd.f32 %v2937, %v3028
        %v3088 = vadd.f32 %v2938, %v3031
        %v3089 = vadd.f32 %v2939, %v3034
        %v3090 = vadd.f32 %v2940, %v3037
        %v3091 = vadd.f32 %v2941, %v3040
        %v3092 = vadd.f32 %v2942, %v3043
        %v3093 = vadd.f32 %v2943, %v3046
        %v3094 = vadd.f32 %v2944, %v3049
        %v3095 = vadd.f32 %v2945, %v3052
        %v3096 = vadd.f32 %v2946, %v3055
        %v3097 = vadd.f32 %v2947, %v3058
        %v3098 = vadd.f32 %v2948, %v3061
        %v3099 = vadd.f32 %v2949, %v3064
        %v3100 = vadd.f32 %v2950, %v3067
        %v3101 = vsel %vm1541, %v1584, 0.0
        %v3102 = vsel %vm1542, %v1586, 0.0
        %v3103 = vsel %vm1543, %v1588, 0.0
        %v3104 = vsel %vm1544, %v1590, 0.0
        %v3105 = vsel %vm1545, %v1592, 0.0
        %v3106 = vsel %vm1546, %v1594, 0.0
        %v3107 = vsel %vm1547, %v1596, 0.0
        %v3108 = vsel %vm1548, %v1598, 0.0
        %v3109 = vsel %vm1549, %v1600, 0.0
        %v3110 = vsel %vm1550, %v1602, 0.0
        %v3111 = vsel %vm1551, %v1604, 0.0
        %v3112 = vsel %vm1552, %v1606, 0.0
        %v3113 = vsel %vm1553, %v1608, 0.0
        %v3114 = vsel %vm1554, %v1610, 0.0
        %v3115 = vsel %vm1555, %v1612, 0.0
        %v3116 = vsel %vm1556, %v1614, 0.0
        %v3117 = vsel %vm1557, %v1616, 0.0
        %v3118 = vsel %vm1558, %v1618, 0.0
        %v3119 = vsel %vm1559, %v1620, 0.0
        %v3120 = vsel %vm1560, %v1622, 0.0
        %v3121 = vsel %vm1561, %v1624, 0.0
        %v3122 = vsel %vm1562, %v1626, 0.0
        %v3123 = vsel %vm1563, %v1628, 0.0
        %v3124 = vsel %vm1564, %v1630, 0.0
        %v3125 = vsel %vm1565, %v1632, 0.0
        %v3126 = vsel %vm1566, %v1634, 0.0
        %v3127 = vsel %vm1567, %v1636, 0.0
        %v3128 = vsel %vm1568, %v1638, 0.0
        %v3129 = vsel %vm1569, %v2389, 0.0
        %v3130 = vsel %vm1570, %v2390, 0.0
        %v3131 = vsel %vm1571, %v1576, 0.0
        %v3132 = vsel %vm1572, %v1576, 0.0
        %s3133 = scalar_lea.vmem [#allocation2], 32
        %v3134 = vld [vmem:[%s3133] sm:$0xf]
        %v3136 = vsel %vm1117, %v3101, 0
        %v3139 = vsel %vm1117, %v3102, 0
        %v3142 = vsel %vm1117, %v3103, 0
        %v3145 = vsel %vm1117, %v3104, 0
        %v3148 = vsel %vm1117, %v3105, 0
        %v3151 = vsel %vm1117, %v3106, 0
        %v3154 = vsel %vm1117, %v3107, 0
        %v3157 = vsel %vm1117, %v3108, 0
        %v3160 = vsel %vm1117, %v3109, 0
        %v3163 = vsel %vm1117, %v3110, 0
        %v3166 = vsel %vm1117, %v3111, 0
        %v3169 = vsel %vm1117, %v3112, 0
        %v3172 = vsel %vm1117, %v3113, 0
        %v3175 = vsel %vm1117, %v3114, 0
        %v3178 = vsel %vm1117, %v3115, 0
        %v3181 = vsel %vm1117, %v3116, 0
        %v3184 = vsel %vm1117, %v3117, 0
        %v3187 = vsel %vm1117, %v3118, 0
        %v3190 = vsel %vm1117, %v3119, 0
        %v3193 = vsel %vm1117, %v3120, 0
        %v3196 = vsel %vm1117, %v3121, 0
        %v3199 = vsel %vm1117, %v3122, 0
        %v3202 = vsel %vm1117, %v3123, 0
        %v3205 = vsel %vm1117, %v3124, 0
        %v3208 = vsel %vm1117, %v3125, 0
        %v3211 = vsel %vm1117, %v3126, 0
        %v3214 = vsel %vm1117, %v3127, 0
        %v3217 = vsel %vm1117, %v3128, 0
        %v3220 = vsel %vm1117, %v3129, 0
        %v3223 = vsel %vm1117, %v3130, 0
        %v3226 = vsel %vm1117, %v3131, 0
        %v3229 = vsel %vm1117, %v3132, 0
        %v3232 = vsel %vm1180, %v3134, 0
        %3234 = vmatpush.msra.mxu0 0.0
        %3235 = vmatpush.msra.mxu0 0.0
        %3236 = vmatpush.msra.mxu0 0.0
        %3237 = vmatpush.msra.mxu0 0.0
        %3238 = vmatpush.msra.mxu0 0.0
        %3239 = vmatpush.msra.mxu0 0.0
        %3240 = vmatpush.msra.mxu0 0.0
        %3241 = vmatpush.msra.mxu0 0.0
        %3242 = vmatpush.msra.mxu0 0.0
        %3243 = vmatpush.msra.mxu0 0.0
        %3244 = vmatpush.msra.mxu0 0.0
        %3245 = vmatpush.msra.mxu0 0.0
        %3246 = vmatpush.msra.mxu0 0.0
        %3247 = vmatpush.msra.mxu0 0.0
        %3248 = vmatpush.msra.mxu0 0.0
        %3249 = vmatpush.msra.mxu0 %v3232
        %3250 = vmatmul.f32.gmra.mxu0 %v3136
        %v3251 = vpop.f32.mrf.mxu0
        %v3252 = vadd.f32 0.0, %v3251
        %3253 = vmatmul.f32.gmra.mxu0 %v3139
        %v3254 = vpop.f32.mrf.mxu0
        %v3255 = vadd.f32 0.0, %v3254
        %3256 = vmatmul.f32.gmra.mxu0 %v3142
        %v3257 = vpop.f32.mrf.mxu0
        %v3258 = vadd.f32 0.0, %v3257
        %3259 = vmatmul.f32.gmra.mxu0 %v3145
        %v3260 = vpop.f32.mrf.mxu0
        %v3261 = vadd.f32 0.0, %v3260
        %3262 = vmatmul.f32.gmra.mxu0 %v3148
        %v3263 = vpop.f32.mrf.mxu0
        %v3264 = vadd.f32 0.0, %v3263
        %3265 = vmatmul.f32.gmra.mxu0 %v3151
        %v3266 = vpop.f32.mrf.mxu0
        %v3267 = vadd.f32 0.0, %v3266
        %3268 = vmatmul.f32.gmra.mxu0 %v3154
        %v3269 = vpop.f32.mrf.mxu0
        %v3270 = vadd.f32 0.0, %v3269
        %3271 = vmatmul.f32.gmra.mxu0 %v3157
        %v3272 = vpop.f32.mrf.mxu0
        %v3273 = vadd.f32 0.0, %v3272
        %3274 = vmatmul.f32.gmra.mxu0 %v3160
        %v3275 = vpop.f32.mrf.mxu0
        %v3276 = vadd.f32 0.0, %v3275
        %3277 = vmatmul.f32.gmra.mxu0 %v3163
        %v3278 = vpop.f32.mrf.mxu0
        %v3279 = vadd.f32 0.0, %v3278
        %3280 = vmatmul.f32.gmra.mxu0 %v3166
        %v3281 = vpop.f32.mrf.mxu0
        %v3282 = vadd.f32 0.0, %v3281
        %3283 = vmatmul.f32.gmra.mxu0 %v3169
        %v3284 = vpop.f32.mrf.mxu0
        %v3285 = vadd.f32 0.0, %v3284
        %3286 = vmatmul.f32.gmra.mxu0 %v3172
        %v3287 = vpop.f32.mrf.mxu0
        %v3288 = vadd.f32 0.0, %v3287
        %3289 = vmatmul.f32.gmra.mxu0 %v3175
        %v3290 = vpop.f32.mrf.mxu0
        %v3291 = vadd.f32 0.0, %v3290
        %3292 = vmatmul.f32.gmra.mxu0 %v3178
        %v3293 = vpop.f32.mrf.mxu0
        %v3294 = vadd.f32 0.0, %v3293
        %3295 = vmatmul.f32.gmra.mxu0 %v3181
        %v3296 = vpop.f32.mrf.mxu0
        %v3297 = vadd.f32 0.0, %v3296
        %3298 = vmatmul.f32.gmra.mxu0 %v3184
        %v3299 = vpop.f32.mrf.mxu0
        %v3300 = vadd.f32 0.0, %v3299
        %3301 = vmatmul.f32.gmra.mxu0 %v3187
        %v3302 = vpop.f32.mrf.mxu0
        %v3303 = vadd.f32 0.0, %v3302
        %3304 = vmatmul.f32.gmra.mxu0 %v3190
        %v3305 = vpop.f32.mrf.mxu0
        %v3306 = vadd.f32 0.0, %v3305
        %3307 = vmatmul.f32.gmra.mxu0 %v3193
        %v3308 = vpop.f32.mrf.mxu0
        %v3309 = vadd.f32 0.0, %v3308
        %3310 = vmatmul.f32.gmra.mxu0 %v3196
        %v3311 = vpop.f32.mrf.mxu0
        %v3312 = vadd.f32 0.0, %v3311
        %3313 = vmatmul.f32.gmra.mxu0 %v3199
        %v3314 = vpop.f32.mrf.mxu0
        %v3315 = vadd.f32 0.0, %v3314
        %3316 = vmatmul.f32.gmra.mxu0 %v3202
        %v3317 = vpop.f32.mrf.mxu0
        %v3318 = vadd.f32 0.0, %v3317
        %3319 = vmatmul.f32.gmra.mxu0 %v3205
        %v3320 = vpop.f32.mrf.mxu0
        %v3321 = vadd.f32 0.0, %v3320
        %3322 = vmatmul.f32.gmra.mxu0 %v3208
        %v3323 = vpop.f32.mrf.mxu0
        %v3324 = vadd.f32 0.0, %v3323
        %3325 = vmatmul.f32.gmra.mxu0 %v3211
        %v3326 = vpop.f32.mrf.mxu0
        %v3327 = vadd.f32 0.0, %v3326
        %3328 = vmatmul.f32.gmra.mxu0 %v3214
        %v3329 = vpop.f32.mrf.mxu0
        %v3330 = vadd.f32 0.0, %v3329
        %3331 = vmatmul.f32.gmra.mxu0 %v3217
        %v3332 = vpop.f32.mrf.mxu0
        %v3333 = vadd.f32 0.0, %v3332
        %3334 = vmatmul.f32.gmra.mxu0 %v3220
        %v3335 = vpop.f32.mrf.mxu0
        %v3336 = vadd.f32 0.0, %v3335
        %3337 = vmatmul.f32.gmra.mxu0 %v3223
        %v3338 = vpop.f32.mrf.mxu0
        %v3339 = vadd.f32 0.0, %v3338
        %3340 = vmatmul.f32.gmra.mxu0 %v3226
        %v3341 = vpop.f32.mrf.mxu0
        %v3342 = vadd.f32 0.0, %v3341
        %3343 = vmatmul.f32.gmra.mxu0 %v3229
        %v3344 = vpop.f32.mrf.mxu0
        %v3345 = vadd.f32 0.0, %v3344
        %3346 = vdwg.mxu0
        %v3347 = vadd.f32 %v3069, %v3252
        %v3348 = vadd.f32 %v3070, %v3255
        %v3349 = vadd.f32 %v3071, %v3258
        %v3350 = vadd.f32 %v3072, %v3261
        %v3351 = vadd.f32 %v3073, %v3264
        %v3352 = vadd.f32 %v3074, %v3267
        %v3353 = vadd.f32 %v3075, %v3270
        %v3354 = vadd.f32 %v3076, %v3273
        %v3355 = vadd.f32 %v3077, %v3276
        %v3356 = vadd.f32 %v3078, %v3279
        %v3357 = vadd.f32 %v3079, %v3282
        %v3358 = vadd.f32 %v3080, %v3285
        %v3359 = vadd.f32 %v3081, %v3288
        %v3360 = vadd.f32 %v3082, %v3291
        %v3361 = vadd.f32 %v3083, %v3294
        %v3362 = vadd.f32 %v3084, %v3297
        %v3363 = vadd.f32 %v3085, %v3300
        %v3364 = vadd.f32 %v3086, %v3303
        %v3365 = vadd.f32 %v3087, %v3306
        %v3366 = vadd.f32 %v3088, %v3309
        %v3367 = vadd.f32 %v3089, %v3312
        %v3368 = vadd.f32 %v3090, %v3315
        %v3369 = vadd.f32 %v3091, %v3318
        %v3370 = vadd.f32 %v3092, %v3321
        %v3371 = vadd.f32 %v3093, %v3324
        %v3372 = vadd.f32 %v3094, %v3327
        %v3373 = vadd.f32 %v3095, %v3330
        %v3374 = vadd.f32 %v3096, %v3333
        %v3375 = vadd.f32 %v3097, %v3336
        %v3376 = vadd.f32 %v3098, %v3339
        %v3377 = vadd.f32 %v3099, %v3342
        %v3378 = vadd.f32 %v3100, %v3345
        %v3379 = vld [vmem:[%s2] sm:$0x1]
        %v3381 = vperm.slane %v3379, 0
        %v3383 = vadd.f32 %v3347, %v3381
        %v3384 = vadd.f32 %v3348, %v3381
        %v3385 = vadd.f32 %v3349, %v3381
        %v3386 = vadd.f32 %v3350, %v3381
        %v3387 = vadd.f32 %v3351, %v3381
        %v3388 = vadd.f32 %v3352, %v3381
        %v3389 = vadd.f32 %v3353, %v3381
        %v3390 = vadd.f32 %v3354, %v3381
        %v3391 = vadd.f32 %v3355, %v3381
        %v3392 = vadd.f32 %v3356, %v3381
        %v3393 = vadd.f32 %v3357, %v3381
        %v3394 = vadd.f32 %v3358, %v3381
        %v3395 = vadd.f32 %v3359, %v3381
        %v3396 = vadd.f32 %v3360, %v3381
        %v3397 = vadd.f32 %v3361, %v3381
        %v3398 = vadd.f32 %v3362, %v3381
        %v3399 = vadd.f32 %v3363, %v3381
        %v3400 = vadd.f32 %v3364, %v3381
        %v3401 = vadd.f32 %v3365, %v3381
        %v3402 = vadd.f32 %v3366, %v3381
        %v3403 = vadd.f32 %v3367, %v3381
        %v3404 = vadd.f32 %v3368, %v3381
        %v3405 = vadd.f32 %v3369, %v3381
        %v3406 = vadd.f32 %v3370, %v3381
        %v3407 = vadd.f32 %v3371, %v3381
        %v3408 = vadd.f32 %v3372, %v3381
        %v3409 = vadd.f32 %v3373, %v3381
        %v3410 = vadd.f32 %v3374, %v3381
        %v3411 = vadd.f32 %v3375, %v3381
        %v3412 = vadd.f32 %v3376, %v3381
        %v3413 = vadd.f32 %v3377, %v3381
        %v3414 = vadd.f32 %v3378, %v3381
        %v3415 = vmax.f32 %v3383, 0.0
        %v3416 = vmax.f32 %v3384, 0.0
        %v3417 = vmax.f32 %v3385, 0.0
        %v3418 = vmax.f32 %v3386, 0.0
        %v3419 = vmax.f32 %v3387, 0.0
        %v3420 = vmax.f32 %v3388, 0.0
        %v3421 = vmax.f32 %v3389, 0.0
        %v3422 = vmax.f32 %v3390, 0.0
        %v3423 = vmax.f32 %v3391, 0.0
        %v3424 = vmax.f32 %v3392, 0.0
        %v3425 = vmax.f32 %v3393, 0.0
        %v3426 = vmax.f32 %v3394, 0.0
        %v3427 = vmax.f32 %v3395, 0.0
        %v3428 = vmax.f32 %v3396, 0.0
        %v3429 = vmax.f32 %v3397, 0.0
        %v3430 = vmax.f32 %v3398, 0.0
        %v3431 = vmax.f32 %v3399, 0.0
        %v3432 = vmax.f32 %v3400, 0.0
        %v3433 = vmax.f32 %v3401, 0.0
        %v3434 = vmax.f32 %v3402, 0.0
        %v3435 = vmax.f32 %v3403, 0.0
        %v3436 = vmax.f32 %v3404, 0.0
        %v3437 = vmax.f32 %v3405, 0.0
        %v3438 = vmax.f32 %v3406, 0.0
        %v3439 = vmax.f32 %v3407, 0.0
        %v3440 = vmax.f32 %v3408, 0.0
        %v3441 = vmax.f32 %v3409, 0.0
        %v3442 = vmax.f32 %v3410, 0.0
        %v3443 = vmax.f32 %v3411, 0.0
        %v3444 = vmax.f32 %v3412, 0.0
        %v3445 = vmax.f32 %v3413, 0.0
        %v3446 = vmax.f32 %v3414, 0.0
        %v3479 = vrot.slane %v3415, 1
        %v3480 = vrot.slane %v3416, 1
        %v3481 = vsel %vm1574, %v3479, %v3480
        %v3482 = vrot.slane %v3417, 1
        %v3483 = vsel %vm1574, %v3480, %v3482
        %v3484 = vrot.slane %v3418, 1
        %v3485 = vsel %vm1574, %v3482, %v3484
        %v3486 = vrot.slane %v3419, 1
        %v3487 = vsel %vm1574, %v3484, %v3486
        %v3488 = vrot.slane %v3420, 1
        %v3489 = vsel %vm1574, %v3486, %v3488
        %v3490 = vrot.slane %v3421, 1
        %v3491 = vsel %vm1574, %v3488, %v3490
        %v3492 = vrot.slane %v3422, 1
        %v3493 = vsel %vm1574, %v3490, %v3492
        %v3494 = vrot.slane %v3423, 1
        %v3495 = vsel %vm1574, %v3492, %v3494
        %v3496 = vrot.slane %v3424, 1
        %v3497 = vsel %vm1574, %v3494, %v3496
        %v3498 = vrot.slane %v3425, 1
        %v3499 = vsel %vm1574, %v3496, %v3498
        %v3500 = vrot.slane %v3426, 1
        %v3501 = vsel %vm1574, %v3498, %v3500
        %v3502 = vrot.slane %v3427, 1
        %v3503 = vsel %vm1574, %v3500, %v3502
        %v3504 = vrot.slane %v3428, 1
        %v3505 = vsel %vm1574, %v3502, %v3504
        %v3506 = vrot.slane %v3429, 1
        %v3507 = vsel %vm1574, %v3504, %v3506
        %v3508 = vrot.slane %v3430, 1
        %v3509 = vsel %vm1574, %v3506, %v3508
        %v3510 = vrot.slane %v3431, 1
        %v3511 = vsel %vm1574, %v3508, %v3510
        %v3512 = vrot.slane %v3432, 1
        %v3513 = vsel %vm1574, %v3510, %v3512
        %v3514 = vrot.slane %v3433, 1
        %v3515 = vsel %vm1574, %v3512, %v3514
        %v3516 = vrot.slane %v3434, 1
        %v3517 = vsel %vm1574, %v3514, %v3516
        %v3518 = vrot.slane %v3435, 1
        %v3519 = vsel %vm1574, %v3516, %v3518
        %v3520 = vrot.slane %v3436, 1
        %v3521 = vsel %vm1574, %v3518, %v3520
        %v3522 = vrot.slane %v3437, 1
        %v3523 = vsel %vm1574, %v3520, %v3522
        %v3524 = vrot.slane %v3438, 1
        %v3525 = vsel %vm1574, %v3522, %v3524
        %v3526 = vrot.slane %v3439, 1
        %v3527 = vsel %vm1574, %v3524, %v3526
        %v3528 = vrot.slane %v3440, 1
        %v3529 = vsel %vm1574, %v3526, %v3528
        %v3530 = vrot.slane %v3441, 1
        %v3531 = vsel %vm1574, %v3528, %v3530
        %v3532 = vrot.slane %v3442, 1
        %v3533 = vsel %vm1574, %v3530, %v3532
        %v3534 = vrot.slane %v3443, 1
        %v3535 = vsel %vm1574, %v3532, %v3534
        %v3536 = vrot.slane %v3444, 1
        %v3537 = vsel %vm1574, %v3534, %v3536
        %v3538 = vrot.slane %v3445, 1
        %v3539 = vsel %vm1574, %v3536, %v3538
        %v3540 = vrot.slane %v3446, 1
        %v3541 = vsel %vm1574, %v3538, %v3540
        %v3542 = vsel %vm1574, %v3540, %v1575
        %v3575 = vmax.f32 %v3415, %v3481
        %v3576 = vmax.f32 %v3416, %v3483
        %v3577 = vmax.f32 %v3417, %v3485
        %v3578 = vmax.f32 %v3418, %v3487
        %v3579 = vmax.f32 %v3419, %v3489
        %v3580 = vmax.f32 %v3420, %v3491
        %v3581 = vmax.f32 %v3421, %v3493
        %v3582 = vmax.f32 %v3422, %v3495
        %v3583 = vmax.f32 %v3423, %v3497
        %v3584 = vmax.f32 %v3424, %v3499
        %v3585 = vmax.f32 %v3425, %v3501
        %v3586 = vmax.f32 %v3426, %v3503
        %v3587 = vmax.f32 %v3427, %v3505
        %v3588 = vmax.f32 %v3428, %v3507
        %v3589 = vmax.f32 %v3429, %v3509
        %v3590 = vmax.f32 %v3430, %v3511
        %v3591 = vmax.f32 %v3431, %v3513
        %v3592 = vmax.f32 %v3432, %v3515
        %v3593 = vmax.f32 %v3433, %v3517
        %v3594 = vmax.f32 %v3434, %v3519
        %v3595 = vmax.f32 %v3435, %v3521
        %v3596 = vmax.f32 %v3436, %v3523
        %v3597 = vmax.f32 %v3437, %v3525
        %v3598 = vmax.f32 %v3438, %v3527
        %v3599 = vmax.f32 %v3439, %v3529
        %v3600 = vmax.f32 %v3440, %v3531
        %v3601 = vmax.f32 %v3441, %v3533
        %v3602 = vmax.f32 %v3442, %v3535
        %v3603 = vmax.f32 %v3443, %v3537
        %v3604 = vmax.f32 %v3444, %v3539
        %v3605 = vmax.f32 %v3445, %v3541
        %v3606 = vmax.f32 %v3446, %v3542
        %v3607 = vmax.f32 %v1576, 0.0
        %v3608 = vmax.f32 %v3575, %v3577
        %v3609 = vmax.f32 %v3576, %v3578
        %v3610 = vmax.f32 %v3577, %v3579
        %v3611 = vmax.f32 %v3578, %v3580
        %v3612 = vmax.f32 %v3579, %v3581
        %v3613 = vmax.f32 %v3580, %v3582
        %v3614 = vmax.f32 %v3581, %v3583
        %v3615 = vmax.f32 %v3582, %v3584
        %v3616 = vmax.f32 %v3583, %v3585
        %v3617 = vmax.f32 %v3584, %v3586
        %v3618 = vmax.f32 %v3585, %v3587
        %v3619 = vmax.f32 %v3586, %v3588
        %v3620 = vmax.f32 %v3587, %v3589
        %v3621 = vmax.f32 %v3588, %v3590
        %v3622 = vmax.f32 %v3589, %v3591
        %v3623 = vmax.f32 %v3590, %v3592
        %v3624 = vmax.f32 %v3591, %v3593
        %v3625 = vmax.f32 %v3592, %v3594
        %v3626 = vmax.f32 %v3593, %v3595
        %v3627 = vmax.f32 %v3594, %v3596
        %v3628 = vmax.f32 %v3595, %v3597
        %v3629 = vmax.f32 %v3596, %v3598
        %v3630 = vmax.f32 %v3597, %v3599
        %v3631 = vmax.f32 %v3598, %v3600
        %v3632 = vmax.f32 %v3599, %v3601
        %v3633 = vmax.f32 %v3600, %v3602
        %v3634 = vmax.f32 %v3601, %v3603
        %v3635 = vmax.f32 %v3602, %v3604
        %v3636 = vmax.f32 %v3603, %v3605
        %v3637 = vmax.f32 %v3604, %v3606
        %v3638 = vmax.f32 %v3605, %v3607
        %v3639 = vmax.f32 %v3606, %v3607
        %v3640 = vld [vmem:[%s5] sm:$0xff]
        %v3641 = vld [vmem:[%s5 + $0x8] sm:$0xff]
        %v3642 = vld [vmem:[%s5 + $0x10] sm:$0xff]
        %v3643 = vld [vmem:[%s5 + $0x18] sm:$0xff]
        %v3644 = vld [vmem:[%s5 + $0x20] sm:$0xff]
        %v3645 = vld [vmem:[%s5 + $0x28] sm:$0xff]
        %v3646 = vld [vmem:[%s5 + $0x30] sm:$0xff]
        %v3647 = vld [vmem:[%s5 + $0x38] sm:$0xff]
        %v3648 = vld [vmem:[%s5 + $0x40] sm:$0xff]
        %v3649 = vld [vmem:[%s5 + $0x48] sm:$0xff]
        %v3650 = vld [vmem:[%s5 + $0x50] sm:$0xff]
        %v3651 = vld [vmem:[%s5 + $0x58] sm:$0xff]
        %v3652 = vld [vmem:[%s5 + $0x60] sm:$0xff]
        %v3653 = vld [vmem:[%s5 + $0x68] sm:$0xff]
        %v3654 = vld [vmem:[%s5 + $0x70] sm:$0xff]
        %v3655 = vld [vmem:[%s5 + $0x78] sm:$0xff]
        %3656 = vmatpush.msra.mxu0 %v3623
        %3657 = vmatpush.msra.mxu0 %v3622
        %3658 = vmatpush.msra.mxu0 %v3621
        %3659 = vmatpush.msra.mxu0 %v3620
        %3660 = vmatpush.msra.mxu0 %v3619
        %3661 = vmatpush.msra.mxu0 %v3618
        %3662 = vmatpush.msra.mxu0 %v3617
        %3663 = vmatpush.msra.mxu0 %v3616
        %3664 = vmatpush.msra.mxu0 %v3615
        %3665 = vmatpush.msra.mxu0 %v3614
        %3666 = vmatpush.msra.mxu0 %v3613
        %3667 = vmatpush.msra.mxu0 %v3612
        %3668 = vmatpush.msra.mxu0 %v3611
        %3669 = vmatpush.msra.mxu0 %v3610
        %3670 = vmatpush.msra.mxu0 %v3609
        %3671 = vmatpush.msra.mxu0 %v3608
        %3672 = vmatmul.f32.gmra.mxu0 %v3640
        %v3673 = vpop.f32.mrf.mxu0
        %v3674 = vadd.f32 0.0, %v3673
        %3675 = vmatmul.f32.gmra.mxu0 %v3642
        %v3676 = vpop.f32.mrf.mxu0
        %v3677 = vadd.f32 0.0, %v3676
        %3678 = vmatmul.f32.gmra.mxu0 %v3644
        %v3679 = vpop.f32.mrf.mxu0
        %v3680 = vadd.f32 0.0, %v3679
        %3681 = vmatmul.f32.gmra.mxu0 %v3646
        %v3682 = vpop.f32.mrf.mxu0
        %v3683 = vadd.f32 0.0, %v3682
        %3684 = vmatmul.f32.gmra.mxu0 %v3648
        %v3685 = vpop.f32.mrf.mxu0
        %v3686 = vadd.f32 0.0, %v3685
        %3687 = vmatmul.f32.gmra.mxu0 %v3650
        %v3688 = vpop.f32.mrf.mxu0
        %v3689 = vadd.f32 0.0, %v3688
        %3690 = vmatmul.f32.gmra.mxu0 %v3652
        %v3691 = vpop.f32.mrf.mxu0
        %v3692 = vadd.f32 0.0, %v3691
        %3693 = vmatmul.f32.gmra.mxu0 %v3654
        %v3694 = vpop.f32.mrf.mxu0
        %v3695 = vadd.f32 0.0, %v3694
        %3696 = vdwg.mxu0
        %3697 = vmatpush.msra.mxu0 %v3639
        %3698 = vmatpush.msra.mxu0 %v3638
        %3699 = vmatpush.msra.mxu0 %v3637
        %3700 = vmatpush.msra.mxu0 %v3636
        %3701 = vmatpush.msra.mxu0 %v3635
        %3702 = vmatpush.msra.mxu0 %v3634
        %3703 = vmatpush.msra.mxu0 %v3633
        %3704 = vmatpush.msra.mxu0 %v3632
        %3705 = vmatpush.msra.mxu0 %v3631
        %3706 = vmatpush.msra.mxu0 %v3630
        %3707 = vmatpush.msra.mxu0 %v3629
        %3708 = vmatpush.msra.mxu0 %v3628
        %3709 = vmatpush.msra.mxu0 %v3627
        %3710 = vmatpush.msra.mxu0 %v3626
        %3711 = vmatpush.msra.mxu0 %v3625
        %3712 = vmatpush.msra.mxu0 %v3624
        %3713 = vmatmul.f32.gmra.mxu0 %v3641
        %v3714 = vpop.f32.mrf.mxu0
        %v3715 = vadd.f32 %v3674, %v3714
        %3716 = vmatmul.f32.gmra.mxu0 %v3643
        %v3717 = vpop.f32.mrf.mxu0
        %v3718 = vadd.f32 %v3677, %v3717
        %3719 = vmatmul.f32.gmra.mxu0 %v3645
        %v3720 = vpop.f32.mrf.mxu0
        %v3721 = vadd.f32 %v3680, %v3720
        %3722 = vmatmul.f32.gmra.mxu0 %v3647
        %v3723 = vpop.f32.mrf.mxu0
        %v3724 = vadd.f32 %v3683, %v3723
        %3725 = vmatmul.f32.gmra.mxu0 %v3649
        %v3726 = vpop.f32.mrf.mxu0
        %v3727 = vadd.f32 %v3686, %v3726
        %3728 = vmatmul.f32.gmra.mxu0 %v3651
        %v3729 = vpop.f32.mrf.mxu0
        %v3730 = vadd.f32 %v3689, %v3729
        %3731 = vmatmul.f32.gmra.mxu0 %v3653
        %v3732 = vpop.f32.mrf.mxu0
        %v3733 = vadd.f32 %v3692, %v3732
        %3734 = vmatmul.f32.gmra.mxu0 %v3655
        %v3735 = vpop.f32.mrf.mxu0
        %v3736 = vadd.f32 %v3695, %v3735
        %3737 = vdwg.mxu0
        %vm3738 = vcmp.lt.s32.totalorder %v413, 0
        %v3739 = vsub.s32 0, %v413
        %v3740 = vsel %vm3738, %v3739, %v413
        %v3741 = vshrl.u32 %v3740, 3
        %v3742 = vand.u32 %v3740, 7
        %v3743 = vsub.s32 0, %v3742
        %v3744 = vsel %vm3738, %v3743, %v3742
        %vm3745 = vcmp.lt.s32.totalorder %v414, 0
        %v3746 = vsub.s32 0, %v414
        %v3747 = vsel %vm3745, %v3746, %v414
        %v3748 = vshrl.u32 %v3747, 3
        %v3749 = vand.u32 %v3747, 7
        %v3750 = vsub.s32 0, %v3749
        %v3751 = vsel %vm3745, %v3750, %v3749
        %vm3752 = vcmp.lt.s32.totalorder %v415, 0
        %v3753 = vsub.s32 0, %v415
        %v3754 = vsel %vm3752, %v3753, %v415
        %v3755 = vshrl.u32 %v3754, 3
        %v3756 = vand.u32 %v3754, 7
        %v3757 = vsub.s32 0, %v3756
        %v3758 = vsel %vm3752, %v3757, %v3756
        %vm3759 = vcmp.lt.s32.totalorder %v416, 0
        %v3760 = vsub.s32 0, %v416
        %v3761 = vsel %vm3759, %v3760, %v416
        %v3762 = vshrl.u32 %v3761, 3
        %v3763 = vand.u32 %v3761, 7
        %v3764 = vsub.s32 0, %v3763
        %v3765 = vsel %vm3759, %v3764, %v3763
        %vm3766 = vcmp.lt.s32.totalorder %v417, 0
        %v3767 = vsub.s32 0, %v417
        %v3768 = vsel %vm3766, %v3767, %v417
        %v3769 = vshrl.u32 %v3768, 3
        %v3770 = vand.u32 %v3768, 7
        %v3771 = vsub.s32 0, %v3770
        %v3772 = vsel %vm3766, %v3771, %v3770
        %vm3773 = vcmp.lt.s32.totalorder %v418, 0
        %v3774 = vsub.s32 0, %v418
        %v3775 = vsel %vm3773, %v3774, %v418
        %v3776 = vshrl.u32 %v3775, 3
        %v3777 = vand.u32 %v3775, 7
        %v3778 = vsub.s32 0, %v3777
        %v3779 = vsel %vm3773, %v3778, %v3777
        %vm3780 = vcmp.lt.s32.totalorder %v419, 0
        %v3781 = vsub.s32 0, %v419
        %v3782 = vsel %vm3780, %v3781, %v419
        %v3783 = vshrl.u32 %v3782, 3
        %v3784 = vand.u32 %v3782, 7
        %v3785 = vsub.s32 0, %v3784
        %v3786 = vsel %vm3780, %v3785, %v3784
        %vm3787 = vcmp.lt.s32.totalorder %v420, 0
        %v3788 = vsub.s32 0, %v420
        %v3789 = vsel %vm3787, %v3788, %v420
        %v3790 = vshrl.u32 %v3789, 3
        %v3791 = vand.u32 %v3789, 7
        %v3792 = vsub.s32 0, %v3791
        %v3793 = vsel %vm3787, %v3792, %v3791
        %vm3794 = vcmp.ne.s32.totalorder %v3744, 0
        %vm3795 = vcmp.ne.s32.totalorder %v3751, 0
        %vm3796 = vcmp.ne.s32.totalorder %v3758, 0
        %vm3797 = vcmp.ne.s32.totalorder %v3765, 0
        %vm3798 = vcmp.ne.s32.totalorder %v3772, 0
        %vm3799 = vcmp.ne.s32.totalorder %v3779, 0
        %vm3800 = vcmp.ne.s32.totalorder %v3786, 0
        %vm3801 = vcmp.ne.s32.totalorder %v3793, 0
        %vm3802 = vcmp.lt.s32.totalorder %v3744, 0
        %vm3803 = vcmp.lt.s32.totalorder %v3751, 0
        %vm3804 = vcmp.lt.s32.totalorder %v3758, 0
        %vm3805 = vcmp.lt.s32.totalorder %v3765, 0
        %vm3806 = vcmp.lt.s32.totalorder %v3772, 0
        %vm3807 = vcmp.lt.s32.totalorder %v3779, 0
        %vm3808 = vcmp.lt.s32.totalorder %v3786, 0
        %vm3809 = vcmp.lt.s32.totalorder %v3793, 0
        %vm3810 = vmand %vm3802, %vm3794
        %vm3811 = vmand %vm3803, %vm3795
        %vm3812 = vmand %vm3804, %vm3796
        %vm3813 = vmand %vm3805, %vm3797
        %vm3814 = vmand %vm3806, %vm3798
        %vm3815 = vmand %vm3807, %vm3799
        %vm3816 = vmand %vm3808, %vm3800
        %vm3817 = vmand %vm3809, %vm3801
        %v3818 = vadd.s32 %v3744, 8
        %v3819 = vadd.s32 %v3751, 8
        %v3820 = vadd.s32 %v3758, 8
        %v3821 = vadd.s32 %v3765, 8
        %v3822 = vadd.s32 %v3772, 8
        %v3823 = vadd.s32 %v3779, 8
        %v3824 = vadd.s32 %v3786, 8
        %v3825 = vadd.s32 %v3793, 8
        %v3826 = vsel %vm3810, %v3818, %v3744
        %v3827 = vsel %vm3811, %v3819, %v3751
        %v3828 = vsel %vm3812, %v3820, %v3758
        %v3829 = vsel %vm3813, %v3821, %v3765
        %v3830 = vsel %vm3814, %v3822, %v3772
        %v3831 = vsel %vm3815, %v3823, %v3779
        %v3832 = vsel %vm3816, %v3824, %v3786
        %v3833 = vsel %vm3817, %v3825, %v3793
        %vm3834 = vcmp.ge.s32.totalorder %v3826, 1
        %vm3835 = vcmp.ge.s32.totalorder %v3827, 1
        %vm3836 = vcmp.ge.s32.totalorder %v3828, 1
        %vm3837 = vcmp.ge.s32.totalorder %v3829, 1
        %vm3838 = vcmp.ge.s32.totalorder %v3830, 1
        %vm3839 = vcmp.ge.s32.totalorder %v3831, 1
        %vm3840 = vcmp.ge.s32.totalorder %v3832, 1
        %vm3841 = vcmp.ge.s32.totalorder %v3833, 1
        %vm3842 = vcmp.le.s32.totalorder %v3826, 6
        %vm3843 = vcmp.le.s32.totalorder %v3827, 6
        %vm3844 = vcmp.le.s32.totalorder %v3828, 6
        %vm3845 = vcmp.le.s32.totalorder %v3829, 6
        %vm3846 = vcmp.le.s32.totalorder %v3830, 6
        %vm3847 = vcmp.le.s32.totalorder %v3831, 6
        %vm3848 = vcmp.le.s32.totalorder %v3832, 6
        %vm3849 = vcmp.le.s32.totalorder %v3833, 6
        %v3850 = vsel %vm3834, 1, 0
        %v3851 = vsel %vm3835, 1, 0
        %v3852 = vsel %vm3836, 1, 0
        %v3853 = vsel %vm3837, 1, 0
        %v3854 = vsel %vm3838, 1, 0
        %v3855 = vsel %vm3839, 1, 0
        %v3856 = vsel %vm3840, 1, 0
        %v3857 = vsel %vm3841, 1, 0
        %vm3858 = vcmp.eq.s32.totalorder %v3850, 1
        %vm3859 = vcmp.eq.s32.totalorder %v3851, 1
        %vm3860 = vcmp.eq.s32.totalorder %v3852, 1
        %vm3861 = vcmp.eq.s32.totalorder %v3853, 1
        %vm3862 = vcmp.eq.s32.totalorder %v3854, 1
        %vm3863 = vcmp.eq.s32.totalorder %v3855, 1
        %vm3864 = vcmp.eq.s32.totalorder %v3856, 1
        %vm3865 = vcmp.eq.s32.totalorder %v3857, 1
        %v3873 = vrot.slane %v3715, 7
        %v3874 = vsel %vm988, %v989, %v3873
        %v3875 = vrot.slane %v3718, 7
        %v3876 = vsel %vm988, %v3873, %v3875
        %v3877 = vrot.slane %v3721, 7
        %v3878 = vsel %vm988, %v3875, %v3877
        %v3879 = vrot.slane %v3724, 7
        %v3880 = vsel %vm988, %v3877, %v3879
        %v3881 = vrot.slane %v3727, 7
        %v3882 = vsel %vm988, %v3879, %v3881
        %v3883 = vrot.slane %v3730, 7
        %v3884 = vsel %vm988, %v3881, %v3883
        %v3885 = vrot.slane %v3733, 7
        %v3886 = vsel %vm988, %v3883, %v3885
        %v3894 = vsel %vm3858, %v990, 0.0
        %v3895 = vsel %vm3859, %v3874, 0.0
        %v3896 = vsel %vm3860, %v3876, 0.0
        %v3897 = vsel %vm3861, %v3878, 0.0
        %v3898 = vsel %vm3862, %v3880, 0.0
        %v3899 = vsel %vm3863, %v3882, 0.0
        %v3900 = vsel %vm3864, %v3884, 0.0
        %v3901 = vsel %vm3865, %v3886, 0.0
        %v3902 = vld [vmem:[#allocation5] sm:$0xff]
        %v3903 = vld [vmem:[#allocation5 + $0x8] sm:$0xff]
        %v3904 = vld [vmem:[#allocation5 + $0x10] sm:$0xff]
        %v3905 = vld [vmem:[#allocation5 + $0x18] sm:$0xff]
        %s3906 = scalar_lea.vmem [#allocation5], 32
        %v3907 = vld [vmem:[%s3906] sm:$0xff]
        %v3908 = vld [vmem:[%s3906 + $0x8] sm:$0xff]
        %v3909 = vld [vmem:[%s3906 + $0x10] sm:$0xff]
        %v3910 = vld [vmem:[%s3906 + $0x18] sm:$0xff]
        %vm3911 = vcmask 261120
        %v3912 = vsel %vm3911, 0.0, 0
        %v3914 = vsel %vm3911, %v3715, 0
        %v3916 = vsel %vm3911, %v3718, 0
        %v3918 = vsel %vm3911, %v3721, 0
        %v3920 = vsel %vm3911, %v3724, 0
        %v3922 = vsel %vm3911, %v3727, 0
        %v3924 = vsel %vm3911, %v3730, 0
        %v3926 = vsel %vm3911, %v3733, 0
        %3928 = vmatpush.msra.mxu0 0.0
        %3929 = vmatpush.msra.mxu0 0.0
        %3930 = vmatpush.msra.mxu0 0.0
        %3931 = vmatpush.msra.mxu0 0.0
        %3932 = vmatpush.msra.mxu0 0.0
        %3933 = vmatpush.msra.mxu0 0.0
        %3934 = vmatpush.msra.mxu0 0.0
        %3935 = vmatpush.msra.mxu0 0.0
        %3936 = vmatpush.msra.mxu0 0.0
        %3937 = vmatpush.msra.mxu0 0.0
        %3938 = vmatpush.msra.mxu0 0.0
        %3939 = vmatpush.msra.mxu0 0.0
        %3940 = vmatpush.msra.mxu0 %v3910
        %3941 = vmatpush.msra.mxu0 %v3909
        %3942 = vmatpush.msra.mxu0 %v3908
        %3943 = vmatpush.msra.mxu0 %v3907
        %3944 = vmatmul.f32.gmra.mxu0 %v3912
        %v3945 = vpop.f32.mrf.mxu0
        %v3946 = vadd.f32 0.0, %v3945
        %3947 = vmatmul.f32.gmra.mxu0 %v3914
        %v3948 = vpop.f32.mrf.mxu0
        %v3949 = vadd.f32 0.0, %v3948
        %3950 = vmatmul.f32.gmra.mxu0 %v3916
        %v3951 = vpop.f32.mrf.mxu0
        %v3952 = vadd.f32 0.0, %v3951
        %3953 = vmatmul.f32.gmra.mxu0 %v3918
        %v3954 = vpop.f32.mrf.mxu0
        %v3955 = vadd.f32 0.0, %v3954
        %3956 = vmatmul.f32.gmra.mxu0 %v3920
        %v3957 = vpop.f32.mrf.mxu0
        %v3958 = vadd.f32 0.0, %v3957
        %3959 = vmatmul.f32.gmra.mxu0 %v3922
        %v3960 = vpop.f32.mrf.mxu0
        %v3961 = vadd.f32 0.0, %v3960
        %3962 = vmatmul.f32.gmra.mxu0 %v3924
        %v3963 = vpop.f32.mrf.mxu0
        %v3964 = vadd.f32 0.0, %v3963
        %3965 = vmatmul.f32.gmra.mxu0 %v3926
        %v3966 = vpop.f32.mrf.mxu0
        %v3967 = vadd.f32 0.0, %v3966
        %3968 = vdwg.mxu0
        %v3970 = vsel %vm3911, %v3894, 0
        %v3973 = vsel %vm3911, %v3895, 0
        %v3976 = vsel %vm3911, %v3896, 0
        %v3979 = vsel %vm3911, %v3897, 0
        %v3982 = vsel %vm3911, %v3898, 0
        %v3985 = vsel %vm3911, %v3899, 0
        %v3988 = vsel %vm3911, %v3900, 0
        %v3991 = vsel %vm3911, %v3901, 0
        %3993 = vmatpush.msra.mxu0 0.0
        %3994 = vmatpush.msra.mxu0 0.0
        %3995 = vmatpush.msra.mxu0 0.0
        %3996 = vmatpush.msra.mxu0 0.0
        %3997 = vmatpush.msra.mxu0 0.0
        %3998 = vmatpush.msra.mxu0 0.0
        %3999 = vmatpush.msra.mxu0 0.0
        %4000 = vmatpush.msra.mxu0 0.0
        %4001 = vmatpush.msra.mxu0 0.0
        %4002 = vmatpush.msra.mxu0 0.0
        %4003 = vmatpush.msra.mxu0 0.0
        %4004 = vmatpush.msra.mxu0 0.0
        %4005 = vmatpush.msra.mxu0 %v3905
        %4006 = vmatpush.msra.mxu0 %v3904
        %4007 = vmatpush.msra.mxu0 %v3903
        %4008 = vmatpush.msra.mxu0 %v3902
        %4009 = vmatmul.f32.gmra.mxu0 %v3970
        %v4010 = vpop.f32.mrf.mxu0
        %v4011 = vadd.f32 %v3946, %v4010
        %4012 = vmatmul.f32.gmra.mxu0 %v3973
        %v4013 = vpop.f32.mrf.mxu0
        %v4014 = vadd.f32 %v3949, %v4013
        %4015 = vmatmul.f32.gmra.mxu0 %v3976
        %v4016 = vpop.f32.mrf.mxu0
        %v4017 = vadd.f32 %v3952, %v4016
        %4018 = vmatmul.f32.gmra.mxu0 %v3979
        %v4019 = vpop.f32.mrf.mxu0
        %v4020 = vadd.f32 %v3955, %v4019
        %4021 = vmatmul.f32.gmra.mxu0 %v3982
        %v4022 = vpop.f32.mrf.mxu0
        %v4023 = vadd.f32 %v3958, %v4022
        %4024 = vmatmul.f32.gmra.mxu0 %v3985
        %v4025 = vpop.f32.mrf.mxu0
        %v4026 = vadd.f32 %v3961, %v4025
        %4027 = vmatmul.f32.gmra.mxu0 %v3988
        %v4028 = vpop.f32.mrf.mxu0
        %v4029 = vadd.f32 %v3964, %v4028
        %4030 = vmatmul.f32.gmra.mxu0 %v3991
        %v4031 = vpop.f32.mrf.mxu0
        %v4032 = vadd.f32 %v3967, %v4031
        %4033 = vdwg.mxu0
        %v4034 = vsel %vm3842, 1, 0
        %v4035 = vsel %vm3843, 1, 0
        %v4036 = vsel %vm3844, 1, 0
        %v4037 = vsel %vm3845, 1, 0
        %v4038 = vsel %vm3846, 1, 0
        %v4039 = vsel %vm3847, 1, 0
        %v4040 = vsel %vm3848, 1, 0
        %v4041 = vsel %vm3849, 1, 0
        %vm4042 = vcmp.eq.s32.totalorder %v4034, 1
        %vm4043 = vcmp.eq.s32.totalorder %v4035, 1
        %vm4044 = vcmp.eq.s32.totalorder %v4036, 1
        %vm4045 = vcmp.eq.s32.totalorder %v4037, 1
        %vm4046 = vcmp.eq.s32.totalorder %v4038, 1
        %vm4047 = vcmp.eq.s32.totalorder %v4039, 1
        %vm4048 = vcmp.eq.s32.totalorder %v4040, 1
        %vm4049 = vcmp.eq.s32.totalorder %v4041, 1
        %v4051 = vrot.slane %v3715, 1
        %v4052 = vsel %vm1574, %v1575, %v4051
        %v4053 = vrot.slane %v3718, 1
        %v4054 = vsel %vm1574, %v4051, %v4053
        %v4055 = vrot.slane %v3721, 1
        %v4056 = vsel %vm1574, %v4053, %v4055
        %v4057 = vrot.slane %v3724, 1
        %v4058 = vsel %vm1574, %v4055, %v4057
        %v4059 = vrot.slane %v3727, 1
        %v4060 = vsel %vm1574, %v4057, %v4059
        %v4061 = vrot.slane %v3730, 1
        %v4062 = vsel %vm1574, %v4059, %v4061
        %v4063 = vrot.slane %v3733, 1
        %v4064 = vsel %vm1574, %v4061, %v4063
        %v4065 = vrot.slane %v3736, 1
        %v4066 = vsel %vm1574, %v4063, %v4065
        %v4075 = vsel %vm4042, %v4052, 0.0
        %v4076 = vsel %vm4043, %v4054, 0.0
        %v4077 = vsel %vm4044, %v4056, 0.0
        %v4078 = vsel %vm4045, %v4058, 0.0
        %v4079 = vsel %vm4046, %v4060, 0.0
        %v4080 = vsel %vm4047, %v4062, 0.0
        %v4081 = vsel %vm4048, %v4064, 0.0
        %v4082 = vsel %vm4049, %v4066, 0.0
        %s4083 = scalar_lea.vmem [#allocation5], 64
        %v4084 = vld [vmem:[%s4083] sm:$0xff]
        %v4085 = vld [vmem:[%s4083 + $0x8] sm:$0xff]
        %v4086 = vld [vmem:[%s4083 + $0x10] sm:$0xff]
        %v4087 = vld [vmem:[%s4083 + $0x18] sm:$0xff]
        %v4089 = vsel %vm3911, %v4075, 0
        %v4092 = vsel %vm3911, %v4076, 0
        %v4095 = vsel %vm3911, %v4077, 0
        %v4098 = vsel %vm3911, %v4078, 0
        %v4101 = vsel %vm3911, %v4079, 0
        %v4104 = vsel %vm3911, %v4080, 0
        %v4107 = vsel %vm3911, %v4081, 0
        %v4110 = vsel %vm3911, %v4082, 0
        %4112 = vmatpush.msra.mxu0 0.0
        %4113 = vmatpush.msra.mxu0 0.0
        %4114 = vmatpush.msra.mxu0 0.0
        %4115 = vmatpush.msra.mxu0 0.0
        %4116 = vmatpush.msra.mxu0 0.0
        %4117 = vmatpush.msra.mxu0 0.0
        %4118 = vmatpush.msra.mxu0 0.0
        %4119 = vmatpush.msra.mxu0 0.0
        %4120 = vmatpush.msra.mxu0 0.0
        %4121 = vmatpush.msra.mxu0 0.0
        %4122 = vmatpush.msra.mxu0 0.0
        %4123 = vmatpush.msra.mxu0 0.0
        %4124 = vmatpush.msra.mxu0 %v4087
        %4125 = vmatpush.msra.mxu0 %v4086
        %4126 = vmatpush.msra.mxu0 %v4085
        %4127 = vmatpush.msra.mxu0 %v4084
        %4128 = vmatmul.f32.gmra.mxu0 %v4089
        %v4129 = vpop.f32.mrf.mxu0
        %v4130 = vadd.f32 0.0, %v4129
        %4131 = vmatmul.f32.gmra.mxu0 %v4092
        %v4132 = vpop.f32.mrf.mxu0
        %v4133 = vadd.f32 0.0, %v4132
        %4134 = vmatmul.f32.gmra.mxu0 %v4095
        %v4135 = vpop.f32.mrf.mxu0
        %v4136 = vadd.f32 0.0, %v4135
        %4137 = vmatmul.f32.gmra.mxu0 %v4098
        %v4138 = vpop.f32.mrf.mxu0
        %v4139 = vadd.f32 0.0, %v4138
        %4140 = vmatmul.f32.gmra.mxu0 %v4101
        %v4141 = vpop.f32.mrf.mxu0
        %v4142 = vadd.f32 0.0, %v4141
        %4143 = vmatmul.f32.gmra.mxu0 %v4104
        %v4144 = vpop.f32.mrf.mxu0
        %v4145 = vadd.f32 0.0, %v4144
        %4146 = vmatmul.f32.gmra.mxu0 %v4107
        %v4147 = vpop.f32.mrf.mxu0
        %v4148 = vadd.f32 0.0, %v4147
        %4149 = vmatmul.f32.gmra.mxu0 %v4110
        %v4150 = vpop.f32.mrf.mxu0
        %v4151 = vadd.f32 0.0, %v4150
        %4152 = vdwg.mxu0
        %v4153 = vadd.f32 %v4011, %v4130
        %v4154 = vadd.f32 %v4014, %v4133
        %v4155 = vadd.f32 %v4017, %v4136
        %v4156 = vadd.f32 %v4020, %v4139
        %v4157 = vadd.f32 %v4023, %v4142
        %v4158 = vadd.f32 %v4026, %v4145
        %v4159 = vadd.f32 %v4029, %v4148
        %v4160 = vadd.f32 %v4032, %v4151
        %v4161 = vrot.slane %v3736, 7
        %v4162 = vsel %vm988, %v3885, %v4161
        %v4164 = vsel %vm3858, %v3874, 0.0
        %v4165 = vsel %vm3859, %v3876, 0.0
        %v4166 = vsel %vm3860, %v3878, 0.0
        %v4167 = vsel %vm3861, %v3880, 0.0
        %v4168 = vsel %vm3862, %v3882, 0.0
        %v4169 = vsel %vm3863, %v3884, 0.0
        %v4170 = vsel %vm3864, %v3886, 0.0
        %v4171 = vsel %vm3865, %v4162, 0.0
        %s4172 = scalar_lea.vmem [#allocation5], 96
        %v4173 = vld [vmem:[%s4172] sm:$0xff]
        %v4174 = vld [vmem:[%s4172 + $0x8] sm:$0xff]
        %v4175 = vld [vmem:[%s4172 + $0x10] sm:$0xff]
        %v4176 = vld [vmem:[%s4172 + $0x18] sm:$0xff]
        %v4178 = vsel %vm3911, %v4164, 0
        %v4181 = vsel %vm3911, %v4165, 0
        %v4184 = vsel %vm3911, %v4166, 0
        %v4187 = vsel %vm3911, %v4167, 0
        %v4190 = vsel %vm3911, %v4168, 0
        %v4193 = vsel %vm3911, %v4169, 0
        %v4196 = vsel %vm3911, %v4170, 0
        %v4199 = vsel %vm3911, %v4171, 0
        %4201 = vmatpush.msra.mxu0 0.0
        %4202 = vmatpush.msra.mxu0 0.0
        %4203 = vmatpush.msra.mxu0 0.0
        %4204 = vmatpush.msra.mxu0 0.0
        %4205 = vmatpush.msra.mxu0 0.0
        %4206 = vmatpush.msra.mxu0 0.0
        %4207 = vmatpush.msra.mxu0 0.0
        %4208 = vmatpush.msra.mxu0 0.0
        %4209 = vmatpush.msra.mxu0 0.0
        %4210 = vmatpush.msra.mxu0 0.0
        %4211 = vmatpush.msra.mxu0 0.0
        %4212 = vmatpush.msra.mxu0 0.0
        %4213 = vmatpush.msra.mxu0 %v4176
        %4214 = vmatpush.msra.mxu0 %v4175
        %4215 = vmatpush.msra.mxu0 %v4174
        %4216 = vmatpush.msra.mxu0 %v4173
        %4217 = vmatmul.f32.gmra.mxu0 %v4178
        %v4218 = vpop.f32.mrf.mxu0
        %v4219 = vadd.f32 0.0, %v4218
        %4220 = vmatmul.f32.gmra.mxu0 %v4181
        %v4221 = vpop.f32.mrf.mxu0
        %v4222 = vadd.f32 0.0, %v4221
        %4223 = vmatmul.f32.gmra.mxu0 %v4184
        %v4224 = vpop.f32.mrf.mxu0
        %v4225 = vadd.f32 0.0, %v4224
        %4226 = vmatmul.f32.gmra.mxu0 %v4187
        %v4227 = vpop.f32.mrf.mxu0
        %v4228 = vadd.f32 0.0, %v4227
        %4229 = vmatmul.f32.gmra.mxu0 %v4190
        %v4230 = vpop.f32.mrf.mxu0
        %v4231 = vadd.f32 0.0, %v4230
        %4232 = vmatmul.f32.gmra.mxu0 %v4193
        %v4233 = vpop.f32.mrf.mxu0
        %v4234 = vadd.f32 0.0, %v4233
        %4235 = vmatmul.f32.gmra.mxu0 %v4196
        %v4236 = vpop.f32.mrf.mxu0
        %v4237 = vadd.f32 0.0, %v4236
        %4238 = vmatmul.f32.gmra.mxu0 %v4199
        %v4239 = vpop.f32.mrf.mxu0
        %v4240 = vadd.f32 0.0, %v4239
        %4241 = vdwg.mxu0
        %v4242 = vadd.f32 %v4153, %v4219
        %v4243 = vadd.f32 %v4154, %v4222
        %v4244 = vadd.f32 %v4155, %v4225
        %v4245 = vadd.f32 %v4156, %v4228
        %v4246 = vadd.f32 %v4157, %v4231
        %v4247 = vadd.f32 %v4158, %v4234
        %v4248 = vadd.f32 %v4159, %v4237
        %v4249 = vadd.f32 %v4160, %v4240
        %s4250 = scalar_lea.vmem [#allocation5], 128
        %v4251 = vld [vmem:[%s4250] sm:$0xff]
        %v4252 = vld [vmem:[%s4250 + $0x8] sm:$0xff]
        %v4253 = vld [vmem:[%s4250 + $0x10] sm:$0xff]
        %v4254 = vld [vmem:[%s4250 + $0x18] sm:$0xff]
        %v4255 = vsel %vm3911, %v3736, 0
        %4257 = vmatpush.msra.mxu0 0.0
        %4258 = vmatpush.msra.mxu0 0.0
        %4259 = vmatpush.msra.mxu0 0.0
        %4260 = vmatpush.msra.mxu0 0.0
        %4261 = vmatpush.msra.mxu0 0.0
        %4262 = vmatpush.msra.mxu0 0.0
        %4263 = vmatpush.msra.mxu0 0.0
        %4264 = vmatpush.msra.mxu0 0.0
        %4265 = vmatpush.msra.mxu0 0.0
        %4266 = vmatpush.msra.mxu0 0.0
        %4267 = vmatpush.msra.mxu0 0.0
        %4268 = vmatpush.msra.mxu0 0.0
        %4269 = vmatpush.msra.mxu0 %v4254
        %4270 = vmatpush.msra.mxu0 %v4253
        %4271 = vmatpush.msra.mxu0 %v4252
        %4272 = vmatpush.msra.mxu0 %v4251
        %4273 = vmatmul.f32.gmra.mxu0 %v3914
        %v4274 = vpop.f32.mrf.mxu0
        %v4275 = vadd.f32 0.0, %v4274
        %4276 = vmatmul.f32.gmra.mxu0 %v3916
        %v4277 = vpop.f32.mrf.mxu0
        %v4278 = vadd.f32 0.0, %v4277
        %4279 = vmatmul.f32.gmra.mxu0 %v3918
        %v4280 = vpop.f32.mrf.mxu0
        %v4281 = vadd.f32 0.0, %v4280
        %4282 = vmatmul.f32.gmra.mxu0 %v3920
        %v4283 = vpop.f32.mrf.mxu0
        %v4284 = vadd.f32 0.0, %v4283
        %4285 = vmatmul.f32.gmra.mxu0 %v3922
        %v4286 = vpop.f32.mrf.mxu0
        %v4287 = vadd.f32 0.0, %v4286
        %4288 = vmatmul.f32.gmra.mxu0 %v3924
        %v4289 = vpop.f32.mrf.mxu0
        %v4290 = vadd.f32 0.0, %v4289
        %4291 = vmatmul.f32.gmra.mxu0 %v3926
        %v4292 = vpop.f32.mrf.mxu0
        %v4293 = vadd.f32 0.0, %v4292
        %4294 = vmatmul.f32.gmra.mxu0 %v4255
        %v4295 = vpop.f32.mrf.mxu0
        %v4296 = vadd.f32 0.0, %v4295
        %4297 = vdwg.mxu0
        %v4298 = vadd.f32 %v4242, %v4275
        %v4299 = vadd.f32 %v4243, %v4278
        %v4300 = vadd.f32 %v4244, %v4281
        %v4301 = vadd.f32 %v4245, %v4284
        %v4302 = vadd.f32 %v4246, %v4287
        %v4303 = vadd.f32 %v4247, %v4290
        %v4304 = vadd.f32 %v4248, %v4293
        %v4305 = vadd.f32 %v4249, %v4296
        %v4306 = vsel %vm1574, %v4065, %v1575
        %v4308 = vsel %vm4042, %v4054, 0.0
        %v4309 = vsel %vm4043, %v4056, 0.0
        %v4310 = vsel %vm4044, %v4058, 0.0
        %v4311 = vsel %vm4045, %v4060, 0.0
        %v4312 = vsel %vm4046, %v4062, 0.0
        %v4313 = vsel %vm4047, %v4064, 0.0
        %v4314 = vsel %vm4048, %v4066, 0.0
        %v4315 = vsel %vm4049, %v4306, 0.0
        %s4316 = scalar_lea.vmem [#allocation5], 160
        %v4317 = vld [vmem:[%s4316] sm:$0xff]
        %v4318 = vld [vmem:[%s4316 + $0x8] sm:$0xff]
        %v4319 = vld [vmem:[%s4316 + $0x10] sm:$0xff]
        %v4320 = vld [vmem:[%s4316 + $0x18] sm:$0xff]
        %v4322 = vsel %vm3911, %v4308, 0
        %v4325 = vsel %vm3911, %v4309, 0
        %v4328 = vsel %vm3911, %v4310, 0
        %v4331 = vsel %vm3911, %v4311, 0
        %v4334 = vsel %vm3911, %v4312, 0
        %v4337 = vsel %vm3911, %v4313, 0
        %v4340 = vsel %vm3911, %v4314, 0
        %v4343 = vsel %vm3911, %v4315, 0
        %4345 = vmatpush.msra.mxu0 0.0
        %4346 = vmatpush.msra.mxu0 0.0
        %4347 = vmatpush.msra.mxu0 0.0
        %4348 = vmatpush.msra.mxu0 0.0
        %4349 = vmatpush.msra.mxu0 0.0
        %4350 = vmatpush.msra.mxu0 0.0
        %4351 = vmatpush.msra.mxu0 0.0
        %4352 = vmatpush.msra.mxu0 0.0
        %4353 = vmatpush.msra.mxu0 0.0
        %4354 = vmatpush.msra.mxu0 0.0
        %4355 = vmatpush.msra.mxu0 0.0
        %4356 = vmatpush.msra.mxu0 0.0
        %4357 = vmatpush.msra.mxu0 %v4320
        %4358 = vmatpush.msra.mxu0 %v4319
        %4359 = vmatpush.msra.mxu0 %v4318
        %4360 = vmatpush.msra.mxu0 %v4317
        %4361 = vmatmul.f32.gmra.mxu0 %v4322
        %v4362 = vpop.f32.mrf.mxu0
        %v4363 = vadd.f32 0.0, %v4362
        %4364 = vmatmul.f32.gmra.mxu0 %v4325
        %v4365 = vpop.f32.mrf.mxu0
        %v4366 = vadd.f32 0.0, %v4365
        %4367 = vmatmul.f32.gmra.mxu0 %v4328
        %v4368 = vpop.f32.mrf.mxu0
        %v4369 = vadd.f32 0.0, %v4368
        %4370 = vmatmul.f32.gmra.mxu0 %v4331
        %v4371 = vpop.f32.mrf.mxu0
        %v4372 = vadd.f32 0.0, %v4371
        %4373 = vmatmul.f32.gmra.mxu0 %v4334
        %v4374 = vpop.f32.mrf.mxu0
        %v4375 = vadd.f32 0.0, %v4374
        %4376 = vmatmul.f32.gmra.mxu0 %v4337
        %v4377 = vpop.f32.mrf.mxu0
        %v4378 = vadd.f32 0.0, %v4377
        %4379 = vmatmul.f32.gmra.mxu0 %v4340
        %v4380 = vpop.f32.mrf.mxu0
        %v4381 = vadd.f32 0.0, %v4380
        %4382 = vmatmul.f32.gmra.mxu0 %v4343
        %v4383 = vpop.f32.mrf.mxu0
        %v4384 = vadd.f32 0.0, %v4383
        %4385 = vdwg.mxu0
        %v4386 = vadd.f32 %v4298, %v4363
        %v4387 = vadd.f32 %v4299, %v4366
        %v4388 = vadd.f32 %v4300, %v4369
        %v4389 = vadd.f32 %v4301, %v4372
        %v4390 = vadd.f32 %v4302, %v4375
        %v4391 = vadd.f32 %v4303, %v4378
        %v4392 = vadd.f32 %v4304, %v4381
        %v4393 = vadd.f32 %v4305, %v4384
        %v4394 = vsel %vm988, %v4161, %v989
        %v4396 = vsel %vm3858, %v3876, 0.0
        %v4397 = vsel %vm3859, %v3878, 0.0
        %v4398 = vsel %vm3860, %v3880, 0.0
        %v4399 = vsel %vm3861, %v3882, 0.0
        %v4400 = vsel %vm3862, %v3884, 0.0
        %v4401 = vsel %vm3863, %v3886, 0.0
        %v4402 = vsel %vm3864, %v4162, 0.0
        %v4403 = vsel %vm3865, %v4394, 0.0
        %s4404 = scalar_lea.vmem [#allocation5], 192
        %v4405 = vld [vmem:[%s4404] sm:$0xff]
        %v4406 = vld [vmem:[%s4404 + $0x8] sm:$0xff]
        %v4407 = vld [vmem:[%s4404 + $0x10] sm:$0xff]
        %v4408 = vld [vmem:[%s4404 + $0x18] sm:$0xff]
        %v4410 = vsel %vm3911, %v4396, 0
        %v4413 = vsel %vm3911, %v4397, 0
        %v4416 = vsel %vm3911, %v4398, 0
        %v4419 = vsel %vm3911, %v4399, 0
        %v4422 = vsel %vm3911, %v4400, 0
        %v4425 = vsel %vm3911, %v4401, 0
        %v4428 = vsel %vm3911, %v4402, 0
        %v4431 = vsel %vm3911, %v4403, 0
        %4433 = vmatpush.msra.mxu0 0.0
        %4434 = vmatpush.msra.mxu0 0.0
        %4435 = vmatpush.msra.mxu0 0.0
        %4436 = vmatpush.msra.mxu0 0.0
        %4437 = vmatpush.msra.mxu0 0.0
        %4438 = vmatpush.msra.mxu0 0.0
        %4439 = vmatpush.msra.mxu0 0.0
        %4440 = vmatpush.msra.mxu0 0.0
        %4441 = vmatpush.msra.mxu0 0.0
        %4442 = vmatpush.msra.mxu0 0.0
        %4443 = vmatpush.msra.mxu0 0.0
        %4444 = vmatpush.msra.mxu0 0.0
        %4445 = vmatpush.msra.mxu0 %v4408
        %4446 = vmatpush.msra.mxu0 %v4407
        %4447 = vmatpush.msra.mxu0 %v4406
        %4448 = vmatpush.msra.mxu0 %v4405
        %4449 = vmatmul.f32.gmra.mxu0 %v4410
        %v4450 = vpop.f32.mrf.mxu0
        %v4451 = vadd.f32 0.0, %v4450
        %4452 = vmatmul.f32.gmra.mxu0 %v4413
        %v4453 = vpop.f32.mrf.mxu0
        %v4454 = vadd.f32 0.0, %v4453
        %4455 = vmatmul.f32.gmra.mxu0 %v4416
        %v4456 = vpop.f32.mrf.mxu0
        %v4457 = vadd.f32 0.0, %v4456
        %4458 = vmatmul.f32.gmra.mxu0 %v4419
        %v4459 = vpop.f32.mrf.mxu0
        %v4460 = vadd.f32 0.0, %v4459
        %4461 = vmatmul.f32.gmra.mxu0 %v4422
        %v4462 = vpop.f32.mrf.mxu0
        %v4463 = vadd.f32 0.0, %v4462
        %4464 = vmatmul.f32.gmra.mxu0 %v4425
        %v4465 = vpop.f32.mrf.mxu0
        %v4466 = vadd.f32 0.0, %v4465
        %4467 = vmatmul.f32.gmra.mxu0 %v4428
        %v4468 = vpop.f32.mrf.mxu0
        %v4469 = vadd.f32 0.0, %v4468
        %4470 = vmatmul.f32.gmra.mxu0 %v4431
        %v4471 = vpop.f32.mrf.mxu0
        %v4472 = vadd.f32 0.0, %v4471
        %4473 = vdwg.mxu0
        %v4474 = vadd.f32 %v4386, %v4451
        %v4475 = vadd.f32 %v4387, %v4454
        %v4476 = vadd.f32 %v4388, %v4457
        %v4477 = vadd.f32 %v4389, %v4460
        %v4478 = vadd.f32 %v4390, %v4463
        %v4479 = vadd.f32 %v4391, %v4466
        %v4480 = vadd.f32 %v4392, %v4469
        %v4481 = vadd.f32 %v4393, %v4472
        %s4482 = scalar_lea.vmem [#allocation5], 224
        %v4483 = vld [vmem:[%s4482] sm:$0xff]
        %v4484 = vld [vmem:[%s4482 + $0x8] sm:$0xff]
        %v4485 = vld [vmem:[%s4482 + $0x10] sm:$0xff]
        %v4486 = vld [vmem:[%s4482 + $0x18] sm:$0xff]
        %4487 = vmatpush.msra.mxu0 0.0
        %4488 = vmatpush.msra.mxu0 0.0
        %4489 = vmatpush.msra.mxu0 0.0
        %4490 = vmatpush.msra.mxu0 0.0
        %4491 = vmatpush.msra.mxu0 0.0
        %4492 = vmatpush.msra.mxu0 0.0
        %4493 = vmatpush.msra.mxu0 0.0
        %4494 = vmatpush.msra.mxu0 0.0
        %4495 = vmatpush.msra.mxu0 0.0
        %4496 = vmatpush.msra.mxu0 0.0
        %4497 = vmatpush.msra.mxu0 0.0
        %4498 = vmatpush.msra.mxu0 0.0
        %4499 = vmatpush.msra.mxu0 %v4486
        %4500 = vmatpush.msra.mxu0 %v4485
        %4501 = vmatpush.msra.mxu0 %v4484
        %4502 = vmatpush.msra.mxu0 %v4483
        %4503 = vmatmul.f32.gmra.mxu0 %v3916
        %v4504 = vpop.f32.mrf.mxu0
        %v4505 = vadd.f32 0.0, %v4504
        %4506 = vmatmul.f32.gmra.mxu0 %v3918
        %v4507 = vpop.f32.mrf.mxu0
        %v4508 = vadd.f32 0.0, %v4507
        %4509 = vmatmul.f32.gmra.mxu0 %v3920
        %v4510 = vpop.f32.mrf.mxu0
        %v4511 = vadd.f32 0.0, %v4510
        %4512 = vmatmul.f32.gmra.mxu0 %v3922
        %v4513 = vpop.f32.mrf.mxu0
        %v4514 = vadd.f32 0.0, %v4513
        %4515 = vmatmul.f32.gmra.mxu0 %v3924
        %v4516 = vpop.f32.mrf.mxu0
        %v4517 = vadd.f32 0.0, %v4516
        %4518 = vmatmul.f32.gmra.mxu0 %v3926
        %v4519 = vpop.f32.mrf.mxu0
        %v4520 = vadd.f32 0.0, %v4519
        %4521 = vmatmul.f32.gmra.mxu0 %v4255
        %v4522 = vpop.f32.mrf.mxu0
        %v4523 = vadd.f32 0.0, %v4522
        %4524 = vmatmul.f32.gmra.mxu0 %v3912
        %v4525 = vpop.f32.mrf.mxu0
        %v4526 = vadd.f32 0.0, %v4525
        %4527 = vdwg.mxu0
        %v4528 = vadd.f32 %v4474, %v4505
        %v4529 = vadd.f32 %v4475, %v4508
        %v4530 = vadd.f32 %v4476, %v4511
        %v4531 = vadd.f32 %v4477, %v4514
        %v4532 = vadd.f32 %v4478, %v4517
        %v4533 = vadd.f32 %v4479, %v4520
        %v4534 = vadd.f32 %v4480, %v4523
        %v4535 = vadd.f32 %v4481, %v4526
        %v4536 = vsel %vm4042, %v4056, 0.0
        %v4537 = vsel %vm4043, %v4058, 0.0
        %v4538 = vsel %vm4044, %v4060, 0.0
        %v4539 = vsel %vm4045, %v4062, 0.0
        %v4540 = vsel %vm4046, %v4064, 0.0
        %v4541 = vsel %vm4047, %v4066, 0.0
        %v4542 = vsel %vm4048, %v4306, 0.0
        %v4543 = vsel %vm4049, %v1576, 0.0
        %s4544 = scalar_lea.vmem [#allocation5], 256
        %v4545 = vld [vmem:[%s4544] sm:$0xff]
        %v4546 = vld [vmem:[%s4544 + $0x8] sm:$0xff]
        %v4547 = vld [vmem:[%s4544 + $0x10] sm:$0xff]
        %v4548 = vld [vmem:[%s4544 + $0x18] sm:$0xff]
        %v4550 = vsel %vm3911, %v4536, 0
        %v4553 = vsel %vm3911, %v4537, 0
        %v4556 = vsel %vm3911, %v4538, 0
        %v4559 = vsel %vm3911, %v4539, 0
        %v4562 = vsel %vm3911, %v4540, 0
        %v4565 = vsel %vm3911, %v4541, 0
        %v4568 = vsel %vm3911, %v4542, 0
        %v4571 = vsel %vm3911, %v4543, 0
        %4573 = vmatpush.msra.mxu0 0.0
        %4574 = vmatpush.msra.mxu0 0.0
        %4575 = vmatpush.msra.mxu0 0.0
        %4576 = vmatpush.msra.mxu0 0.0
        %4577 = vmatpush.msra.mxu0 0.0
        %4578 = vmatpush.msra.mxu0 0.0
        %4579 = vmatpush.msra.mxu0 0.0
        %4580 = vmatpush.msra.mxu0 0.0
        %4581 = vmatpush.msra.mxu0 0.0
        %4582 = vmatpush.msra.mxu0 0.0
        %4583 = vmatpush.msra.mxu0 0.0
        %4584 = vmatpush.msra.mxu0 0.0
        %4585 = vmatpush.msra.mxu0 %v4548
        %4586 = vmatpush.msra.mxu0 %v4547
        %4587 = vmatpush.msra.mxu0 %v4546
        %4588 = vmatpush.msra.mxu0 %v4545
        %4589 = vmatmul.f32.gmra.mxu0 %v4550
        %v4590 = vpop.f32.mrf.mxu0
        %v4591 = vadd.f32 0.0, %v4590
        %4592 = vmatmul.f32.gmra.mxu0 %v4553
        %v4593 = vpop.f32.mrf.mxu0
        %v4594 = vadd.f32 0.0, %v4593
        %4595 = vmatmul.f32.gmra.mxu0 %v4556
        %v4596 = vpop.f32.mrf.mxu0
        %v4597 = vadd.f32 0.0, %v4596
        %4598 = vmatmul.f32.gmra.mxu0 %v4559
        %v4599 = vpop.f32.mrf.mxu0
        %v4600 = vadd.f32 0.0, %v4599
        %4601 = vmatmul.f32.gmra.mxu0 %v4562
        %v4602 = vpop.f32.mrf.mxu0
        %v4603 = vadd.f32 0.0, %v4602
        %4604 = vmatmul.f32.gmra.mxu0 %v4565
        %v4605 = vpop.f32.mrf.mxu0
        %v4606 = vadd.f32 0.0, %v4605
        %4607 = vmatmul.f32.gmra.mxu0 %v4568
        %v4608 = vpop.f32.mrf.mxu0
        %v4609 = vadd.f32 0.0, %v4608
        %4610 = vmatmul.f32.gmra.mxu0 %v4571
        %v4611 = vpop.f32.mrf.mxu0
        %v4612 = vadd.f32 0.0, %v4611
        %4613 = vdwg.mxu0
        %v4614 = vadd.f32 %v4528, %v4591
        %v4615 = vadd.f32 %v4529, %v4594
        %v4616 = vadd.f32 %v4530, %v4597
        %v4617 = vadd.f32 %v4531, %v4600
        %v4618 = vadd.f32 %v4532, %v4603
        %v4619 = vadd.f32 %v4533, %v4606
        %v4620 = vadd.f32 %v4534, %v4609
        %v4621 = vadd.f32 %v4535, %v4612
        %v4622 = vld [vmem:[%s4] sm:$0x1]
        %v4624 = vperm.slane %v4622, 0
        %v4626 = vadd.f32 %v4614, %v4624
        %v4627 = vadd.f32 %v4615, %v4624
        %v4628 = vadd.f32 %v4616, %v4624
        %v4629 = vadd.f32 %v4617, %v4624
        %v4630 = vadd.f32 %v4618, %v4624
        %v4631 = vadd.f32 %v4619, %v4624
        %v4632 = vadd.f32 %v4620, %v4624
        %v4633 = vadd.f32 %v4621, %v4624
        %v4634 = vmax.f32 %v4626, 0.0
        %v4635 = vmax.f32 %v4627, 0.0
        %v4636 = vmax.f32 %v4628, 0.0
        %v4637 = vmax.f32 %v4629, 0.0
        %v4638 = vmax.f32 %v4630, 0.0
        %v4639 = vmax.f32 %v4631, 0.0
        %v4640 = vmax.f32 %v4632, 0.0
        %v4641 = vmax.f32 %v4633, 0.0
        %v4650 = vrot.slane %v4634, 1
        %v4651 = vrot.slane %v4635, 1
        %v4652 = vsel %vm1574, %v4650, %v4651
        %v4653 = vrot.slane %v4636, 1
        %v4654 = vsel %vm1574, %v4651, %v4653
        %v4655 = vrot.slane %v4637, 1
        %v4656 = vsel %vm1574, %v4653, %v4655
        %v4657 = vrot.slane %v4638, 1
        %v4658 = vsel %vm1574, %v4655, %v4657
        %v4659 = vrot.slane %v4639, 1
        %v4660 = vsel %vm1574, %v4657, %v4659
        %v4661 = vrot.slane %v4640, 1
        %v4662 = vsel %vm1574, %v4659, %v4661
        %v4663 = vrot.slane %v4641, 1
        %v4664 = vsel %vm1574, %v4661, %v4663
        %v4665 = vsel %vm1574, %v4663, %v1575
        %v4674 = vmax.f32 %v4634, %v4652
        %v4675 = vmax.f32 %v4635, %v4654
        %v4676 = vmax.f32 %v4636, %v4656
        %v4677 = vmax.f32 %v4637, %v4658
        %v4678 = vmax.f32 %v4638, %v4660
        %v4679 = vmax.f32 %v4639, %v4662
        %v4680 = vmax.f32 %v4640, %v4664
        %v4681 = vmax.f32 %v4641, %v4665
        %v4682 = vmax.f32 %v4674, %v4675
        %v4683 = vmax.f32 %v4675, %v4676
        %v4684 = vmax.f32 %v4676, %v4677
        %v4685 = vmax.f32 %v4677, %v4678
        %v4686 = vmax.f32 %v4678, %v4679
        %v4687 = vmax.f32 %v4679, %v4680
        %v4688 = vmax.f32 %v4680, %v4681
        %v4689 = vmax.f32 %v4681, %v3607
        %v4690 = vld [vmem:[#allocation7] sm:$0xff]
        %v4691 = vld [vmem:[#allocation7 + $0x8] sm:$0xff]
        %vm4692 = vcmask 523264
        %v4694 = vsel %vm4692, %v4690, 0
        %v4697 = vsel %vm4692, %v4691, 0
        %4699 = vmatpush.msra.mxu0 0.0
        %4700 = vmatpush.msra.mxu0 0.0
        %4701 = vmatpush.msra.mxu0 0.0
        %4702 = vmatpush.msra.mxu0 0.0
        %4703 = vmatpush.msra.mxu0 0.0
        %4704 = vmatpush.msra.mxu0 0.0
        %4705 = vmatpush.msra.mxu0 0.0
        %4706 = vmatpush.msra.mxu0 0.0
        %4707 = vmatpush.msra.mxu0 %v4689
        %4708 = vmatpush.msra.mxu0 %v4688
        %4709 = vmatpush.msra.mxu0 %v4687
        %4710 = vmatpush.msra.mxu0 %v4686
        %4711 = vmatpush.msra.mxu0 %v4685
        %4712 = vmatpush.msra.mxu0 %v4684
        %4713 = vmatpush.msra.mxu0 %v4683
        %4714 = vmatpush.msra.mxu0 %v4682
        %4715 = vmatmul.f32.gmra.mxu0 %v4694
        %v4716 = vpop.f32.mrf.mxu0
        %v4717 = vadd.f32 0.0, %v4716
        %4718 = vmatmul.f32.gmra.mxu0 %v4697
        %v4719 = vpop.f32.mrf.mxu0
        %v4720 = vadd.f32 0.0, %v4719
        %4721 = vdwg.mxu0
        %v4722 = vld [vmem:[%s8] sm:$0x1]
        %v4723 = vld [vmem:[%s7] sm:$0xff]
        %v4724 = vld [vmem:[%s7 + $0x8] sm:$0xff]
        %v4725 = vld [vmem:[%s7 + $0x10] sm:$0xff]
        %v4726 = vld [vmem:[%s7 + $0x18] sm:$0xff]
        %v4728 = vsel %vm3911, %v4717, 0
        %4730 = vmatpush.msra.mxu0 0.0
        %4731 = vmatpush.msra.mxu0 0.0
        %4732 = vmatpush.msra.mxu0 0.0
        %4733 = vmatpush.msra.mxu0 0.0
        %4734 = vmatpush.msra.mxu0 0.0
        %4735 = vmatpush.msra.mxu0 0.0
        %4736 = vmatpush.msra.mxu0 0.0
        %4737 = vmatpush.msra.mxu0 0.0
        %4738 = vmatpush.msra.mxu0 0.0
        %4739 = vmatpush.msra.mxu0 0.0
        %4740 = vmatpush.msra.mxu0 0.0
        %4741 = vmatpush.msra.mxu0 0.0
        %4742 = vmatpush.msra.mxu0 %v4726
        %4743 = vmatpush.msra.mxu0 %v4725
        %4744 = vmatpush.msra.mxu0 %v4724
        %4745 = vmatpush.msra.mxu0 %v4723
        %4746 = vmatmul.f32.gmra.mxu0 %v4728
        %v4747 = vpop.f32.mrf.mxu0
        %v4748 = vadd.f32 0.0, %v4747
        %4749 = vdwg.mxu0
        %v4750 = vadd.f32 %v4722, %v4748
        %s4751 = scalar_lea.vmem %s7, 32
        %v4752 = vld [vmem:[%s4751] sm:$0xff]
        %v4753 = vld [vmem:[%s4751 + $0x8] sm:$0xff]
        %v4754 = vld [vmem:[%s4751 + $0x10] sm:$0xff]
        %v4755 = vld [vmem:[%s4751 + $0x18] sm:$0xff]
        %v4756 = vrot.slane %v4717, 1
        %v4757 = vsel %vm3911, %v4756, 0
        %4759 = vmatpush.msra.mxu0 0.0
        %4760 = vmatpush.msra.mxu0 0.0
        %4761 = vmatpush.msra.mxu0 0.0
        %4762 = vmatpush.msra.mxu0 0.0
        %4763 = vmatpush.msra.mxu0 0.0
        %4764 = vmatpush.msra.mxu0 0.0
        %4765 = vmatpush.msra.mxu0 0.0
        %4766 = vmatpush.msra.mxu0 0.0
        %4767 = vmatpush.msra.mxu0 0.0
        %4768 = vmatpush.msra.mxu0 0.0
        %4769 = vmatpush.msra.mxu0 0.0
        %4770 = vmatpush.msra.mxu0 0.0
        %4771 = vmatpush.msra.mxu0 %v4755
        %4772 = vmatpush.msra.mxu0 %v4754
        %4773 = vmatpush.msra.mxu0 %v4753
        %4774 = vmatpush.msra.mxu0 %v4752
        %4775 = vmatmul.f32.gmra.mxu0 %v4757
        %v4776 = vpop.f32.mrf.mxu0
        %v4777 = vadd.f32 0.0, %v4776
        %4778 = vdwg.mxu0
        %v4779 = vadd.f32 %v4750, %v4777
        %s4780 = scalar_lea.vmem %s7, 64
        %v4781 = vld [vmem:[%s4780] sm:$0xff]
        %v4782 = vld [vmem:[%s4780 + $0x8] sm:$0xff]
        %v4783 = vld [vmem:[%s4780 + $0x10] sm:$0xff]
        %v4784 = vld [vmem:[%s4780 + $0x18] sm:$0xff]
        %v4785 = vrot.slane %v4717, 2
        %v4786 = vsel %vm3911, %v4785, 0
        %4788 = vmatpush.msra.mxu0 0.0
        %4789 = vmatpush.msra.mxu0 0.0
        %4790 = vmatpush.msra.mxu0 0.0
        %4791 = vmatpush.msra.mxu0 0.0
        %4792 = vmatpush.msra.mxu0 0.0
        %4793 = vmatpush.msra.mxu0 0.0
        %4794 = vmatpush.msra.mxu0 0.0
        %4795 = vmatpush.msra.mxu0 0.0
        %4796 = vmatpush.msra.mxu0 0.0
        %4797 = vmatpush.msra.mxu0 0.0
        %4798 = vmatpush.msra.mxu0 0.0
        %4799 = vmatpush.msra.mxu0 0.0
        %4800 = vmatpush.msra.mxu0 %v4784
        %4801 = vmatpush.msra.mxu0 %v4783
        %4802 = vmatpush.msra.mxu0 %v4782
        %4803 = vmatpush.msra.mxu0 %v4781
        %4804 = vmatmul.f32.gmra.mxu0 %v4786
        %v4805 = vpop.f32.mrf.mxu0
        %v4806 = vadd.f32 0.0, %v4805
        %4807 = vdwg.mxu0
        %v4808 = vadd.f32 %v4779, %v4806
        %s4809 = scalar_lea.vmem %s7, 96
        %v4810 = vld [vmem:[%s4809] sm:$0xff]
        %v4811 = vld [vmem:[%s4809 + $0x8] sm:$0xff]
        %v4812 = vld [vmem:[%s4809 + $0x10] sm:$0xff]
        %v4813 = vld [vmem:[%s4809 + $0x18] sm:$0xff]
        %v4814 = vrot.slane %v4717, 3
        %v4815 = vsel %vm3911, %v4814, 0
        %4817 = vmatpush.msra.mxu0 0.0
        %4818 = vmatpush.msra.mxu0 0.0
        %4819 = vmatpush.msra.mxu0 0.0
        %4820 = vmatpush.msra.mxu0 0.0
        %4821 = vmatpush.msra.mxu0 0.0
        %4822 = vmatpush.msra.mxu0 0.0
        %4823 = vmatpush.msra.mxu0 0.0
        %4824 = vmatpush.msra.mxu0 0.0
        %4825 = vmatpush.msra.mxu0 0.0
        %4826 = vmatpush.msra.mxu0 0.0
        %4827 = vmatpush.msra.mxu0 0.0
        %4828 = vmatpush.msra.mxu0 0.0
        %4829 = vmatpush.msra.mxu0 %v4813
        %4830 = vmatpush.msra.mxu0 %v4812
        %4831 = vmatpush.msra.mxu0 %v4811
        %4832 = vmatpush.msra.mxu0 %v4810
        %4833 = vmatmul.f32.gmra.mxu0 %v4815
        %v4834 = vpop.f32.mrf.mxu0
        %v4835 = vadd.f32 0.0, %v4834
        %4836 = vdwg.mxu0
        %v4837 = vadd.f32 %v4808, %v4835
        %s4838 = scalar_lea.vmem %s7, 128
        %v4839 = vld [vmem:[%s4838] sm:$0xff]
        %v4840 = vld [vmem:[%s4838 + $0x8] sm:$0xff]
        %v4841 = vld [vmem:[%s4838 + $0x10] sm:$0xff]
        %v4842 = vld [vmem:[%s4838 + $0x18] sm:$0xff]
        %v4843 = vrot.slane %v4717, 4
        %v4844 = vsel %vm3911, %v4843, 0
        %4846 = vmatpush.msra.mxu0 0.0
        %4847 = vmatpush.msra.mxu0 0.0
        %4848 = vmatpush.msra.mxu0 0.0
        %4849 = vmatpush.msra.mxu0 0.0
        %4850 = vmatpush.msra.mxu0 0.0
        %4851 = vmatpush.msra.mxu0 0.0
        %4852 = vmatpush.msra.mxu0 0.0
        %4853 = vmatpush.msra.mxu0 0.0
        %4854 = vmatpush.msra.mxu0 0.0
        %4855 = vmatpush.msra.mxu0 0.0
        %4856 = vmatpush.msra.mxu0 0.0
        %4857 = vmatpush.msra.mxu0 0.0
        %4858 = vmatpush.msra.mxu0 %v4842
        %4859 = vmatpush.msra.mxu0 %v4841
        %4860 = vmatpush.msra.mxu0 %v4840
        %4861 = vmatpush.msra.mxu0 %v4839
        %4862 = vmatmul.f32.gmra.mxu0 %v4844
        %v4863 = vpop.f32.mrf.mxu0
        %v4864 = vadd.f32 0.0, %v4863
        %4865 = vdwg.mxu0
        %v4866 = vadd.f32 %v4837, %v4864
        %s4867 = scalar_lea.vmem %s7, 160
        %v4868 = vld [vmem:[%s4867] sm:$0xff]
        %v4869 = vld [vmem:[%s4867 + $0x8] sm:$0xff]
        %v4870 = vld [vmem:[%s4867 + $0x10] sm:$0xff]
        %v4871 = vld [vmem:[%s4867 + $0x18] sm:$0xff]
        %v4872 = vrot.slane %v4717, 5
        %v4873 = vsel %vm3911, %v4872, 0
        %4875 = vmatpush.msra.mxu0 0.0
        %4876 = vmatpush.msra.mxu0 0.0
        %4877 = vmatpush.msra.mxu0 0.0
        %4878 = vmatpush.msra.mxu0 0.0
        %4879 = vmatpush.msra.mxu0 0.0
        %4880 = vmatpush.msra.mxu0 0.0
        %4881 = vmatpush.msra.mxu0 0.0
        %4882 = vmatpush.msra.mxu0 0.0
        %4883 = vmatpush.msra.mxu0 0.0
        %4884 = vmatpush.msra.mxu0 0.0
        %4885 = vmatpush.msra.mxu0 0.0
        %4886 = vmatpush.msra.mxu0 0.0
        %4887 = vmatpush.msra.mxu0 %v4871
        %4888 = vmatpush.msra.mxu0 %v4870
        %4889 = vmatpush.msra.mxu0 %v4869
        %4890 = vmatpush.msra.mxu0 %v4868
        %4891 = vmatmul.f32.gmra.mxu0 %v4873
        %v4892 = vpop.f32.mrf.mxu0
        %v4893 = vadd.f32 0.0, %v4892
        %4894 = vdwg.mxu0
        %v4895 = vadd.f32 %v4866, %v4893
        %s4896 = scalar_lea.vmem %s7, 192
        %v4897 = vld [vmem:[%s4896] sm:$0xff]
        %v4898 = vld [vmem:[%s4896 + $0x8] sm:$0xff]
        %v4899 = vld [vmem:[%s4896 + $0x10] sm:$0xff]
        %v4900 = vld [vmem:[%s4896 + $0x18] sm:$0xff]
        %v4901 = vrot.slane %v4717, 6
        %v4902 = vsel %vm3911, %v4901, 0
        %4904 = vmatpush.msra.mxu0 0.0
        %4905 = vmatpush.msra.mxu0 0.0
        %4906 = vmatpush.msra.mxu0 0.0
        %4907 = vmatpush.msra.mxu0 0.0
        %4908 = vmatpush.msra.mxu0 0.0
        %4909 = vmatpush.msra.mxu0 0.0
        %4910 = vmatpush.msra.mxu0 0.0
        %4911 = vmatpush.msra.mxu0 0.0
        %4912 = vmatpush.msra.mxu0 0.0
        %4913 = vmatpush.msra.mxu0 0.0
        %4914 = vmatpush.msra.mxu0 0.0
        %4915 = vmatpush.msra.mxu0 0.0
        %4916 = vmatpush.msra.mxu0 %v4900
        %4917 = vmatpush.msra.mxu0 %v4899
        %4918 = vmatpush.msra.mxu0 %v4898
        %4919 = vmatpush.msra.mxu0 %v4897
        %4920 = vmatmul.f32.gmra.mxu0 %v4902
        %v4921 = vpop.f32.mrf.mxu0
        %v4922 = vadd.f32 0.0, %v4921
        %4923 = vdwg.mxu0
        %v4924 = vadd.f32 %v4895, %v4922
        %s4925 = scalar_lea.vmem %s7, 224
        %v4926 = vld [vmem:[%s4925] sm:$0xff]
        %v4927 = vld [vmem:[%s4925 + $0x8] sm:$0xff]
        %v4928 = vld [vmem:[%s4925 + $0x10] sm:$0xff]
        %v4929 = vld [vmem:[%s4925 + $0x18] sm:$0xff]
        %v4930 = vrot.slane %v4717, 7
        %v4931 = vsel %vm3911, %v4930, 0
        %4933 = vmatpush.msra.mxu0 0.0
        %4934 = vmatpush.msra.mxu0 0.0
        %4935 = vmatpush.msra.mxu0 0.0
        %4936 = vmatpush.msra.mxu0 0.0
        %4937 = vmatpush.msra.mxu0 0.0
        %4938 = vmatpush.msra.mxu0 0.0
        %4939 = vmatpush.msra.mxu0 0.0
        %4940 = vmatpush.msra.mxu0 0.0
        %4941 = vmatpush.msra.mxu0 0.0
        %4942 = vmatpush.msra.mxu0 0.0
        %4943 = vmatpush.msra.mxu0 0.0
        %4944 = vmatpush.msra.mxu0 0.0
        %4945 = vmatpush.msra.mxu0 %v4929
        %4946 = vmatpush.msra.mxu0 %v4928
        %4947 = vmatpush.msra.mxu0 %v4927
        %4948 = vmatpush.msra.mxu0 %v4926
        %4949 = vmatmul.f32.gmra.mxu0 %v4931
        %v4950 = vpop.f32.mrf.mxu0
        %v4951 = vadd.f32 0.0, %v4950
        %4952 = vdwg.mxu0
        %v4953 = vadd.f32 %v4924, %v4951
        %s4954 = scalar_lea.vmem %s7, 256
        %v4955 = vld [vmem:[%s4954] sm:$0xff]
        %v4956 = vld [vmem:[%s4954 + $0x8] sm:$0xff]
        %v4957 = vld [vmem:[%s4954 + $0x10] sm:$0xff]
        %v4958 = vld [vmem:[%s4954 + $0x18] sm:$0xff]
        %v4960 = vsel %vm3911, %v4720, 0
        %4962 = vmatpush.msra.mxu0 0.0
        %4963 = vmatpush.msra.mxu0 0.0
        %4964 = vmatpush.msra.mxu0 0.0
        %4965 = vmatpush.msra.mxu0 0.0
        %4966 = vmatpush.msra.mxu0 0.0
        %4967 = vmatpush.msra.mxu0 0.0
        %4968 = vmatpush.msra.mxu0 0.0
        %4969 = vmatpush.msra.mxu0 0.0
        %4970 = vmatpush.msra.mxu0 0.0
        %4971 = vmatpush.msra.mxu0 0.0
        %4972 = vmatpush.msra.mxu0 0.0
        %4973 = vmatpush.msra.mxu0 0.0
        %4974 = vmatpush.msra.mxu0 %v4958
        %4975 = vmatpush.msra.mxu0 %v4957
        %4976 = vmatpush.msra.mxu0 %v4956
        %4977 = vmatpush.msra.mxu0 %v4955
        %4978 = vmatmul.f32.gmra.mxu0 %v4960
        %v4979 = vpop.f32.mrf.mxu0
        %v4980 = vadd.f32 0.0, %v4979
        %4981 = vdwg.mxu0
        %v4982 = vadd.f32 %v4953, %v4980
        %s4983 = scalar_lea.vmem %s7, 288
        %v4984 = vld [vmem:[%s4983] sm:$0xff]
        %v4985 = vld [vmem:[%s4983 + $0x8] sm:$0xff]
        %v4986 = vld [vmem:[%s4983 + $0x10] sm:$0xff]
        %v4987 = vld [vmem:[%s4983 + $0x18] sm:$0xff]
        %v4988 = vrot.slane %v4720, 1
        %v4989 = vsel %vm3911, %v4988, 0
        %4991 = vmatpush.msra.mxu0 0.0
        %4992 = vmatpush.msra.mxu0 0.0
        %4993 = vmatpush.msra.mxu0 0.0
        %4994 = vmatpush.msra.mxu0 0.0
        %4995 = vmatpush.msra.mxu0 0.0
        %4996 = vmatpush.msra.mxu0 0.0
        %4997 = vmatpush.msra.mxu0 0.0
        %4998 = vmatpush.msra.mxu0 0.0
        %4999 = vmatpush.msra.mxu0 0.0
        %5000 = vmatpush.msra.mxu0 0.0
        %5001 = vmatpush.msra.mxu0 0.0
        %5002 = vmatpush.msra.mxu0 0.0
        %5003 = vmatpush.msra.mxu0 %v4987
        %5004 = vmatpush.msra.mxu0 %v4986
        %5005 = vmatpush.msra.mxu0 %v4985
        %5006 = vmatpush.msra.mxu0 %v4984
        %5007 = vmatmul.f32.gmra.mxu0 %v4989
        %v5008 = vpop.f32.mrf.mxu0
        %v5009 = vadd.f32 0.0, %v5008
        %5010 = vdwg.mxu0
        %v5011 = vadd.f32 %v4982, %v5009
        %s5012 = scalar_lea.vmem %s7, 320
        %v5013 = vld [vmem:[%s5012] sm:$0xff]
        %v5014 = vld [vmem:[%s5012 + $0x8] sm:$0xff]
        %v5015 = vld [vmem:[%s5012 + $0x10] sm:$0xff]
        %v5016 = vld [vmem:[%s5012 + $0x18] sm:$0xff]
        %v5017 = vrot.slane %v4720, 2
        %v5018 = vsel %vm3911, %v5017, 0
        %5020 = vmatpush.msra.mxu0 0.0
        %5021 = vmatpush.msra.mxu0 0.0
        %5022 = vmatpush.msra.mxu0 0.0
        %5023 = vmatpush.msra.mxu0 0.0
        %5024 = vmatpush.msra.mxu0 0.0
        %5025 = vmatpush.msra.mxu0 0.0
        %5026 = vmatpush.msra.mxu0 0.0
        %5027 = vmatpush.msra.mxu0 0.0
        %5028 = vmatpush.msra.mxu0 0.0
        %5029 = vmatpush.msra.mxu0 0.0
        %5030 = vmatpush.msra.mxu0 0.0
        %5031 = vmatpush.msra.mxu0 0.0
        %5032 = vmatpush.msra.mxu0 %v5016
        %5033 = vmatpush.msra.mxu0 %v5015
        %5034 = vmatpush.msra.mxu0 %v5014
        %5035 = vmatpush.msra.mxu0 %v5013
        %5036 = vmatmul.f32.gmra.mxu0 %v5018
        %v5037 = vpop.f32.mrf.mxu0
        %v5038 = vadd.f32 0.0, %v5037
        %5039 = vdwg.mxu0
        %v5040 = vadd.f32 %v5011, %v5038
        %s5041 = scalar_lea.vmem %s7, 352
        %v5042 = vld [vmem:[%s5041] sm:$0xff]
        %v5043 = vld [vmem:[%s5041 + $0x8] sm:$0xff]
        %v5044 = vld [vmem:[%s5041 + $0x10] sm:$0xff]
        %v5045 = vld [vmem:[%s5041 + $0x18] sm:$0xff]
        %v5046 = vrot.slane %v4720, 3
        %v5047 = vsel %vm3911, %v5046, 0
        %5049 = vmatpush.msra.mxu0 0.0
        %5050 = vmatpush.msra.mxu0 0.0
        %5051 = vmatpush.msra.mxu0 0.0
        %5052 = vmatpush.msra.mxu0 0.0
        %5053 = vmatpush.msra.mxu0 0.0
        %5054 = vmatpush.msra.mxu0 0.0
        %5055 = vmatpush.msra.mxu0 0.0
        %5056 = vmatpush.msra.mxu0 0.0
        %5057 = vmatpush.msra.mxu0 0.0
        %5058 = vmatpush.msra.mxu0 0.0
        %5059 = vmatpush.msra.mxu0 0.0
        %5060 = vmatpush.msra.mxu0 0.0
        %5061 = vmatpush.msra.mxu0 %v5045
        %5062 = vmatpush.msra.mxu0 %v5044
        %5063 = vmatpush.msra.mxu0 %v5043
        %5064 = vmatpush.msra.mxu0 %v5042
        %5065 = vmatmul.f32.gmra.mxu0 %v5047
        %v5066 = vpop.f32.mrf.mxu0
        %v5067 = vadd.f32 0.0, %v5066
        %5068 = vdwg.mxu0
        %v5069 = vadd.f32 %v5040, %v5067
        %s5070 = scalar_lea.vmem %s7, 384
        %v5071 = vld [vmem:[%s5070] sm:$0xff]
        %v5072 = vld [vmem:[%s5070 + $0x8] sm:$0xff]
        %v5073 = vld [vmem:[%s5070 + $0x10] sm:$0xff]
        %v5074 = vld [vmem:[%s5070 + $0x18] sm:$0xff]
        %v5075 = vrot.slane %v4720, 4
        %v5076 = vsel %vm3911, %v5075, 0
        %5078 = vmatpush.msra.mxu0 0.0
        %5079 = vmatpush.msra.mxu0 0.0
        %5080 = vmatpush.msra.mxu0 0.0
        %5081 = vmatpush.msra.mxu0 0.0
        %5082 = vmatpush.msra.mxu0 0.0
        %5083 = vmatpush.msra.mxu0 0.0
        %5084 = vmatpush.msra.mxu0 0.0
        %5085 = vmatpush.msra.mxu0 0.0
        %5086 = vmatpush.msra.mxu0 0.0
        %5087 = vmatpush.msra.mxu0 0.0
        %5088 = vmatpush.msra.mxu0 0.0
        %5089 = vmatpush.msra.mxu0 0.0
        %5090 = vmatpush.msra.mxu0 %v5074
        %5091 = vmatpush.msra.mxu0 %v5073
        %5092 = vmatpush.msra.mxu0 %v5072
        %5093 = vmatpush.msra.mxu0 %v5071
        %5094 = vmatmul.f32.gmra.mxu0 %v5076
        %v5095 = vpop.f32.mrf.mxu0
        %v5096 = vadd.f32 0.0, %v5095
        %5097 = vdwg.mxu0
        %v5098 = vadd.f32 %v5069, %v5096
        %s5099 = scalar_lea.vmem %s7, 416
        %v5100 = vld [vmem:[%s5099] sm:$0xff]
        %v5101 = vld [vmem:[%s5099 + $0x8] sm:$0xff]
        %v5102 = vld [vmem:[%s5099 + $0x10] sm:$0xff]
        %v5103 = vld [vmem:[%s5099 + $0x18] sm:$0xff]
        %v5104 = vrot.slane %v4720, 5
        %v5105 = vsel %vm3911, %v5104, 0
        %5107 = vmatpush.msra.mxu0 0.0
        %5108 = vmatpush.msra.mxu0 0.0
        %5109 = vmatpush.msra.mxu0 0.0
        %5110 = vmatpush.msra.mxu0 0.0
        %5111 = vmatpush.msra.mxu0 0.0
        %5112 = vmatpush.msra.mxu0 0.0
        %5113 = vmatpush.msra.mxu0 0.0
        %5114 = vmatpush.msra.mxu0 0.0
        %5115 = vmatpush.msra.mxu0 0.0
        %5116 = vmatpush.msra.mxu0 0.0
        %5117 = vmatpush.msra.mxu0 0.0
        %5118 = vmatpush.msra.mxu0 0.0
        %5119 = vmatpush.msra.mxu0 %v5103
        %5120 = vmatpush.msra.mxu0 %v5102
        %5121 = vmatpush.msra.mxu0 %v5101
        %5122 = vmatpush.msra.mxu0 %v5100
        %5123 = vmatmul.f32.gmra.mxu0 %v5105
        %v5124 = vpop.f32.mrf.mxu0
        %v5125 = vadd.f32 0.0, %v5124
        %5126 = vdwg.mxu0
        %v5127 = vadd.f32 %v5098, %v5125
        %s5128 = scalar_lea.vmem %s7, 448
        %v5129 = vld [vmem:[%s5128] sm:$0xff]
        %v5130 = vld [vmem:[%s5128 + $0x8] sm:$0xff]
        %v5131 = vld [vmem:[%s5128 + $0x10] sm:$0xff]
        %v5132 = vld [vmem:[%s5128 + $0x18] sm:$0xff]
        %v5133 = vrot.slane %v4720, 6
        %v5134 = vsel %vm3911, %v5133, 0
        %5136 = vmatpush.msra.mxu0 0.0
        %5137 = vmatpush.msra.mxu0 0.0
        %5138 = vmatpush.msra.mxu0 0.0
        %5139 = vmatpush.msra.mxu0 0.0
        %5140 = vmatpush.msra.mxu0 0.0
        %5141 = vmatpush.msra.mxu0 0.0
        %5142 = vmatpush.msra.mxu0 0.0
        %5143 = vmatpush.msra.mxu0 0.0
        %5144 = vmatpush.msra.mxu0 0.0
        %5145 = vmatpush.msra.mxu0 0.0
        %5146 = vmatpush.msra.mxu0 0.0
        %5147 = vmatpush.msra.mxu0 0.0
        %5148 = vmatpush.msra.mxu0 %v5132
        %5149 = vmatpush.msra.mxu0 %v5131
        %5150 = vmatpush.msra.mxu0 %v5130
        %5151 = vmatpush.msra.mxu0 %v5129
        %5152 = vmatmul.f32.gmra.mxu0 %v5134
        %v5153 = vpop.f32.mrf.mxu0
        %v5154 = vadd.f32 0.0, %v5153
        %5155 = vdwg.mxu0
        %v5156 = vadd.f32 %v5127, %v5154
        %s5157 = scalar_lea.vmem %s7, 480
        %v5158 = vld [vmem:[%s5157] sm:$0xff]
        %v5159 = vld [vmem:[%s5157 + $0x8] sm:$0xff]
        %v5160 = vld [vmem:[%s5157 + $0x10] sm:$0xff]
        %v5161 = vld [vmem:[%s5157 + $0x18] sm:$0xff]
        %v5162 = vrot.slane %v4720, 7
        %v5163 = vsel %vm3911, %v5162, 0
        %5165 = vmatpush.msra.mxu0 0.0
        %5166 = vmatpush.msra.mxu0 0.0
        %5167 = vmatpush.msra.mxu0 0.0
        %5168 = vmatpush.msra.mxu0 0.0
        %5169 = vmatpush.msra.mxu0 0.0
        %5170 = vmatpush.msra.mxu0 0.0
        %5171 = vmatpush.msra.mxu0 0.0
        %5172 = vmatpush.msra.mxu0 0.0
        %5173 = vmatpush.msra.mxu0 0.0
        %5174 = vmatpush.msra.mxu0 0.0
        %5175 = vmatpush.msra.mxu0 0.0
        %5176 = vmatpush.msra.mxu0 0.0
        %5177 = vmatpush.msra.mxu0 %v5161
        %5178 = vmatpush.msra.mxu0 %v5160
        %5179 = vmatpush.msra.mxu0 %v5159
        %5180 = vmatpush.msra.mxu0 %v5158
        %5181 = vmatmul.f32.gmra.mxu0 %v5163
        %v5182 = vpop.f32.mrf.mxu0
        %v5183 = vadd.f32 0.0, %v5182
        %5184 = vdwg.mxu0
        %v5185 = vadd.f32 %v5156, %v5183
        %5186 = vst [vmem:[%s374] sm:$0x1] %v5185
        %s5187 = sand.u32 %s227, 1
        %s5188 = scalar_lea.sflag [#allocation4], %s5187
        %s5189 = sand.u32 %s227, 1
        %s5190 = scalar_lea.vmem [#allocation8], %s5189
        // Predicated region
        $region69: #{fine_tune_forward.1} parent=55 // pred_check
          %p5191 = pneg %p237
        $region70: #{fine_tune_forward.1} parent=55 // pred_check_branch
          %5193 = sbr.rel (%p5191) target = $region72
        $region71: #{fine_tune_forward.1} parent=55 // pred_region
          %5195 = vsyncadd %s5188, 0
          %s5196 = scalar_lea.hbm %s9, %s25
          %s5198 = sshll.u32 %s5190, 4
          %s5199 = int_to_ptr.vmem [resolvable:$true] %s5198
          %s5200 = sshll.u32 %s5196, 4
          %s5201 = int_to_ptr.hbm [resolvable:$true] %s5200
          %5203 = dma.vmem_to_hbm [thread:$0]  %s5199, 16, %s5201, %s5188
        $region72: #{fine_tune_forward.1} parent=55 // pred_fallthru
          _
      $region56: #{fine_tune_forward.1} parent=5 // pred_fallthru
        _
      %p5204 = scmp.le.s32.totalorder 2, %s20
      // Predicated region
      $region73: #{fine_tune_forward.1} parent=5 // pred_check
        %p5205 = pneg %p5204
      $region74: #{fine_tune_forward.1} parent=5 // pred_check_branch
        %5207 = sbr.rel (%p5205) target = $region76
      $region75: #{fine_tune_forward.1} parent=5 // pred_region
        %s5208 = ssub.s32 %s20, 2
        // Predicated region
        $region77: #{fine_tune_forward.1} parent=75 // pred_check
          %p5209 = pneg %p243
        $region78: #{fine_tune_forward.1} parent=75 // pred_check_branch
          %5211 = sbr.rel (%p5209) target = $region80
        $region79: #{fine_tune_forward.1} parent=75 // pred_region
          %s5212 = sand.u32 %s228, 1
          %s5213 = scalar_lea.sflag [#allocation4], %s5212
          %s5214 = sand.u32 %s228, 1
          %s5215 = scalar_lea.vmem [#allocation8], %s5214
          %5217 = dma.done %s5213, 16
        $region80: #{fine_tune_forward.1} parent=75 // pred_fallthru
          _
      $region76: #{fine_tune_forward.1} parent=5 // pred_fallthru
        _
    $region6: #{fine_tune_forward.1} parent=1 // loop_footer
      %s24 = sadd.s32 1, %s20
    $region7: #{fine_tune_forward.1} parent=1 // loop_footer_branch
      %19 = sbr.rel target = $region3
    $region8: #{fine_tune_forward.1} parent=1 // loop_exit
      _
    %5218 = vsyncpa [#allocation3], 1
    %s5219 = scalar_lea.sflag [#allocation3], 1
    %5220 = vsyncpa %s5219, 1
    %5221 = vsyncpa [#allocation6], 1
    %5222 = vsyncpa [#allocation4], 1
    %s5223 = scalar_lea.sflag [#allocation4], 1
    %5224 = vsyncpa %s5223, 1

</llo_original>
